<compile_context>
chip_gen: v7x
topology: tpu7x:2x2x1
jax: 0.10.0
libtpu: 0.0.40
codegen_flags: <defaults>
</compile_context>

<pallas_src>
import functools

import jax
import jax.numpy as jnp
from jax import lax
from jax.experimental import pallas as pl
from jax.experimental.pallas import tpu as pltpu
import numpy as np

_VMEM_LIMIT = 48 * 1024 * 1024          # safe on v5e/v6e (128 MiB) and v7x (64 MiB)
_VMEM_BUDGET = 36 * 1024 * 1024         # headroom below the scoped limit


def _round_up(x, m):
    return (x + m - 1) // m * m


def _choose_tile_m(m, k, cp, *, tm_max=512, budget=_VMEM_BUDGET):
    """Pick an M tile (multiple of 8) whose double-buffered footprint fits VMEM."""
    tm_max = max(8, (tm_max // 8) * 8)
    tm = min(tm_max, _round_up(m, 8))
    tm = max(8, (tm // 8) * 8)

    def footprint(t):
        return (2 * t * k * 2            # double-buffered bf16 activation tiles
                + 2 * k * cp * 2         # bf16 weights (counted double-buffered)
                + 2 * t * cp * 4         # f32 raw-conv output tiles
                + 2 * t * cp * 4         # pass-2: raw in + residual tiles
                + 8 * cp * 4)            # stats / gamma / beta
    while tm > 8 and footprint(tm) > budget:
        tm = max(8, ((tm // 2) // 8) * 8)
    return tm


def _pad_rows(a, mp):
    m = a.shape[0]
    return a if m == mp else jnp.pad(a, ((0, mp - m), (0, 0)))


def _pad_vec(v, cp, val):
    return jnp.pad(v, (0, cp - v.shape[0]), constant_values=val)


# ----------------------------------------------------------------------------
# Pass 1: tiled conv matmul + global BN statistics accumulation.
# ----------------------------------------------------------------------------
def _conv_stats_kernel(x_ref, w_ref, raw_ref, stats_ref):
    @pl.when(pl.program_id(0) == 0)
    def _():
        stats_ref[...] = jnp.zeros_like(stats_ref)

    acc = jnp.dot(x_ref[...], w_ref[...], preferred_element_type=jnp.float32)
    raw_ref[...] = acc
    s = jnp.sum(acc, axis=0, keepdims=True)          # (1, Cp) per-channel sum
    s2 = jnp.sum(acc * acc, axis=0, keepdims=True)   # (1, Cp) per-channel sumsq
    stats_ref[...] += jnp.concatenate([s, s2], axis=0)


def conv_stats(x2d, w2d, *, tm):
    """x2d: (Mp, K) bf16 patches, w2d: (K, Cp) bf16. -> (raw f32, stats f32)."""
    mp, k = x2d.shape
    cp = w2d.shape[1]
    grid = (mp // tm,)
    return pl.pallas_call(
        _conv_stats_kernel,
        out_shape=(jax.ShapeDtypeStruct((mp, cp), jnp.float32),
                   jax.ShapeDtypeStruct((2, cp), jnp.float32)),
        grid=grid,
        in_specs=[pl.BlockSpec((tm, k), lambda i: (i, 0)),
                  pl.BlockSpec((k, cp), lambda i: (0, 0))],
        out_specs=(pl.BlockSpec((tm, cp), lambda i: (i, 0)),
                   pl.BlockSpec((2, cp), lambda i: (0, 0))),
        compiler_params=pltpu.CompilerParams(
            dimension_semantics=("arbitrary",),      # stats accumulator across M
            vmem_limit_bytes=_VMEM_LIMIT),
    )(x2d, w2d)


# ----------------------------------------------------------------------------
# Pass 2: BN (folded scale/shift) + optional residual (+ its BN) + ReLU.
# ----------------------------------------------------------------------------
def _affine_from_stats(stats, gamma, beta, inv_m, eps):
    mean = stats[0:1, :] * inv_m
    var = jnp.maximum(stats[1:2, :] * inv_m - mean * mean, 0.0)
    scale = gamma * lax.rsqrt(var + eps)
    shift = beta - mean * scale
    return scale, shift


def _bn_act_kernel(*refs, has_residual, residual_has_bn, apply_relu, inv_m, eps):
    idx = 0
    raw_ref = refs[idx]; idx += 1
    stats_ref = refs[idx]; idx += 1
    g_ref = refs[idx]; idx += 1
    b_ref = refs[idx]; idx += 1
    if has_residual:
        res_ref = refs[idx]; idx += 1
        if residual_has_bn:
            rstats_ref = refs[idx]; idx += 1
            rg_ref = refs[idx]; idx += 1
            rb_ref = refs[idx]; idx += 1
    o_ref = refs[idx]

    scale, shift = _affine_from_stats(stats_ref[...], g_ref[...], b_ref[...],
                                      inv_m, eps)
    y = raw_ref[...] * scale + shift
    if has_residual:
        r = res_ref[...].astype(jnp.float32)
        if residual_has_bn:
            rscale, rshift = _affine_from_stats(rstats_ref[...], rg_ref[...],
                                                rb_ref[...], inv_m, eps)
            r = r * rscale + rshift
        y = y + r
    if apply_relu:
        y = jnp.maximum(y, 0.0)
    o_ref[...] = y.astype(o_ref.dtype)


def bn_act(raw, stats, gamma, beta, *, m_valid, tm, relu, out_dtype, eps=1e-5,
           residual_raw=None, residual_stats=None, residual_gamma=None,
           residual_beta=None):
    mp, cp = raw.shape
    grid = (mp // tm,)
    args = [raw, stats,
            gamma.reshape(1, cp).astype(jnp.float32),
            beta.reshape(1, cp).astype(jnp.float32)]
    in_specs = [pl.BlockSpec((tm, cp), lambda i: (i, 0)),
                pl.BlockSpec((2, cp), lambda i: (0, 0)),
                pl.BlockSpec((1, cp), lambda i: (0, 0)),
                pl.BlockSpec((1, cp), lambda i: (0, 0))]
    has_residual = residual_raw is not None
    residual_has_bn = residual_stats is not None
    if has_residual:
        args.append(residual_raw)
        in_specs.append(pl.BlockSpec((tm, cp), lambda i: (i, 0)))
        if residual_has_bn:
            args += [residual_stats,
                     residual_gamma.reshape(1, cp).astype(jnp.float32),
                     residual_beta.reshape(1, cp).astype(jnp.float32)]
            in_specs += [pl.BlockSpec((2, cp), lambda i: (0, 0)),
                         pl.BlockSpec((1, cp), lambda i: (0, 0)),
                         pl.BlockSpec((1, cp), lambda i: (0, 0))]

    kernel = functools.partial(
        _bn_act_kernel, has_residual=has_residual,
        residual_has_bn=residual_has_bn, apply_relu=relu,
        inv_m=1.0 / float(m_valid), eps=float(eps))
    return pl.pallas_call(
        kernel,
        out_shape=jax.ShapeDtypeStruct((mp, cp), out_dtype),
        grid=grid,
        in_specs=in_specs,
        out_specs=pl.BlockSpec((tm, cp), lambda i: (i, 0)),
        compiler_params=pltpu.CompilerParams(
            dimension_semantics=("parallel",),       # independent tiles -> megacore
            vmem_limit_bytes=_VMEM_LIMIT),
    )(*args)


# ----------------------------------------------------------------------------
# JAX glue: im2col for 3x3, padding=1, given stride (kept in bf16).
# ----------------------------------------------------------------------------
def im2col_3x3(x_nhwc, stride):
    n, h, w, c = x_nhwc.shape
    xp = jnp.pad(x_nhwc, ((0, 0), (1, 1), (1, 1), (0, 0)))
    ho = (h - 1) // stride + 1
    wo = (w - 1) // stride + 1
    cols = []
    for kh in range(3):
        for kw in range(3):
            sl = xp[:, kh:kh + stride * (ho - 1) + 1:stride,
                       kw:kw + stride * (wo - 1) + 1:stride, :]
            cols.append(sl)
    patches = jnp.concatenate(cols, axis=-1)          # (N, Ho, Wo, 9*C)
    return patches.reshape(n * ho * wo, 9 * c), (n, ho, wo)


# ----------------------------------------------------------------------------
# BasicBlock forward (NCHW in / NCHW out, matching the PyTorch module).
# ----------------------------------------------------------------------------
def basic_block_forward(x_nchw, params, stride, *, eps=1e-5, tm_max=512):
    x = jnp.transpose(x_nchw, (0, 2, 3, 1)).astype(jnp.float32)  # NCHW -> NHWC
    n, h, w, cin = x.shape
    c = params["w1"].shape[-1]
    cp = _round_up(c, 128)                       # lane-dense output channels

    # Weights: pad out-channels (and conv2 in-channels) to cp, cast bf16.
    w1 = jnp.pad(params["w1"], ((0, 0), (0, 0), (0, 0), (0, cp - c)))
    w1 = w1.reshape(9 * cin, cp).astype(jnp.bfloat16)
    w2 = jnp.pad(params["w2"], ((0, 0), (0, 0), (0, cp - c), (0, cp - c)))
    w2 = w2.reshape(9 * cp, cp).astype(jnp.bfloat16)
    g1 = _pad_vec(params["g1"], cp, 1.0); b1 = _pad_vec(params["b1"], cp, 0.0)
    g2 = _pad_vec(params["g2"], cp, 1.0); b2 = _pad_vec(params["b2"], cp, 0.0)

    ho = (h - 1) // stride + 1
    wo = (w - 1) // stride + 1
    m = n * ho * wo
    tm = _choose_tile_m(m, 9 * cp, cp, tm_max=tm_max)
    mp = _round_up(m, tm)

    # ---- conv1 -> bn1 -> relu ------------------------------------------------
    patches1, _ = im2col_3x3(x, stride)
    p1 = _pad_rows(patches1.astype(jnp.bfloat16), mp)
    raw1, stats1 = conv_stats(p1, w1, tm=tm)
    out1 = bn_act(raw1, stats1, g1, b1, m_valid=m, tm=tm, relu=True,
                  out_dtype=jnp.bfloat16, eps=eps)           # (mp, cp) bf16

    # ---- shortcut --------------------------------------------------------------
    use_projection = (stride != 1) or (cin != c)
    if use_projection:
        # 1x1 conv, stride s. The PyTorch conv has bias=True, but the bias is
        # added right before a training-mode BatchNorm whose mean subtraction
        # cancels it exactly -> dropped (dead compute, one less HBM input).
        x_sub = x[:, ::stride, ::stride, :].reshape(m, cin)
        w_sc = jnp.pad(params["w_sc"].reshape(cin, c), ((0, 0), (0, cp - c)))
        w_sc = w_sc.astype(jnp.bfloat16)
        g_sc = _pad_vec(params["g_sc"], cp, 1.0)
        b_sc = _pad_vec(params["b_sc"], cp, 0.0)
        raw_sc, stats_sc = conv_stats(
            _pad_rows(x_sub.astype(jnp.bfloat16), mp), w_sc, tm=tm)
        res_raw, res_stats, res_g, res_b = raw_sc, stats_sc, g_sc, b_sc
    else:
        res_raw = jnp.pad(x.reshape(m, cin), ((0, mp - m), (0, cp - cin)))
        res_stats, res_g, res_b = None, None, None

    # ---- conv2 -> bn2 -> (+shortcut BN) -> relu (fused epilogue) ---------------
    out1_nhwc = out1[:m].reshape(n, ho, wo, cp)
    patches2, _ = im2col_3x3(out1_nhwc, 1)
    p2 = _pad_rows(patches2, mp)                              # already bf16
    raw2, stats2 = conv_stats(p2, w2, tm=tm)
    out2 = bn_act(raw2, stats2, g2, b2, m_valid=m, tm=tm, relu=True,
                  out_dtype=jnp.float32, eps=eps,
                  residual_raw=res_raw, residual_stats=res_stats,
                  residual_gamma=res_g, residual_beta=res_b)

    out = out2[:m, :c].reshape(n, ho, wo, c)
    return jnp.transpose(out, (0, 3, 1, 2))                   # NHWC -> NCHW


# ----------------------------------------------------------------------------
# Pure-JAX references.
# ----------------------------------------------------------------------------
def _ref_bn(x, g, b, eps=1e-5):
    mean = jnp.mean(x, axis=(0, 1, 2), keepdims=True)
    var = jnp.mean(jnp.square(x - mean), axis=(0, 1, 2), keepdims=True)
    return (x - mean) * lax.rsqrt(var + eps) * g + b


def basic_block_reference(x_nchw, params, stride, *, eps=1e-5,
                          match_kernel_precision=False):
    """match_kernel_precision=True mirrors the kernel's bf16 MXU-operand casts."""
    cdt = jnp.bfloat16 if match_kernel_precision else jnp.float32

    def conv(xx, ww, s, p, bias=None):
        out = lax.conv_general_dilated(
            xx.astype(cdt), ww.astype(cdt), (s, s), ((p, p), (p, p)),
            dimension_numbers=("NHWC", "HWIO", "NHWC"),
            preferred_element_type=jnp.float32)
        if bias is not None:
            out = out + bias
        return out

    x = jnp.transpose(x_nchw, (0, 2, 3, 1))
    cin = x.shape[-1]
    c = params["w1"].shape[-1]
    out = conv(x, params["w1"], stride, 1)
    out = _ref_bn(out, params["g1"], params["b1"], eps)
    out = jnp.maximum(out, 0.0)
    if match_kernel_precision:
        out = out.astype(jnp.bfloat16).astype(jnp.float32)
    out = conv(out, params["w2"], 1, 1)
    out = _ref_bn(out, params["g2"], params["b2"], eps)
    if stride != 1 or cin != c:
        sc = conv(x, params["w_sc"], stride, 0, bias=params["bias_sc"])
        sc = _ref_bn(sc, params["g_sc"], params["b_sc"], eps)
    else:
        sc = x
    out = jnp.maximum(out + sc, 0.0)
    return jnp.transpose(out, (0, 3, 1, 2))


# ----------------------------------------------------------------------------
# Main
# ----------------------------------------------------------------------------
if __name__ == "__main__":
    # Small shapes; stride=2 / inplanes != planes exercises the projection path.
    N, Cin, H, W = 2, 4, 16, 16
    planes, stride = 8, 2

    key = jax.random.PRNGKey(0)
    k_x, k_w1, k_w2, k_wsc, k_bsc = jax.random.split(key, 5)
    x = jax.random.normal(k_x, (N, Cin, H, W), dtype=jnp.float32)

    params = {
        # Conv weights stored HWIO; 3x3 convs have bias=False.
        "w1": jax.random.normal(k_w1, (3, 3, Cin, planes), jnp.float32) * 0.1,
        "w2": jax.random.normal(k_w2, (3, 3, planes, planes), jnp.float32) * 0.1,
        # BatchNorm2d default init (training mode): gamma=1, beta=0.
        "g1": jnp.ones((planes,), jnp.float32),
        "b1": jnp.zeros((planes,), jnp.float32),
        "g2": jnp.ones((planes,), jnp.float32),
        "b2": jnp.zeros((planes,), jnp.float32),
        # Shortcut: 1x1 conv (bias=True in PyTorch; cancelled by BN) + BN.
        "w_sc": jax.random.normal(k_wsc, (1, 1, Cin, planes), jnp.float32) * 0.1,
        "bias_sc": jax.random.normal(k_bsc, (planes,), jnp.float32) * 0.1,
        "g_sc": jnp.ones((planes,), jnp.float32),
        "b_sc": jnp.zeros((planes,), jnp.float32),
    }

    # Small tm (64) so the demo actually exercises the multi-tile grid and the
    # cross-tile stats accumulation (M = 2*8*8 = 128 -> grid of 2).
    fwd = jax.jit(functools.partial(basic_block_forward, stride=stride, tm_max=64))
    out = jax.block_until_ready(fwd(x, params))
    assert out.shape == (N, planes, H // stride, W // stride)

    # Tight check vs a reference that mirrors the kernel's bf16 MXU-operand
    # precision, plus a looser check vs the pure-f32 PyTorch-semantics reference
    # (difference there is just bf16 matmul-operand rounding).
    ref_matched = jax.block_until_ready(
        basic_block_reference(x, params, stride, match_kernel_precision=True))
    ref_f32 = jax.block_until_ready(
        basic_block_reference(x, params, stride, match_kernel_precision=False))
    np.testing.assert_allclose(np.asarray(out), np.asarray(ref_matched),
                               rtol=5e-3, atol=5e-3)
    np.testing.assert_allclose(np.asarray(out), np.asarray(ref_f32),
                               rtol=5e-2, atol=5e-2)

    print("KERNEL_OK")
</pallas_src>

<mosaic_0001>
module attributes {stable_mosaic.version = 11 : i64} {
  func.func @_conv_stats_kernel(%arg0: i32, %arg1: memref<64x36xbf16, #tpu.memory_space<vmem>>, %arg2: memref<36x128xbf16, #tpu.memory_space<vmem>>, %arg3: memref<64x128xf32, #tpu.memory_space<vmem>>, %arg4: memref<2x128xf32, #tpu.memory_space<vmem>>) attributes {dimension_semantics = [#tpu.dimension_semantics<arbitrary>], iteration_bounds = array<i64: 2>, scalar_prefetch = 0 : i64, scratch_operands = 0 : i64, tpu.core_type = #tpu.core_type<tc>, window_params = [{transform_indices = @transform_0, window_bounds = array<i64: 64, 36>}, {pipeline_mode = #tpu.pipeline_mode<synchronous>, transform_indices = @transform_1, window_bounds = array<i64: 36, 128>}, {transform_indices = @transform_2, window_bounds = array<i64: 64, 128>}, {pipeline_mode = #tpu.pipeline_mode<synchronous>, transform_indices = @transform_3, window_bounds = array<i64: 2, 128>}]} {
    %c0_i32 = arith.constant 0 : i32
    %0 = arith.cmpi eq, %arg0, %c0_i32 : i32
    %1 = arith.extui %0 : i1 to i32
    %c0_i32_0 = arith.constant 0 : i32
    %2 = arith.cmpi ne, %1, %c0_i32_0 : i32
    scf.if %2 {
      %cst_12 = arith.constant 0.000000e+00 : f32
      %16 = vector.broadcast %cst_12 : f32 to vector<2x128xf32>
      %c0_13 = arith.constant 0 : index
      %c0_14 = arith.constant 0 : index
      %17 = vector.load %arg4[%c0_13, %c0_14] : memref<2x128xf32, #tpu.memory_space<vmem>>, vector<2x128xf32>
      tpu.vector_store %arg4[%c0_13, %c0_14], %16 {strides = array<i32>} : memref<2x128xf32, #tpu.memory_space<vmem>>, vector<2x128xf32>,
    } else {
    }
    %c0 = arith.constant 0 : index
    %c0_1 = arith.constant 0 : index
    %3 = vector.load %arg1[%c0, %c0_1] : memref<64x36xbf16, #tpu.memory_space<vmem>>, vector<64x36xbf16>
    %c0_2 = arith.constant 0 : index
    %c0_3 = arith.constant 0 : index
    %4 = vector.load %arg2[%c0_2, %c0_3] : memref<36x128xbf16, #tpu.memory_space<vmem>>, vector<36x128xbf16>
    %cst = arith.constant dense<0.000000e+00> : vector<64x128xf32>
    %5 = tpu.matmul %3, %4, %cst {dimension_numbers = #tpu.dot_dimension_numbers<[1], [0], [0], [1], [0, 0, 1, 1], [], []>} : vector<64x36xbf16>, vector<36x128xbf16>, vector<64x128xf32> -> vector<64x128xf32>
    %c0_4 = arith.constant 0 : index
    %c0_5 = arith.constant 0 : index
    %6 = vector.load %arg3[%c0_4, %c0_5] : memref<64x128xf32, #tpu.memory_space<vmem>>, vector<64x128xf32>
    tpu.vector_store %arg3[%c0_4, %c0_5], %5 {strides = array<i32>} : memref<64x128xf32, #tpu.memory_space<vmem>>, vector<64x128xf32>,
    %cst_6 = arith.constant dense<0.000000e+00> : vector<128xf32>
    %7 = vector.multi_reduction <add>, %5, %cst_6 [0] : vector<64x128xf32> to vector<128xf32>
    %8 = vector.shape_cast %7 : vector<128xf32> to vector<1x128xf32>
    %9 = arith.mulf %5, %5 : vector<64x128xf32>
    %cst_7 = arith.constant dense<0.000000e+00> : vector<128xf32>
    %10 = vector.multi_reduction <add>, %9, %cst_7 [0] : vector<64x128xf32> to vector<128xf32>
    %11 = vector.shape_cast %10 : vector<128xf32> to vector<1x128xf32>
    %c0_8 = arith.constant 0 : index
    %c0_9 = arith.constant 0 : index
    %12 = vector.load %arg4[%c0_8, %c0_9] : memref<2x128xf32, #tpu.memory_space<vmem>>, vector<2x128xf32>
    %13 = tpu.concatenate %8, %11 in 0 : vector<1x128xf32>, vector<1x128xf32> -> vector<2x128xf32>
    %14 = arith.addf %12, %13 : vector<2x128xf32>
    %c0_10 = arith.constant 0 : index
    %c0_11 = arith.constant 0 : index
    %15 = vector.load %arg4[%c0_10, %c0_11] : memref<2x128xf32, #tpu.memory_space<vmem>>, vector<2x128xf32>
    tpu.vector_store %arg4[%c0_10, %c0_11], %14 {strides = array<i32>} : memref<2x128xf32, #tpu.memory_space<vmem>>, vector<2x128xf32>,
    return
  }
  func.func @transform_0(%arg0: i32) -> (i32, i32) {
    %c0_i32 = arith.constant 0 : i32
    %c0_i32_0 = arith.constant 0 : i32
    return %arg0, %c0_i32 : i32, i32
  }
  func.func @transform_1(%arg0: i32) -> (i32, i32) {
    %c0_i32 = arith.constant 0 : i32
    %c0_i32_0 = arith.constant 0 : i32
    %c0_i32_1 = arith.constant 0 : i32
    return %c0_i32, %c0_i32_0 : i32, i32
  }
  func.func @transform_2(%arg0: i32) -> (i32, i32) {
    %c0_i32 = arith.constant 0 : i32
    %c0_i32_0 = arith.constant 0 : i32
    return %arg0, %c0_i32 : i32, i32
  }
  func.func @transform_3(%arg0: i32) -> (i32, i32) {
    %c0_i32 = arith.constant 0 : i32
    %c0_i32_0 = arith.constant 0 : i32
    %c0_i32_1 = arith.constant 0 : i32
    return %c0_i32, %c0_i32_0 : i32, i32
  }
}

module attributes {stable_mosaic.version = 11 : i64} {
  func.func @_bn_act_kernel(%arg0: i32, %arg1: memref<64x128xf32, #tpu.memory_space<vmem>>, %arg2: memref<2x128xf32, #tpu.memory_space<vmem>>, %arg3: memref<1x128xf32, #tpu.memory_space<vmem>>, %arg4: memref<1x128xf32, #tpu.memory_space<vmem>>, %arg5: memref<64x128xbf16, #tpu.memory_space<vmem>>) attributes {dimension_semantics = [#tpu.dimension_semantics<parallel>], iteration_bounds = array<i64: 2>, scalar_prefetch = 0 : i64, scratch_operands = 0 : i64, tpu.core_type = #tpu.core_type<tc>, window_params = [{transform_indices = @transform_0, window_bounds = array<i64: 64, 128>}, {pipeline_mode = #tpu.pipeline_mode<synchronous>, transform_indices = @transform_1, window_bounds = array<i64: 2, 128>}, {pipeline_mode = #tpu.pipeline_mode<synchronous>, transform_indices = @transform_2, window_bounds = array<i64: 1, 128>}, {pipeline_mode = #tpu.pipeline_mode<synchronous>, transform_indices = @transform_3, window_bounds = array<i64: 1, 128>}, {transform_indices = @transform_4, window_bounds = array<i64: 64, 128>}]} {
    %c0 = arith.constant 0 : index
    %c0_0 = arith.constant 0 : index
    %0 = vector.load %arg2[%c0, %c0_0] : memref<2x128xf32, #tpu.memory_space<vmem>>, vector<2x128xf32>
    %c0_1 = arith.constant 0 : index
    %c0_2 = arith.constant 0 : index
    %1 = vector.load %arg3[%c0_1, %c0_2] : memref<1x128xf32, #tpu.memory_space<vmem>>, vector<1x128xf32>
    %c0_3 = arith.constant 0 : index
    %c0_4 = arith.constant 0 : index
    %2 = vector.load %arg4[%c0_3, %c0_4] : memref<1x128xf32, #tpu.memory_space<vmem>>, vector<1x128xf32>
    %3 = vector.extract_strided_slice %0 {offsets = [0, 0], sizes = [1, 128], strides = [1, 1]} : vector<2x128xf32> to vector<1x128xf32>
    %cst = arith.constant 7.812500e-03 : f32
    %4 = vector.broadcast %cst : f32 to vector<1x128xf32>
    %5 = arith.mulf %3, %4 : vector<1x128xf32>
    %6 = vector.extract_strided_slice %0 {offsets = [1, 0], sizes = [1, 128], strides = [1, 1]} : vector<2x128xf32> to vector<1x128xf32>
    %cst_5 = arith.constant 7.812500e-03 : f32
    %7 = vector.broadcast %cst_5 : f32 to vector<1x128xf32>
    %8 = arith.mulf %6, %7 : vector<1x128xf32>
    %9 = arith.mulf %5, %5 : vector<1x128xf32>
    %10 = arith.subf %8, %9 : vector<1x128xf32>
    %cst_6 = arith.constant 0.000000e+00 : f32
    %11 = vector.broadcast %cst_6 : f32 to vector<1x128xf32>
    %12 = arith.maximumf %10, %11 : vector<1x128xf32>
    %cst_7 = arith.constant 9.99999974E-6 : f32
    %13 = vector.broadcast %cst_7 : f32 to vector<1x128xf32>
    %14 = arith.addf %12, %13 : vector<1x128xf32>
    %15 = math.rsqrt %14 : vector<1x128xf32>
    %16 = arith.mulf %1, %15 : vector<1x128xf32>
    %17 = arith.mulf %5, %16 : vector<1x128xf32>
    %18 = arith.subf %2, %17 : vector<1x128xf32>
    %c0_8 = arith.constant 0 : index
    %c0_9 = arith.constant 0 : index
    %19 = vector.load %arg1[%c0_8, %c0_9] : memref<64x128xf32, #tpu.memory_space<vmem>>, vector<64x128xf32>
    %20 = vector.broadcast %16 : vector<1x128xf32> to vector<64x128xf32>
    %21 = arith.mulf %19, %20 : vector<64x128xf32>
    %22 = vector.broadcast %18 : vector<1x128xf32> to vector<64x128xf32>
    %23 = arith.addf %21, %22 : vector<64x128xf32>
    %cst_10 = arith.constant 0.000000e+00 : f32
    %24 = vector.broadcast %cst_10 : f32 to vector<64x128xf32>
    %25 = arith.maximumf %23, %24 : vector<64x128xf32>
    %26 = arith.truncf %25 : vector<64x128xf32> to vector<64x128xbf16>
    %c0_11 = arith.constant 0 : index
    %c0_12 = arith.constant 0 : index
    %27 = vector.load %arg5[%c0_11, %c0_12] : memref<64x128xbf16, #tpu.memory_space<vmem>>, vector<64x128xbf16>
    tpu.vector_store %arg5[%c0_11, %c0_12], %26 {strides = array<i32>} : memref<64x128xbf16, #tpu.memory_space<vmem>>, vector<64x128xbf16>,
    return
  }
  func.func @transform_0(%arg0: i32) -> (i32, i32) {
    %c0_i32 = arith.constant 0 : i32
    %c0_i32_0 = arith.constant 0 : i32
    return %arg0, %c0_i32 : i32, i32
  }
  func.func @transform_1(%arg0: i32) -> (i32, i32) {
    %c0_i32 = arith.constant 0 : i32
    %c0_i32_0 = arith.constant 0 : i32
    %c0_i32_1 = arith.constant 0 : i32
    return %c0_i32, %c0_i32_0 : i32, i32
  }
  func.func @transform_2(%arg0: i32) -> (i32, i32) {
    %c0_i32 = arith.constant 0 : i32
    %c0_i32_0 = arith.constant 0 : i32
    %c0_i32_1 = arith.constant 0 : i32
    return %c0_i32, %c0_i32_0 : i32, i32
  }
  func.func @transform_3(%arg0: i32) -> (i32, i32) {
    %c0_i32 = arith.constant 0 : i32
    %c0_i32_0 = arith.constant 0 : i32
    %c0_i32_1 = arith.constant 0 : i32
    return %c0_i32, %c0_i32_0 : i32, i32
  }
  func.func @transform_4(%arg0: i32) -> (i32, i32) {
    %c0_i32 = arith.constant 0 : i32
    %c0_i32_0 = arith.constant 0 : i32
    return %arg0, %c0_i32 : i32, i32
  }
}

module attributes {stable_mosaic.version = 11 : i64} {
  func.func @_conv_stats_kernel(%arg0: i32, %arg1: memref<64x1152xbf16, #tpu.memory_space<vmem>>, %arg2: memref<1152x128xbf16, #tpu.memory_space<vmem>>, %arg3: memref<64x128xf32, #tpu.memory_space<vmem>>, %arg4: memref<2x128xf32, #tpu.memory_space<vmem>>) attributes {dimension_semantics = [#tpu.dimension_semantics<arbitrary>], iteration_bounds = array<i64: 2>, scalar_prefetch = 0 : i64, scratch_operands = 0 : i64, tpu.core_type = #tpu.core_type<tc>, window_params = [{transform_indices = @transform_0, window_bounds = array<i64: 64, 1152>}, {pipeline_mode = #tpu.pipeline_mode<synchronous>, transform_indices = @transform_1, window_bounds = array<i64: 1152, 128>}, {transform_indices = @transform_2, window_bounds = array<i64: 64, 128>}, {pipeline_mode = #tpu.pipeline_mode<synchronous>, transform_indices = @transform_3, window_bounds = array<i64: 2, 128>}]} {
    %c0_i32 = arith.constant 0 : i32
    %0 = arith.cmpi eq, %arg0, %c0_i32 : i32
    %1 = arith.extui %0 : i1 to i32
    %c0_i32_0 = arith.constant 0 : i32
    %2 = arith.cmpi ne, %1, %c0_i32_0 : i32
    scf.if %2 {
      %cst_12 = arith.constant 0.000000e+00 : f32
      %16 = vector.broadcast %cst_12 : f32 to vector<2x128xf32>
      %c0_13 = arith.constant 0 : index
      %c0_14 = arith.constant 0 : index
      %17 = vector.load %arg4[%c0_13, %c0_14] : memref<2x128xf32, #tpu.memory_space<vmem>>, vector<2x128xf32>
      tpu.vector_store %arg4[%c0_13, %c0_14], %16 {strides = array<i32>} : memref<2x128xf32, #tpu.memory_space<vmem>>, vector<2x128xf32>,
    } else {
    }
    %c0 = arith.constant 0 : index
    %c0_1 = arith.constant 0 : index
    %3 = vector.load %arg1[%c0, %c0_1] : memref<64x1152xbf16, #tpu.memory_space<vmem>>, vector<64x1152xbf16>
    %c0_2 = arith.constant 0 : index
    %c0_3 = arith.constant 0 : index
    %4 = vector.load %arg2[%c0_2, %c0_3] : memref<1152x128xbf16, #tpu.memory_space<vmem>>, vector<1152x128xbf16>
    %cst = arith.constant dense<0.000000e+00> : vector<64x128xf32>
    %5 = tpu.matmul %3, %4, %cst {dimension_numbers = #tpu.dot_dimension_numbers<[1], [0], [0], [1], [0, 0, 1, 1], [], []>} : vector<64x1152xbf16>, vector<1152x128xbf16>, vector<64x128xf32> -> vector<64x128xf32>
    %c0_4 = arith.constant 0 : index
    %c0_5 = arith.constant 0 : index
    %6 = vector.load %arg3[%c0_4, %c0_5] : memref<64x128xf32, #tpu.memory_space<vmem>>, vector<64x128xf32>
    tpu.vector_store %arg3[%c0_4, %c0_5], %5 {strides = array<i32>} : memref<64x128xf32, #tpu.memory_space<vmem>>, vector<64x128xf32>,
    %cst_6 = arith.constant dense<0.000000e+00> : vector<128xf32>
    %7 = vector.multi_reduction <add>, %5, %cst_6 [0] : vector<64x128xf32> to vector<128xf32>
    %8 = vector.shape_cast %7 : vector<128xf32> to vector<1x128xf32>
    %9 = arith.mulf %5, %5 : vector<64x128xf32>
    %cst_7 = arith.constant dense<0.000000e+00> : vector<128xf32>
    %10 = vector.multi_reduction <add>, %9, %cst_7 [0] : vector<64x128xf32> to vector<128xf32>
    %11 = vector.shape_cast %10 : vector<128xf32> to vector<1x128xf32>
    %c0_8 = arith.constant 0 : index
    %c0_9 = arith.constant 0 : index
    %12 = vector.load %arg4[%c0_8, %c0_9] : memref<2x128xf32, #tpu.memory_space<vmem>>, vector<2x128xf32>
    %13 = tpu.concatenate %8, %11 in 0 : vector<1x128xf32>, vector<1x128xf32> -> vector<2x128xf32>
    %14 = arith.addf %12, %13 : vector<2x128xf32>
    %c0_10 = arith.constant 0 : index
    %c0_11 = arith.constant 0 : index
    %15 = vector.load %arg4[%c0_10, %c0_11] : memref<2x128xf32, #tpu.memory_space<vmem>>, vector<2x128xf32>
    tpu.vector_store %arg4[%c0_10, %c0_11], %14 {strides = array<i32>} : memref<2x128xf32, #tpu.memory_space<vmem>>, vector<2x128xf32>,
    return
  }
  func.func @transform_0(%arg0: i32) -> (i32, i32) {
    %c0_i32 = arith.constant 0 : i32
    %c0_i32_0 = arith.constant 0 : i32
    return %arg0, %c0_i32 : i32, i32
  }
  func.func @transform_1(%arg0: i32) -> (i32, i32) {
    %c0_i32 = arith.constant 0 : i32
    %c0_i32_0 = arith.constant 0 : i32
    %c0_i32_1 = arith.constant 0 : i32
    return %c0_i32, %c0_i32_0 : i32, i32
  }
  func.func @transform_2(%arg0: i32) -> (i32, i32) {
    %c0_i32 = arith.constant 0 : i32
    %c0_i32_0 = arith.constant 0 : i32
    return %arg0, %c0_i32 : i32, i32
  }
  func.func @transform_3(%arg0: i32) -> (i32, i32) {
    %c0_i32 = arith.constant 0 : i32
    %c0_i32_0 = arith.constant 0 : i32
    %c0_i32_1 = arith.constant 0 : i32
    return %c0_i32, %c0_i32_0 : i32, i32
  }
}

module attributes {stable_mosaic.version = 11 : i64} {
  func.func @_conv_stats_kernel(%arg0: i32, %arg1: memref<64x4xbf16, #tpu.memory_space<vmem>>, %arg2: memref<4x128xbf16, #tpu.memory_space<vmem>>, %arg3: memref<64x128xf32, #tpu.memory_space<vmem>>, %arg4: memref<2x128xf32, #tpu.memory_space<vmem>>) attributes {dimension_semantics = [#tpu.dimension_semantics<arbitrary>], iteration_bounds = array<i64: 2>, scalar_prefetch = 0 : i64, scratch_operands = 0 : i64, tpu.core_type = #tpu.core_type<tc>, window_params = [{transform_indices = @transform_0, window_bounds = array<i64: 64, 4>}, {pipeline_mode = #tpu.pipeline_mode<synchronous>, transform_indices = @transform_1, window_bounds = array<i64: 4, 128>}, {transform_indices = @transform_2, window_bounds = array<i64: 64, 128>}, {pipeline_mode = #tpu.pipeline_mode<synchronous>, transform_indices = @transform_3, window_bounds = array<i64: 2, 128>}]} {
    %c0_i32 = arith.constant 0 : i32
    %0 = arith.cmpi eq, %arg0, %c0_i32 : i32
    %1 = arith.extui %0 : i1 to i32
    %c0_i32_0 = arith.constant 0 : i32
    %2 = arith.cmpi ne, %1, %c0_i32_0 : i32
    scf.if %2 {
      %cst_12 = arith.constant 0.000000e+00 : f32
      %16 = vector.broadcast %cst_12 : f32 to vector<2x128xf32>
      %c0_13 = arith.constant 0 : index
      %c0_14 = arith.constant 0 : index
      %17 = vector.load %arg4[%c0_13, %c0_14] : memref<2x128xf32, #tpu.memory_space<vmem>>, vector<2x128xf32>
      tpu.vector_store %arg4[%c0_13, %c0_14], %16 {strides = array<i32>} : memref<2x128xf32, #tpu.memory_space<vmem>>, vector<2x128xf32>,
    } else {
    }
    %c0 = arith.constant 0 : index
    %c0_1 = arith.constant 0 : index
    %3 = vector.load %arg1[%c0, %c0_1] : memref<64x4xbf16, #tpu.memory_space<vmem>>, vector<64x4xbf16>
    %c0_2 = arith.constant 0 : index
    %c0_3 = arith.constant 0 : index
    %4 = vector.load %arg2[%c0_2, %c0_3] : memref<4x128xbf16, #tpu.memory_space<vmem>>, vector<4x128xbf16>
    %cst = arith.constant dense<0.000000e+00> : vector<64x128xf32>
    %5 = tpu.matmul %3, %4, %cst {dimension_numbers = #tpu.dot_dimension_numbers<[1], [0], [0], [1], [0, 0, 1, 1], [], []>} : vector<64x4xbf16>, vector<4x128xbf16>, vector<64x128xf32> -> vector<64x128xf32>
    %c0_4 = arith.constant 0 : index
    %c0_5 = arith.constant 0 : index
    %6 = vector.load %arg3[%c0_4, %c0_5] : memref<64x128xf32, #tpu.memory_space<vmem>>, vector<64x128xf32>
    tpu.vector_store %arg3[%c0_4, %c0_5], %5 {strides = array<i32>} : memref<64x128xf32, #tpu.memory_space<vmem>>, vector<64x128xf32>,
    %cst_6 = arith.constant dense<0.000000e+00> : vector<128xf32>
    %7 = vector.multi_reduction <add>, %5, %cst_6 [0] : vector<64x128xf32> to vector<128xf32>
    %8 = vector.shape_cast %7 : vector<128xf32> to vector<1x128xf32>
    %9 = arith.mulf %5, %5 : vector<64x128xf32>
    %cst_7 = arith.constant dense<0.000000e+00> : vector<128xf32>
    %10 = vector.multi_reduction <add>, %9, %cst_7 [0] : vector<64x128xf32> to vector<128xf32>
    %11 = vector.shape_cast %10 : vector<128xf32> to vector<1x128xf32>
    %c0_8 = arith.constant 0 : index
    %c0_9 = arith.constant 0 : index
    %12 = vector.load %arg4[%c0_8, %c0_9] : memref<2x128xf32, #tpu.memory_space<vmem>>, vector<2x128xf32>
    %13 = tpu.concatenate %8, %11 in 0 : vector<1x128xf32>, vector<1x128xf32> -> vector<2x128xf32>
    %14 = arith.addf %12, %13 : vector<2x128xf32>
    %c0_10 = arith.constant 0 : index
    %c0_11 = arith.constant 0 : index
    %15 = vector.load %arg4[%c0_10, %c0_11] : memref<2x128xf32, #tpu.memory_space<vmem>>, vector<2x128xf32>
    tpu.vector_store %arg4[%c0_10, %c0_11], %14 {strides = array<i32>} : memref<2x128xf32, #tpu.memory_space<vmem>>, vector<2x128xf32>,
    return
  }
  func.func @transform_0(%arg0: i32) -> (i32, i32) {
    %c0_i32 = arith.constant 0 : i32
    %c0_i32_0 = arith.constant 0 : i32
    return %arg0, %c0_i32 : i32, i32
  }
  func.func @transform_1(%arg0: i32) -> (i32, i32) {
    %c0_i32 = arith.constant 0 : i32
    %c0_i32_0 = arith.constant 0 : i32
    %c0_i32_1 = arith.constant 0 : i32
    return %c0_i32, %c0_i32_0 : i32, i32
  }
  func.func @transform_2(%arg0: i32) -> (i32, i32) {
    %c0_i32 = arith.constant 0 : i32
    %c0_i32_0 = arith.constant 0 : i32
    return %arg0, %c0_i32 : i32, i32
  }
  func.func @transform_3(%arg0: i32) -> (i32, i32) {
    %c0_i32 = arith.constant 0 : i32
    %c0_i32_0 = arith.constant 0 : i32
    %c0_i32_1 = arith.constant 0 : i32
    return %c0_i32, %c0_i32_0 : i32, i32
  }
}

module attributes {stable_mosaic.version = 11 : i64} {
  func.func @_bn_act_kernel(%arg0: i32, %arg1: memref<64x128xf32, #tpu.memory_space<vmem>>, %arg2: memref<2x128xf32, #tpu.memory_space<vmem>>, %arg3: memref<1x128xf32, #tpu.memory_space<vmem>>, %arg4: memref<1x128xf32, #tpu.memory_space<vmem>>, %arg5: memref<64x128xf32, #tpu.memory_space<vmem>>, %arg6: memref<2x128xf32, #tpu.memory_space<vmem>>, %arg7: memref<1x128xf32, #tpu.memory_space<vmem>>, %arg8: memref<1x128xf32, #tpu.memory_space<vmem>>, %arg9: memref<64x128xf32, #tpu.memory_space<vmem>>) attributes {dimension_semantics = [#tpu.dimension_semantics<parallel>], iteration_bounds = array<i64: 2>, scalar_prefetch = 0 : i64, scratch_operands = 0 : i64, tpu.core_type = #tpu.core_type<tc>, window_params = [{transform_indices = @transform_0, window_bounds = array<i64: 64, 128>}, {pipeline_mode = #tpu.pipeline_mode<synchronous>, transform_indices = @transform_1, window_bounds = array<i64: 2, 128>}, {pipeline_mode = #tpu.pipeline_mode<synchronous>, transform_indices = @transform_2, window_bounds = array<i64: 1, 128>}, {pipeline_mode = #tpu.pipeline_mode<synchronous>, transform_indices = @transform_3, window_bounds = array<i64: 1, 128>}, {transform_indices = @transform_4, window_bounds = array<i64: 64, 128>}, {pipeline_mode = #tpu.pipeline_mode<synchronous>, transform_indices = @transform_5, window_bounds = array<i64: 2, 128>}, {pipeline_mode = #tpu.pipeline_mode<synchronous>, transform_indices = @transform_6, window_bounds = array<i64: 1, 128>}, {pipeline_mode = #tpu.pipeline_mode<synchronous>, transform_indices = @transform_7, window_bounds = array<i64: 1, 128>}, {transform_indices = @transform_8, window_bounds = array<i64: 64, 128>}]} {
    %c0 = arith.constant 0 : index
    %c0_0 = arith.constant 0 : index
    %0 = vector.load %arg2[%c0, %c0_0] : memref<2x128xf32, #tpu.memory_space<vmem>>, vector<2x128xf32>
    %c0_1 = arith.constant 0 : index
    %c0_2 = arith.constant 0 : index
    %1 = vector.load %arg3[%c0_1, %c0_2] : memref<1x128xf32, #tpu.memory_space<vmem>>, vector<1x128xf32>
    %c0_3 = arith.constant 0 : index
    %c0_4 = arith.constant 0 : index
    %2 = vector.load %arg4[%c0_3, %c0_4] : memref<1x128xf32, #tpu.memory_space<vmem>>, vector<1x128xf32>
    %3 = vector.extract_strided_slice %0 {offsets = [0, 0], sizes = [1, 128], strides = [1, 1]} : vector<2x128xf32> to vector<1x128xf32>
    %cst = arith.constant 7.812500e-03 : f32
    %4 = vector.broadcast %cst : f32 to vector<1x128xf32>
    %5 = arith.mulf %3, %4 : vector<1x128xf32>
    %6 = vector.extract_strided_slice %0 {offsets = [1, 0], sizes = [1, 128], strides = [1, 1]} : vector<2x128xf32> to vector<1x128xf32>
    %cst_5 = arith.constant 7.812500e-03 : f32
    %7 = vector.broadcast %cst_5 : f32 to vector<1x128xf32>
    %8 = arith.mulf %6, %7 : vector<1x128xf32>
    %9 = arith.mulf %5, %5 : vector<1x128xf32>
    %10 = arith.subf %8, %9 : vector<1x128xf32>
    %cst_6 = arith.constant 0.000000e+00 : f32
    %11 = vector.broadcast %cst_6 : f32 to vector<1x128xf32>
    %12 = arith.maximumf %10, %11 : vector<1x128xf32>
    %cst_7 = arith.constant 9.99999974E-6 : f32
    %13 = vector.broadcast %cst_7 : f32 to vector<1x128xf32>
    %14 = arith.addf %12, %13 : vector<1x128xf32>
    %15 = math.rsqrt %14 : vector<1x128xf32>
    %16 = arith.mulf %1, %15 : vector<1x128xf32>
    %17 = arith.mulf %5, %16 : vector<1x128xf32>
    %18 = arith.subf %2, %17 : vector<1x128xf32>
    %c0_8 = arith.constant 0 : index
    %c0_9 = arith.constant 0 : index
    %19 = vector.load %arg1[%c0_8, %c0_9] : memref<64x128xf32, #tpu.memory_space<vmem>>, vector<64x128xf32>
    %20 = vector.broadcast %16 : vector<1x128xf32> to vector<64x128xf32>
    %21 = arith.mulf %19, %20 : vector<64x128xf32>
    %22 = vector.broadcast %18 : vector<1x128xf32> to vector<64x128xf32>
    %23 = arith.addf %21, %22 : vector<64x128xf32>
    %c0_10 = arith.constant 0 : index
    %c0_11 = arith.constant 0 : index
    %24 = vector.load %arg5[%c0_10, %c0_11] : memref<64x128xf32, #tpu.memory_space<vmem>>, vector<64x128xf32>
    %c0_12 = arith.constant 0 : index
    %c0_13 = arith.constant 0 : index
    %25 = vector.load %arg6[%c0_12, %c0_13] : memref<2x128xf32, #tpu.memory_space<vmem>>, vector<2x128xf32>
    %c0_14 = arith.constant 0 : index
    %c0_15 = arith.constant 0 : index
    %26 = vector.load %arg7[%c0_14, %c0_15] : memref<1x128xf32, #tpu.memory_space<vmem>>, vector<1x128xf32>
    %c0_16 = arith.constant 0 : index
    %c0_17 = arith.constant 0 : index
    %27 = vector.load %arg8[%c0_16, %c0_17] : memref<1x128xf32, #tpu.memory_space<vmem>>, vector<1x128xf32>
    %28 = vector.extract_strided_slice %25 {offsets = [0, 0], sizes = [1, 128], strides = [1, 1]} : vector<2x128xf32> to vector<1x128xf32>
    %cst_18 = arith.constant 7.812500e-03 : f32
    %29 = vector.broadcast %cst_18 : f32 to vector<1x128xf32>
    %30 = arith.mulf %28, %29 : vector<1x128xf32>
    %31 = vector.extract_strided_slice %25 {offsets = [1, 0], sizes = [1, 128], strides = [1, 1]} : vector<2x128xf32> to vector<1x128xf32>
    %cst_19 = arith.constant 7.812500e-03 : f32
    %32 = vector.broadcast %cst_19 : f32 to vector<1x128xf32>
    %33 = arith.mulf %31, %32 : vector<1x128xf32>
    %34 = arith.mulf %30, %30 : vector<1x128xf32>
    %35 = arith.subf %33, %34 : vector<1x128xf32>
    %cst_20 = arith.constant 0.000000e+00 : f32
    %36 = vector.broadcast %cst_20 : f32 to vector<1x128xf32>
    %37 = arith.maximumf %35, %36 : vector<1x128xf32>
    %cst_21 = arith.constant 9.99999974E-6 : f32
    %38 = vector.broadcast %cst_21 : f32 to vector<1x128xf32>
    %39 = arith.addf %37, %38 : vector<1x128xf32>
    %40 = math.rsqrt %39 : vector<1x128xf32>
    %41 = arith.mulf %26, %40 : vector<1x128xf32>
    %42 = arith.mulf %30, %41 : vector<1x128xf32>
    %43 = arith.subf %27, %42 : vector<1x128xf32>
    %44 = vector.broadcast %41 : vector<1x128xf32> to vector<64x128xf32>
    %45 = arith.mulf %24, %44 : vector<64x128xf32>
    %46 = vector.broadcast %43 : vector<1x128xf32> to vector<64x128xf32>
    %47 = arith.addf %45, %46 : vector<64x128xf32>
    %48 = arith.addf %23, %47 : vector<64x128xf32>
    %cst_22 = arith.constant 0.000000e+00 : f32
    %49 = vector.broadcast %cst_22 : f32 to vector<64x128xf32>
    %50 = arith.maximumf %48, %49 : vector<64x128xf32>
    %c0_23 = arith.constant 0 : index
    %c0_24 = arith.constant 0 : index
    %51 = vector.load %arg9[%c0_23, %c0_24] : memref<64x128xf32, #tpu.memory_space<vmem>>, vector<64x128xf32>
    tpu.vector_store %arg9[%c0_23, %c0_24], %50 {strides = array<i32>} : memref<64x128xf32, #tpu.memory_space<vmem>>, vector<64x128xf32>,
    return
  }
  func.func @transform_0(%arg0: i32) -> (i32, i32) {
    %c0_i32 = arith.constant 0 : i32
    %c0_i32_0 = arith.constant 0 : i32
    return %arg0, %c0_i32 : i32, i32
  }
  func.func @transform_1(%arg0: i32) -> (i32, i32) {
    %c0_i32 = arith.constant 0 : i32
    %c0_i32_0 = arith.constant 0 : i32
    %c0_i32_1 = arith.constant 0 : i32
    return %c0_i32, %c0_i32_0 : i32, i32
  }
  func.func @transform_2(%arg0: i32) -> (i32, i32) {
    %c0_i32 = arith.constant 0 : i32
    %c0_i32_0 = arith.constant 0 : i32
    %c0_i32_1 = arith.constant 0 : i32
    return %c0_i32, %c0_i32_0 : i32, i32
  }
  func.func @transform_3(%arg0: i32) -> (i32, i32) {
    %c0_i32 = arith.constant 0 : i32
    %c0_i32_0 = arith.constant 0 : i32
    %c0_i32_1 = arith.constant 0 : i32
    return %c0_i32, %c0_i32_0 : i32, i32
  }
  func.func @transform_4(%arg0: i32) -> (i32, i32) {
    %c0_i32 = arith.constant 0 : i32
    %c0_i32_0 = arith.constant 0 : i32
    return %arg0, %c0_i32 : i32, i32
  }
  func.func @transform_5(%arg0: i32) -> (i32, i32) {
    %c0_i32 = arith.constant 0 : i32
    %c0_i32_0 = arith.constant 0 : i32
    %c0_i32_1 = arith.constant 0 : i32
    return %c0_i32, %c0_i32_0 : i32, i32
  }
  func.func @transform_6(%arg0: i32) -> (i32, i32) {
    %c0_i32 = arith.constant 0 : i32
    %c0_i32_0 = arith.constant 0 : i32
    %c0_i32_1 = arith.constant 0 : i32
    return %c0_i32, %c0_i32_0 : i32, i32
  }
  func.func @transform_7(%arg0: i32) -> (i32, i32) {
    %c0_i32 = arith.constant 0 : i32
    %c0_i32_0 = arith.constant 0 : i32
    %c0_i32_1 = arith.constant 0 : i32
    return %c0_i32, %c0_i32_0 : i32, i32
  }
  func.func @transform_8(%arg0: i32) -> (i32, i32) {
    %c0_i32 = arith.constant 0 : i32
    %c0_i32_0 = arith.constant 0 : i32
    return %arg0, %c0_i32 : i32, i32
  }
}

</mosaic_0001>

<llo_original>
// kernel: basic_block_forward.6
$region0: #{basic_block_forward.6}
  #allocation0 [shape = 'u32[]', space=smem, size = 0x4, offset = 0x4, fixed_abs, tag = 'smem constant byte address 0x4 - core index']
  #allocation1 [shape = 'u32[144,128]{1,0:T(1,128)}', space=vmem, size = 0x12000, scoped, tag = 'internal scratch']
  %s0 = inlined_call_operand.vmem [shape: f32[128,128], index: 0, kind: input, shape index: {}]
  %s1 = inlined_call_operand.vmem [shape: f32[2,128], index: 1, kind: input, shape index: {}]
  %s2 = inlined_call_operand.vmem [shape: f32[1,128], index: 2, kind: input, shape index: {}]
  %s3 = inlined_call_operand.vmem [shape: f32[1,128], index: 3, kind: input, shape index: {}]
  %s4 = inlined_call_operand.vmem [shape: bf16[128,128], index: 4, kind: output, shape index: {}]
  %s5 = sld [smem:[#allocation0]]
  $region49: #{basic_block_forward.6} parent=0
    _
  %s7 = ssub.s32 1, %s5
  %s8 = scalar_select 0, %s7, %s5
  loop: start=0, step=1, limit=4
  $region2: #{basic_block_forward.6} parent=0 // loop_pre_header
    _
  $region3: #{basic_block_forward.6} parent=0 // loop_header
    %s10 = sphi 0, %s14
    %p11 = scmp.ge.s32.totalorder %s10, 4
    %s20 = sphi 0, %s22
    %s23 = sphi 0, %s20
    %s24 = sphi 0, %s23
    %s40 = sphi 0, %s24
    %s44 = sphi 0, %s44
    %s46 = sphi 0, %s44
    %s47 = sphi 0, %s46
    %s61 = sphi 0, %s47
    %s65 = sphi 0, %s65
    %s67 = sphi 0, %s65
    %s68 = sphi 0, %s67
    %s82 = sphi 0, %s68
    %s86 = sphi 0, %s86
    %s88 = sphi 0, %s86
    %s89 = sphi 0, %s88
    %s103 = sphi 0, %s89
    %s109 = sphi 0, %s111
    %s112 = sphi 0, %s109
    %s113 = sphi 0, %s112
    %s129 = sphi 0, %s113
  $region4: #{basic_block_forward.6} parent=0 // loop_header_branch
    %13 = sbr.rel (%p11) target = $region8
  $region5: #{basic_block_forward.6} parent=0 // loop_body
    %s15 = ssub.s32 %s10, 1
    %s16 = ssub.s32 %s10, 2
    %s17 = sadd.s32 %s10, 1
    %s18 = ssub.s32 %s10, %s17
    %p19 = scmp.eq.s32.totalorder %s18, 0
    %s21 = sadd.s32 %s20, 1
    %s22 = scalar_select %p19, %s20, %s21
    %p25 = pneg %p19
    %p26 = scmp.eq.s32.totalorder %s10, 1
    %p27 = por %p25, %p26
    %p28 = scmp.ne.s32.totalorder %s20, %s23
    %p29 = scmp.eq.s32.totalorder %s10, 0
    %p30 = por %p28, %p29
    %p31 = scmp.ne.s32.totalorder %s20, %s23
    %p32 = scmp.eq.s32.totalorder %s15, 1
    %p33 = por %p31, %p32
    %p34 = scmp.ne.s32.totalorder %s23, %s24
    %p35 = scmp.eq.s32.totalorder %s15, 0
    %p36 = por %p34, %p35
    %p37 = scmp.ne.s32.totalorder %s23, %s24
    %p38 = scmp.eq.s32.totalorder %s16, 1
    %p39 = por %p37, %p38
    %p41 = scmp.ne.s32.totalorder %s24, %s40
    %p42 = scmp.eq.s32.totalorder %s16, 0
    %p43 = por %p41, %p42
    %s45 = sadd.s32 %s44, 1
    %p48 = scmp.eq.s32.totalorder %s10, 1
    %p49 = scmp.ne.s32.totalorder %s44, %s46
    %p50 = scmp.eq.s32.totalorder %s10, 0
    %p51 = por %p49, %p50
    %p52 = scmp.ne.s32.totalorder %s44, %s46
    %p53 = scmp.eq.s32.totalorder %s15, 1
    %p54 = por %p52, %p53
    %p55 = scmp.ne.s32.totalorder %s46, %s47
    %p56 = scmp.eq.s32.totalorder %s15, 0
    %p57 = por %p55, %p56
    %p58 = scmp.ne.s32.totalorder %s46, %s47
    %p59 = scmp.eq.s32.totalorder %s16, 1
    %p60 = por %p58, %p59
    %p62 = scmp.ne.s32.totalorder %s47, %s61
    %p63 = scmp.eq.s32.totalorder %s16, 0
    %p64 = por %p62, %p63
    %s66 = sadd.s32 %s65, 1
    %p69 = scmp.eq.s32.totalorder %s10, 1
    %p70 = scmp.ne.s32.totalorder %s65, %s67
    %p71 = scmp.eq.s32.totalorder %s10, 0
    %p72 = por %p70, %p71
    %p73 = scmp.ne.s32.totalorder %s65, %s67
    %p74 = scmp.eq.s32.totalorder %s15, 1
    %p75 = por %p73, %p74
    %p76 = scmp.ne.s32.totalorder %s67, %s68
    %p77 = scmp.eq.s32.totalorder %s15, 0
    %p78 = por %p76, %p77
    %p79 = scmp.ne.s32.totalorder %s67, %s68
    %p80 = scmp.eq.s32.totalorder %s16, 1
    %p81 = por %p79, %p80
    %p83 = scmp.ne.s32.totalorder %s68, %s82
    %p84 = scmp.eq.s32.totalorder %s16, 0
    %p85 = por %p83, %p84
    %s87 = sadd.s32 %s86, 1
    %p90 = scmp.eq.s32.totalorder %s10, 1
    %p91 = scmp.ne.s32.totalorder %s86, %s88
    %p92 = scmp.eq.s32.totalorder %s10, 0
    %p93 = por %p91, %p92
    %p94 = scmp.ne.s32.totalorder %s86, %s88
    %p95 = scmp.eq.s32.totalorder %s15, 1
    %p96 = por %p94, %p95
    %p97 = scmp.ne.s32.totalorder %s88, %s89
    %p98 = scmp.eq.s32.totalorder %s15, 0
    %p99 = por %p97, %p98
    %p100 = scmp.ne.s32.totalorder %s88, %s89
    %p101 = scmp.eq.s32.totalorder %s16, 1
    %p102 = por %p100, %p101
    %p104 = scmp.ne.s32.totalorder %s89, %s103
    %p105 = scmp.eq.s32.totalorder %s16, 0
    %p106 = por %p104, %p105
    %s107 = ssub.s32 %s10, %s17
    %p108 = scmp.eq.s32.totalorder %s107, 0
    %s110 = sadd.s32 %s109, 1
    %s111 = scalar_select %p108, %s109, %s110
    %p114 = pneg %p108
    %p115 = scmp.eq.s32.totalorder %s10, 1
    %p116 = por %p114, %p115
    %p117 = scmp.ne.s32.totalorder %s109, %s112
    %p118 = scmp.eq.s32.totalorder %s10, 0
    %p119 = por %p117, %p118
    %p120 = scmp.ne.s32.totalorder %s109, %s112
    %p121 = scmp.eq.s32.totalorder %s15, 1
    %p122 = por %p120, %p121
    %p123 = scmp.ne.s32.totalorder %s112, %s113
    %p124 = scmp.eq.s32.totalorder %s15, 0
    %p125 = por %p123, %p124
    %p126 = scmp.ne.s32.totalorder %s112, %s113
    %p127 = scmp.eq.s32.totalorder %s16, 1
    %p128 = por %p126, %p127
    %p130 = scmp.ne.s32.totalorder %s113, %s129
    %p131 = scmp.eq.s32.totalorder %s16, 0
    %p132 = por %p130, %p131
    %p133 = scmp.le.s32.totalorder 1, %s10
    %p134 = scmp.lt.s32.totalorder %s10, 3
    %p135 = pnand %p133, %p134
    %p136 = pneg %p135
    // Predicated region
    $region9: #{basic_block_forward.6} parent=5 // pred_check
      _
    $region10: #{basic_block_forward.6} parent=5 // pred_check_branch
      %138 = sbr.rel (%p135) target = $region12
    $region11: #{basic_block_forward.6} parent=5 // pred_region
      %s139 = ssub.s32 %s10, 1
      // Predicated region
      $region13: #{basic_block_forward.6} parent=11 // pred_check
        %p140 = pneg %p57
      $region14: #{basic_block_forward.6} parent=11 // pred_check_branch
        %142 = sbr.rel (%p140) target = $region16
      $region15: #{basic_block_forward.6} parent=11 // pred_region
        _
      $region16: #{basic_block_forward.6} parent=11 // pred_fallthru
        _
      // Predicated region
      $region17: #{basic_block_forward.6} parent=11 // pred_check
        %p143 = pneg %p78
      $region18: #{basic_block_forward.6} parent=11 // pred_check_branch
        %145 = sbr.rel (%p143) target = $region20
      $region19: #{basic_block_forward.6} parent=11 // pred_region
        _
      $region20: #{basic_block_forward.6} parent=11 // pred_fallthru
        _
      // Predicated region
      $region21: #{basic_block_forward.6} parent=11 // pred_check
        %p146 = pneg %p99
      $region22: #{basic_block_forward.6} parent=11 // pred_check_branch
        %148 = sbr.rel (%p146) target = $region24
      $region23: #{basic_block_forward.6} parent=11 // pred_region
        _
      $region24: #{basic_block_forward.6} parent=11 // pred_fallthru
        _
    $region12: #{basic_block_forward.6} parent=5 // pred_fallthru
      _
    %p149 = scmp.lt.s32.totalorder %s10, 2
    // Predicated region
    $region25: #{basic_block_forward.6} parent=5 // pred_check
      %p150 = pneg %p149
    $region26: #{basic_block_forward.6} parent=5 // pred_check_branch
      %152 = sbr.rel (%p150) target = $region28
    $region27: #{basic_block_forward.6} parent=5 // pred_region
      // Predicated region
      $region29: #{basic_block_forward.6} parent=27 // pred_check
        %p153 = pneg %p30
      $region30: #{basic_block_forward.6} parent=27 // pred_check_branch
        %155 = sbr.rel (%p153) target = $region32
      $region31: #{basic_block_forward.6} parent=27 // pred_region
        %s156 = smul.u32 8, %s10
        %p157 = scmp.lt.s32.totalorder %s156, 15
        %s158 = scalar_select %p157, %s156, 15
        %s159 = smul.addr %s158, 8
        %s160 = scalar_lea.vmem %s0, %s159
        %s161 = smul.u32 8, %s10
      $region32: #{basic_block_forward.6} parent=27 // pred_fallthru
        _
    $region28: #{basic_block_forward.6} parent=5 // pred_fallthru
      _
    %p162 = scmp.le.s32.totalorder 1, %s10
    %p163 = scmp.lt.s32.totalorder %s10, 3
    %p164 = pnand %p162, %p163
    %p165 = pneg %p164
    // Predicated region
    $region33: #{basic_block_forward.6} parent=5 // pred_check
      _
    $region34: #{basic_block_forward.6} parent=5 // pred_check_branch
      %167 = sbr.rel (%p164) target = $region36
    $region35: #{basic_block_forward.6} parent=5 // pred_region
      %s168 = ssub.s32 %s10, 1
      %s169 = smul.u32 8, %s15
      %p170 = scmp.lt.s32.totalorder %s169, 15
      %s171 = scalar_select %p170, %s169, 15
      %s172 = smul.addr %s171, 8
      %s173 = scalar_lea.vmem %s0, %s172
      %p174 = pneg %p36
      %p175 = pneg %p33
      %p176 = pneg %p57
      %p177 = pneg %p54
      %p178 = pneg %p78
      %p179 = pneg %p75
      %p180 = pneg %p99
      %p181 = pneg %p96
      %p182 = pneg %p125
      %p183 = pneg %p122
      %s184 = smul.u32 8, %s15
      %p185 = scmp.lt.s32.totalorder %s184, 15
      %s186 = scalar_select %p185, %s184, 15
      %s187 = smul.addr %s186, 4
      %s188 = scalar_lea.vmem %s4, %s187
      %s189 = smul.u32 8, %s15
      %p190 = scmp.lt.s32.totalorder %s189, 15
      %s191 = scalar_select %p190, %s189, 15
      %s192 = smul.addr %s191, 8
      %s193 = scalar_lea.vmem %s0, %s192
      %s194 = smul.u32 8, %s15
      %s195 = smul.u32 8, %s15
      %p196 = scmp.lt.s32.totalorder %s195, 15
      %s197 = scalar_select %p196, %s195, 15
      %s198 = smul.addr %s197, 4
      %s199 = scalar_lea.vmem %s4, %s198
      %s200 = smul.u32 8, %s15
      %v201 = vld [vmem:[%s1] sm:$0x3]
      %v202 = vld [vmem:[%s2] sm:$0x1]
      %v203 = vld [vmem:[%s3] sm:$0x1]
      %v204 = vmul.f32 %v201, 0.0078125
      %v205 = vmul.f32 %v204, %v204
      %v207 = vrot.slane %v205, 7
      %v209 = vsub.f32 %v204, %v207
      %v210 = vmax.f32 %v209, 0.0
      %v211 = vadd.f32 %v210, 1e-05
      %v212 = vrsqrt.pop %v211
      %v215 = vunpack.c.l.s4 1966171168
      %v216 = vunpack.c.0.s8 %v215
      %v217 = vlaneseq
      %v218 = vshrl.u32 %v217, 7
      %v219 = vsub.s32 %v216, %v218
      %v220 = vrot.slane %v212, %v219
      %v221 = vcombine.high %v220, %v220
      %v223 = vunpack.c.l.s4 1966171168
      %v224 = vunpack.c.0.s8 %v223
      %v225 = vlaneseq
      %v226 = vshrl.u32 %v225, 7
      %v227 = vsub.s32 %v224, %v226
      %v228 = vrot.slane %v221, %v227
      %v230 = vmul.f32 %v202, %v228
      %v231 = vmul.f32 %v204, %v230
      %v232 = vsub.f32 %v203, %v231
      %v233 = vld [vmem:[%s193] sm:$0xff]
      %v234 = vld [vmem:[%s193 + $0x8] sm:$0xff]
      %v235 = vld [vmem:[%s193 + $0x10] sm:$0xff]
      %v236 = vld [vmem:[%s193 + $0x18] sm:$0xff]
      %v237 = vld [vmem:[%s193 + $0x20] sm:$0xff]
      %v238 = vld [vmem:[%s193 + $0x28] sm:$0xff]
      %v239 = vld [vmem:[%s193 + $0x30] sm:$0xff]
      %v240 = vld [vmem:[%s193 + $0x38] sm:$0xff]
      %v242 = vlaneseq
      %v243 = vshrl.u32 %v242, 7
      %v244 = vsub.s32 0, %v243
      %v245 = vrot.slane %v230, %v244
      %v247 = vmul.f32 %v233, %v245
      %v248 = vmul.f32 %v234, %v245
      %v249 = vmul.f32 %v235, %v245
      %v250 = vmul.f32 %v236, %v245
      %v251 = vmul.f32 %v237, %v245
      %v252 = vmul.f32 %v238, %v245
      %v253 = vmul.f32 %v239, %v245
      %v254 = vmul.f32 %v240, %v245
      %v256 = vlaneseq
      %v257 = vshrl.u32 %v256, 7
      %v258 = vsub.s32 0, %v257
      %v259 = vrot.slane %v232, %v258
      %v261 = vadd.f32 %v247, %v259
      %v262 = vadd.f32 %v248, %v259
      %v263 = vadd.f32 %v249, %v259
      %v264 = vadd.f32 %v250, %v259
      %v265 = vadd.f32 %v251, %v259
      %v266 = vadd.f32 %v252, %v259
      %v267 = vadd.f32 %v253, %v259
      %v268 = vadd.f32 %v254, %v259
      %v269 = vmax.f32 %v261, 0.0
      %v270 = vmax.f32 %v262, 0.0
      %v271 = vmax.f32 %v263, 0.0
      %v272 = vmax.f32 %v264, 0.0
      %v273 = vmax.f32 %v265, 0.0
      %v274 = vmax.f32 %v266, 0.0
      %v275 = vmax.f32 %v267, 0.0
      %v276 = vmax.f32 %v268, 0.0
      %v277 = vpack.c.bf16 %v270, %v269
      %v278 = vpack.c.bf16 %v272, %v271
      %v279 = vpack.c.bf16 %v274, %v273
      %v280 = vpack.c.bf16 %v276, %v275
      %v285 = vunpack.c.l.b16 %v277
      %v286 = vunpack.c.h.b16 %v277
      %v287 = vunpack.c.l.b16 %v278
      %v288 = vunpack.c.h.b16 %v278
      %v289 = vunpack.c.l.b16 %v279
      %v290 = vunpack.c.h.b16 %v279
      %v291 = vunpack.c.l.b16 %v280
      %v292 = vunpack.c.h.b16 %v280
      %v293 = vpack.c.b16 %v285, %v285
      %v294 = vpack.c.b16 %v286, %v286
      %v295 = vpack.c.b16 %v287, %v287
      %v296 = vpack.c.b16 %v288, %v288
      %v297 = vpack.c.b16 %v289, %v289
      %v298 = vpack.c.b16 %v290, %v290
      %v299 = vpack.c.b16 %v291, %v291
      %v300 = vpack.c.b16 %v292, %v292
      %309 = vst [vmem:[%s199] sm:$0xf] %v293
      %310 = vst [vmem:[%s199 + $0x4] sm:$0xf] %v294
      %311 = vst [vmem:[%s199 + $0x8] sm:$0xf] %v295
      %312 = vst [vmem:[%s199 + $0xc] sm:$0xf] %v296
      %313 = vst [vmem:[%s199 + $0x10] sm:$0xf] %v297
      %314 = vst [vmem:[%s199 + $0x14] sm:$0xf] %v298
      %315 = vst [vmem:[%s199 + $0x18] sm:$0xf] %v299
      %316 = vst [vmem:[%s199 + $0x1c] sm:$0xf] %v300
      %s317 = smul.u32 8, %s15
      %p318 = scmp.lt.s32.totalorder %s317, 15
      %s319 = scalar_select %p318, %s317, 15
      %s320 = smul.addr %s319, 4
      %s321 = scalar_lea.vmem %s4, %s320
      // Predicated region
      $region37: #{basic_block_forward.6} parent=35 // pred_check
        %p322 = pneg %p122
      $region38: #{basic_block_forward.6} parent=35 // pred_check_branch
        %324 = sbr.rel (%p322) target = $region40
      $region39: #{basic_block_forward.6} parent=35 // pred_region
        %s325 = smul.u32 8, %s15
      $region40: #{basic_block_forward.6} parent=35 // pred_fallthru
        _
    $region36: #{basic_block_forward.6} parent=5 // pred_fallthru
      _
    %p326 = scmp.le.s32.totalorder 2, %s10
    // Predicated region
    $region41: #{basic_block_forward.6} parent=5 // pred_check
      %p327 = pneg %p326
    $region42: #{basic_block_forward.6} parent=5 // pred_check_branch
      %329 = sbr.rel (%p327) target = $region44
    $region43: #{basic_block_forward.6} parent=5 // pred_region
      %s330 = ssub.s32 %s10, 2
      // Predicated region
      $region45: #{basic_block_forward.6} parent=43 // pred_check
        %p331 = pneg %p128
      $region46: #{basic_block_forward.6} parent=43 // pred_check_branch
        %333 = sbr.rel (%p331) target = $region48
      $region47: #{basic_block_forward.6} parent=43 // pred_region
        %s334 = smul.u32 8, %s16
        %p335 = scmp.lt.s32.totalorder %s334, 15
        %s336 = scalar_select %p335, %s334, 15
        %s337 = smul.addr %s336, 4
        %s338 = scalar_lea.vmem %s4, %s337
      $region48: #{basic_block_forward.6} parent=43 // pred_fallthru
        _
    $region44: #{basic_block_forward.6} parent=5 // pred_fallthru
      _
  $region6: #{basic_block_forward.6} parent=0 // loop_footer
    %s14 = sadd.s32 1, %s10
  $region7: #{basic_block_forward.6} parent=0 // loop_footer_branch
    %9 = sbr.rel target = $region3
  $region8: #{basic_block_forward.6} parent=0 // loop_exit
    _

// kernel: basic_block_forward.5
$region0: #{basic_block_forward.5}
  #allocation0 [shape = 'u32[]', space=smem, size = 0x4, offset = 0x4, fixed_abs, tag = 'smem constant byte address 0x4 - core index']
  #allocation1 [shape = 'u32[144,128]{1,0:T(1,128)}', space=vmem, size = 0x12000, scoped, tag = 'internal scratch']
  %s0 = inlined_call_operand.vmem [shape: bf16[128,36], index: 0, kind: input, shape index: {}]
  %s1 = inlined_call_operand.vmem [shape: bf16[36,128], index: 1, kind: input, shape index: {}]
  %s2 = inlined_call_operand.vmem [shape: f32[128,128], index: 2, kind: output, shape index: {0}]
  %s3 = inlined_call_operand.vmem [shape: f32[2,128], index: 3, kind: output, shape index: {1}]
  %4 = xla_tuple %s2, %s3
  %s5 = sld [smem:[#allocation0]]
  $region53: #{basic_block_forward.5} parent=0
    _
  %s7 = ssub.s32 1, %s5
  %s8 = scalar_select 0, %s7, %s5
  loop: start=0, step=1, limit=4
  $region2: #{basic_block_forward.5} parent=0 // loop_pre_header
    _
  $region3: #{basic_block_forward.5} parent=0 // loop_header
    %s10 = sphi 0, %s14
    %p11 = scmp.ge.s32.totalorder %s10, 4
    %s20 = sphi 0, %s22
    %s23 = sphi 0, %s20
    %s24 = sphi 0, %s23
    %s40 = sphi 0, %s24
    %s44 = sphi 0, %s44
    %s46 = sphi 0, %s44
    %s47 = sphi 0, %s46
    %s61 = sphi 0, %s47
    %s67 = sphi 0, %s69
    %s70 = sphi 0, %s67
    %s71 = sphi 0, %s70
    %s87 = sphi 0, %s71
    %s91 = sphi 0, %s91
    %s93 = sphi 0, %s91
    %s94 = sphi 0, %s93
    %s108 = sphi 0, %s94
  $region4: #{basic_block_forward.5} parent=0 // loop_header_branch
    %13 = sbr.rel (%p11) target = $region8
  $region5: #{basic_block_forward.5} parent=0 // loop_body
    %s15 = ssub.s32 %s10, 1
    %s16 = ssub.s32 %s10, 2
    %s17 = sadd.s32 %s10, 1
    %s18 = ssub.s32 %s10, %s17
    %p19 = scmp.eq.s32.totalorder %s18, 0
    %s21 = sadd.s32 %s20, 1
    %s22 = scalar_select %p19, %s20, %s21
    %p25 = pneg %p19
    %p26 = scmp.eq.s32.totalorder %s10, 1
    %p27 = por %p25, %p26
    %p28 = scmp.ne.s32.totalorder %s20, %s23
    %p29 = scmp.eq.s32.totalorder %s10, 0
    %p30 = por %p28, %p29
    %p31 = scmp.ne.s32.totalorder %s20, %s23
    %p32 = scmp.eq.s32.totalorder %s15, 1
    %p33 = por %p31, %p32
    %p34 = scmp.ne.s32.totalorder %s23, %s24
    %p35 = scmp.eq.s32.totalorder %s15, 0
    %p36 = por %p34, %p35
    %p37 = scmp.ne.s32.totalorder %s23, %s24
    %p38 = scmp.eq.s32.totalorder %s16, 1
    %p39 = por %p37, %p38
    %p41 = scmp.ne.s32.totalorder %s24, %s40
    %p42 = scmp.eq.s32.totalorder %s16, 0
    %p43 = por %p41, %p42
    %s45 = sadd.s32 %s44, 1
    %p48 = scmp.eq.s32.totalorder %s10, 1
    %p49 = scmp.ne.s32.totalorder %s44, %s46
    %p50 = scmp.eq.s32.totalorder %s10, 0
    %p51 = por %p49, %p50
    %p52 = scmp.ne.s32.totalorder %s44, %s46
    %p53 = scmp.eq.s32.totalorder %s15, 1
    %p54 = por %p52, %p53
    %p55 = scmp.ne.s32.totalorder %s46, %s47
    %p56 = scmp.eq.s32.totalorder %s15, 0
    %p57 = por %p55, %p56
    %p58 = scmp.ne.s32.totalorder %s46, %s47
    %p59 = scmp.eq.s32.totalorder %s16, 1
    %p60 = por %p58, %p59
    %p62 = scmp.ne.s32.totalorder %s47, %s61
    %p63 = scmp.eq.s32.totalorder %s16, 0
    %p64 = por %p62, %p63
    %s65 = ssub.s32 %s10, %s17
    %p66 = scmp.eq.s32.totalorder %s65, 0
    %s68 = sadd.s32 %s67, 1
    %s69 = scalar_select %p66, %s67, %s68
    %p72 = pneg %p66
    %p73 = scmp.eq.s32.totalorder %s10, 1
    %p74 = por %p72, %p73
    %p75 = scmp.ne.s32.totalorder %s67, %s70
    %p76 = scmp.eq.s32.totalorder %s10, 0
    %p77 = por %p75, %p76
    %p78 = scmp.ne.s32.totalorder %s67, %s70
    %p79 = scmp.eq.s32.totalorder %s15, 1
    %p80 = por %p78, %p79
    %p81 = scmp.ne.s32.totalorder %s70, %s71
    %p82 = scmp.eq.s32.totalorder %s15, 0
    %p83 = por %p81, %p82
    %p84 = scmp.ne.s32.totalorder %s70, %s71
    %p85 = scmp.eq.s32.totalorder %s16, 1
    %p86 = por %p84, %p85
    %p88 = scmp.ne.s32.totalorder %s71, %s87
    %p89 = scmp.eq.s32.totalorder %s16, 0
    %p90 = por %p88, %p89
    %s92 = sadd.s32 %s91, 1
    %p95 = scmp.eq.s32.totalorder %s10, 1
    %p96 = scmp.ne.s32.totalorder %s91, %s93
    %p97 = scmp.eq.s32.totalorder %s10, 0
    %p98 = por %p96, %p97
    %p99 = scmp.ne.s32.totalorder %s91, %s93
    %p100 = scmp.eq.s32.totalorder %s15, 1
    %p101 = por %p99, %p100
    %p102 = scmp.ne.s32.totalorder %s93, %s94
    %p103 = scmp.eq.s32.totalorder %s15, 0
    %p104 = por %p102, %p103
    %p105 = scmp.ne.s32.totalorder %s93, %s94
    %p106 = scmp.eq.s32.totalorder %s16, 1
    %p107 = por %p105, %p106
    %p109 = scmp.ne.s32.totalorder %s94, %s108
    %p110 = scmp.eq.s32.totalorder %s16, 0
    %p111 = por %p109, %p110
    %p112 = scmp.le.s32.totalorder 1, %s10
    %p113 = scmp.lt.s32.totalorder %s10, 3
    %p114 = pnand %p112, %p113
    %p115 = pneg %p114
    // Predicated region
    $region9: #{basic_block_forward.5} parent=5 // pred_check
      _
    $region10: #{basic_block_forward.5} parent=5 // pred_check_branch
      %117 = sbr.rel (%p114) target = $region12
    $region11: #{basic_block_forward.5} parent=5 // pred_region
      %s118 = ssub.s32 %s10, 1
      // Predicated region
      $region13: #{basic_block_forward.5} parent=11 // pred_check
        %p119 = pneg %p57
      $region14: #{basic_block_forward.5} parent=11 // pred_check_branch
        %121 = sbr.rel (%p119) target = $region16
      $region15: #{basic_block_forward.5} parent=11 // pred_region
        _
      $region16: #{basic_block_forward.5} parent=11 // pred_fallthru
        _
    $region12: #{basic_block_forward.5} parent=5 // pred_fallthru
      _
    %p122 = scmp.lt.s32.totalorder %s10, 2
    // Predicated region
    $region17: #{basic_block_forward.5} parent=5 // pred_check
      %p123 = pneg %p122
    $region18: #{basic_block_forward.5} parent=5 // pred_check_branch
      %125 = sbr.rel (%p123) target = $region20
    $region19: #{basic_block_forward.5} parent=5 // pred_region
      // Predicated region
      $region21: #{basic_block_forward.5} parent=19 // pred_check
        %p126 = pneg %p30
      $region22: #{basic_block_forward.5} parent=19 // pred_check_branch
        %128 = sbr.rel (%p126) target = $region24
      $region23: #{basic_block_forward.5} parent=19 // pred_region
        %s129 = smul.u32 8, %s10
        %p130 = scmp.lt.s32.totalorder %s129, 15
        %s131 = scalar_select %p130, %s129, 15
        %s132 = smul.addr %s131, 4
        %s133 = scalar_lea.vmem %s0, %s132
        %s134 = smul.u32 8, %s10
      $region24: #{basic_block_forward.5} parent=19 // pred_fallthru
        _
    $region20: #{basic_block_forward.5} parent=5 // pred_fallthru
      _
    %p135 = scmp.le.s32.totalorder 1, %s10
    %p136 = scmp.lt.s32.totalorder %s10, 3
    %p137 = pnand %p135, %p136
    %p138 = pneg %p137
    // Predicated region
    $region25: #{basic_block_forward.5} parent=5 // pred_check
      _
    $region26: #{basic_block_forward.5} parent=5 // pred_check_branch
      %140 = sbr.rel (%p137) target = $region28
    $region27: #{basic_block_forward.5} parent=5 // pred_region
      %s141 = ssub.s32 %s10, 1
      %s142 = smul.u32 8, %s15
      %p143 = scmp.lt.s32.totalorder %s142, 15
      %s144 = scalar_select %p143, %s142, 15
      %s145 = smul.addr %s144, 4
      %s146 = scalar_lea.vmem %s0, %s145
      %p147 = pneg %p36
      %p148 = pneg %p33
      %p149 = pneg %p57
      %p150 = pneg %p54
      %p151 = pneg %p83
      %p152 = pneg %p80
      %s153 = smul.u32 8, %s15
      %p154 = scmp.lt.s32.totalorder %s153, 15
      %s155 = scalar_select %p154, %s153, 15
      %s156 = smul.addr %s155, 8
      %s157 = scalar_lea.vmem %s2, %s156
      %p158 = pneg %p104
      %p159 = pneg %p101
      %s160 = smul.u32 8, %s15
      %p161 = scmp.lt.s32.totalorder %s160, 15
      %s162 = scalar_select %p161, %s160, 15
      %s163 = smul.addr %s162, 4
      %s164 = scalar_lea.vmem %s0, %s163
      %s165 = smul.u32 8, %s15
      %s166 = smul.u32 8, %s15
      %p167 = scmp.lt.s32.totalorder %s166, 15
      %s168 = scalar_select %p167, %s166, 15
      %s169 = smul.addr %s168, 8
      %s170 = scalar_lea.vmem %s2, %s169
      %s171 = smul.u32 8, %s15
      %p173 = scmp.eq.s32.totalorder %s15, 0
      // Predicated region
      $region29: #{basic_block_forward.5} parent=27 // pred_check
        %p174 = pneg %p173
      $region30: #{basic_block_forward.5} parent=27 // pred_check_branch
        %176 = sbr.rel (%p174) target = $region32
      $region31: #{basic_block_forward.5} parent=27 // pred_region
        %177 = vst [vmem:[%s3] sm:$0x3] 0.0
      $region32: #{basic_block_forward.5} parent=27 // pred_fallthru
        _
      %v178 = vld [vmem:[%s164] sm:$0xf]
      %v179 = vld [vmem:[%s164 + $0x4] sm:$0xf]
      %v180 = vld [vmem:[%s164 + $0x8] sm:$0xf]
      %v181 = vld [vmem:[%s164 + $0xc] sm:$0xf]
      %v182 = vld [vmem:[%s164 + $0x10] sm:$0xf]
      %v183 = vld [vmem:[%s164 + $0x14] sm:$0xf]
      %v184 = vld [vmem:[%s164 + $0x18] sm:$0xf]
      %v185 = vld [vmem:[%s164 + $0x1c] sm:$0xf]
      %v186 = vld [vmem:[%s1] sm:$0xf]
      %v187 = vld [vmem:[%s1 + $0x4] sm:$0xf]
      %v188 = vld [vmem:[%s1 + $0x8] sm:$0xf]
      %v189 = vld [vmem:[%s1 + $0xc] sm:$0xf]
      %v190 = vld [vmem:[%s1 + $0x10] sm:$0x3]
      %v199 = vunpack.c.l.b16 %v178
      %v200 = vunpack.c.l.b16 %v179
      %v201 = vunpack.c.l.b16 %v180
      %v202 = vunpack.c.l.b16 %v181
      %v203 = vunpack.c.l.b16 %v182
      %v204 = vunpack.c.l.b16 %v183
      %v205 = vunpack.c.l.b16 %v184
      %v206 = vunpack.c.l.b16 %v185
      %v207 = vpack.c.b16 %v200, %v199
      %v208 = vpack.c.b16 %v202, %v201
      %v209 = vpack.c.b16 %v204, %v203
      %v210 = vpack.c.b16 %v206, %v205
      %v216 = vunpack.c.l.b16 %v186
      %v217 = vunpack.c.l.b16 %v187
      %v218 = vunpack.c.l.b16 %v188
      %v219 = vunpack.c.l.b16 %v189
      %v220 = vunpack.c.l.b16 %v190
      %v221 = vpack.c.b16 %v217, %v216
      %v222 = vpack.c.b16 %v219, %v218
      %v223 = vpack.c.b16 %v220, %v220
      %vm226 = vcmask 293888
      %v228 = vsel %vm226, %v207, 0
      %v231 = vsel %vm226, %v208, 0
      %v234 = vsel %vm226, %v209, 0
      %v237 = vsel %vm226, %v210, 0
      %vm239 = vcmask 1041408
      %v241 = vsel %vm239, %v223, 0
      %243 = vmatprep.subr.bf16.mxu0 0
      %244 = vmatpush1.bf16.msra.mxu0 %v221
      %245 = vmatprep.subr.bf16.mxu0 0
      %246 = vmatpush1.bf16.msra.mxu0 %v222
      %247 = vmatprep.subr.bf16.mxu0 0
      %248 = vmatpush1.bf16.msra.mxu0 %v241
      %249 = vmatprep.subr.bf16.mxu0 0
      %250 = vmatpush1.bf16.msra.mxu0 0
      %251 = vmatprep.subr.bf16.mxu0 0
      %252 = vmatpush1.bf16.msra.mxu0 0
      %253 = vmatprep.subr.bf16.mxu0 0
      %254 = vmatpush1.bf16.msra.mxu0 0
      %255 = vmatprep.subr.bf16.mxu0 0
      %256 = vmatpush1.bf16.msra.mxu0 0
      %257 = vmatprep.subr.bf16.mxu0 0
      %258 = vmatpush1.bf16.msra.mxu0 0
      %259 = vmatprep.subr.bf16.mxu0 0
      %260 = vmatpush1.bf16.msra.mxu0 0
      %261 = vmatprep.subr.bf16.mxu0 0
      %262 = vmatpush1.bf16.msra.mxu0 0
      %263 = vmatprep.subr.bf16.mxu0 0
      %264 = vmatpush1.bf16.msra.mxu0 0
      %265 = vmatprep.subr.bf16.mxu0 0
      %266 = vmatpush1.bf16.msra.mxu0 0
      %267 = vmatprep.subr.bf16.mxu0 0
      %268 = vmatpush1.bf16.msra.mxu0 0
      %269 = vmatprep.subr.bf16.mxu0 0
      %270 = vmatpush1.bf16.msra.mxu0 0
      %271 = vmatprep.subr.bf16.mxu0 0
      %272 = vmatpush1.bf16.msra.mxu0 0
      %273 = vmatprep.subr.bf16.mxu0 0
      %274 = vmatpush1.bf16.msra.mxu0 0
      %275 = vmatprep.mubr.bf16.mxu0 0
      %276 = vmatmul.mubr.bf16.gmra.mrb[0].mxu0 %v228
      %v277 = vpop.f32.mrb[0].mxu0
      %v278 = vadd.f32 0.0, %v277
      %v279 = vpop.f32.mrb[0].mxu0
      %v280 = vpop.f32.mrb[0].mxu0
      %v281 = vadd.f32 0.0, %v280
      %v282 = vpop.f32.mrb[0].mxu0
      %283 = vmatprep.mubr.bf16.mxu0 0
      %284 = vmatmul.mubr.bf16.gmra.mrb[0].mxu0 %v231
      %v285 = vpop.f32.mrb[0].mxu0
      %v286 = vadd.f32 0.0, %v285
      %v287 = vpop.f32.mrb[0].mxu0
      %v288 = vpop.f32.mrb[0].mxu0
      %v289 = vadd.f32 0.0, %v288
      %v290 = vpop.f32.mrb[0].mxu0
      %291 = vmatprep.mubr.bf16.mxu0 0
      %292 = vmatmul.mubr.bf16.gmra.mrb[0].mxu0 %v234
      %v293 = vpop.f32.mrb[0].mxu0
      %v294 = vadd.f32 0.0, %v293
      %v295 = vpop.f32.mrb[0].mxu0
      %v296 = vpop.f32.mrb[0].mxu0
      %v297 = vadd.f32 0.0, %v296
      %v298 = vpop.f32.mrb[0].mxu0
      %299 = vmatprep.mubr.bf16.mxu0 0
      %300 = vmatmul.mubr.bf16.gmra.mrb[0].mxu0 %v237
      %v301 = vpop.f32.mrb[0].mxu0
      %v302 = vadd.f32 0.0, %v301
      %v303 = vpop.f32.mrb[0].mxu0
      %v304 = vpop.f32.mrb[0].mxu0
      %v305 = vadd.f32 0.0, %v304
      %v306 = vpop.f32.mrb[0].mxu0
      %307 = vdwg.mxu0
      %308 = vst [vmem:[%s170] sm:$0xff] %v278
      %309 = vst [vmem:[%s170 + $0x8] sm:$0xff] %v281
      %310 = vst [vmem:[%s170 + $0x10] sm:$0xff] %v286
      %311 = vst [vmem:[%s170 + $0x18] sm:$0xff] %v289
      %312 = vst [vmem:[%s170 + $0x20] sm:$0xff] %v294
      %313 = vst [vmem:[%s170 + $0x28] sm:$0xff] %v297
      %314 = vst [vmem:[%s170 + $0x30] sm:$0xff] %v302
      %315 = vst [vmem:[%s170 + $0x38] sm:$0xff] %v305
      %v316 = vadd.f32 %v278, %v281
      %v317 = vadd.f32 %v316, %v286
      %v318 = vadd.f32 %v317, %v289
      %v319 = vadd.f32 %v318, %v294
      %v320 = vadd.f32 %v319, %v297
      %v321 = vadd.f32 %v320, %v302
      %v322 = vadd.f32 %v321, %v305
      %v323 = vrot.slane %v322, 4
      %v324 = vadd.f32 %v322, %v323
      %v325 = vrot.slane %v324, 2
      %v326 = vadd.f32 %v324, %v325
      %v327 = vrot.slane %v326, 1
      %v328 = vadd.f32 %v326, %v327
      %v329 = vmul.f32 %v278, %v278
      %v330 = vmul.f32 %v281, %v281
      %v331 = vmul.f32 %v286, %v286
      %v332 = vmul.f32 %v289, %v289
      %v333 = vmul.f32 %v294, %v294
      %v334 = vmul.f32 %v297, %v297
      %v335 = vmul.f32 %v302, %v302
      %v336 = vmul.f32 %v305, %v305
      %v337 = vadd.f32 %v329, %v330
      %v338 = vadd.f32 %v337, %v331
      %v339 = vadd.f32 %v338, %v332
      %v340 = vadd.f32 %v339, %v333
      %v341 = vadd.f32 %v340, %v334
      %v342 = vadd.f32 %v341, %v335
      %v343 = vadd.f32 %v342, %v336
      %v344 = vrot.slane %v343, 4
      %v345 = vadd.f32 %v343, %v344
      %v346 = vrot.slane %v345, 2
      %v347 = vadd.f32 %v345, %v346
      %v348 = vrot.slane %v347, 1
      %v349 = vadd.f32 %v347, %v348
      %v350 = vld [vmem:[%s3] sm:$0x3]
      %vm351 = vcmask 1040384
      %v352 = vsel %vm351, %v328, %v349
      %v353 = vadd.f32 %v350, %v352
      %354 = vst [vmem:[%s3] sm:$0x3] %v353
      %s355 = smul.u32 8, %s15
      %p356 = scmp.lt.s32.totalorder %s355, 15
      %s357 = scalar_select %p356, %s355, 15
      %s358 = smul.addr %s357, 8
      %s359 = scalar_lea.vmem %s2, %s358
      // Predicated region
      $region33: #{basic_block_forward.5} parent=27 // pred_check
        %p360 = pneg %p80
      $region34: #{basic_block_forward.5} parent=27 // pred_check_branch
        %362 = sbr.rel (%p360) target = $region36
      $region35: #{basic_block_forward.5} parent=27 // pred_region
        %s363 = smul.u32 8, %s15
      $region36: #{basic_block_forward.5} parent=27 // pred_fallthru
        _
      // Predicated region
      $region37: #{basic_block_forward.5} parent=27 // pred_check
        %p364 = pneg %p101
      $region38: #{basic_block_forward.5} parent=27 // pred_check_branch
        %366 = sbr.rel (%p364) target = $region40
      $region39: #{basic_block_forward.5} parent=27 // pred_region
        _
      $region40: #{basic_block_forward.5} parent=27 // pred_fallthru
        _
      // Predicated region
      $region41: #{basic_block_forward.5} parent=27 // pred_check
        %p367 = pneg %p101
      $region42: #{basic_block_forward.5} parent=27 // pred_check_branch
        %369 = sbr.rel (%p367) target = $region44
      $region43: #{basic_block_forward.5} parent=27 // pred_region
        _
      $region44: #{basic_block_forward.5} parent=27 // pred_fallthru
        _
    $region28: #{basic_block_forward.5} parent=5 // pred_fallthru
      _
    %p370 = scmp.le.s32.totalorder 2, %s10
    // Predicated region
    $region45: #{basic_block_forward.5} parent=5 // pred_check
      %p371 = pneg %p370
    $region46: #{basic_block_forward.5} parent=5 // pred_check_branch
      %373 = sbr.rel (%p371) target = $region48
    $region47: #{basic_block_forward.5} parent=5 // pred_region
      %s374 = ssub.s32 %s10, 2
      // Predicated region
      $region49: #{basic_block_forward.5} parent=47 // pred_check
        %p375 = pneg %p86
      $region50: #{basic_block_forward.5} parent=47 // pred_check_branch
        %377 = sbr.rel (%p375) target = $region52
      $region51: #{basic_block_forward.5} parent=47 // pred_region
        %s378 = smul.u32 8, %s16
        %p379 = scmp.lt.s32.totalorder %s378, 15
        %s380 = scalar_select %p379, %s378, 15
        %s381 = smul.addr %s380, 8
        %s382 = scalar_lea.vmem %s2, %s381
      $region52: #{basic_block_forward.5} parent=47 // pred_fallthru
        _
    $region48: #{basic_block_forward.5} parent=5 // pred_fallthru
      _
  $region6: #{basic_block_forward.5} parent=0 // loop_footer
    %s14 = sadd.s32 1, %s10
  $region7: #{basic_block_forward.5} parent=0 // loop_footer_branch
    %9 = sbr.rel target = $region3
  $region8: #{basic_block_forward.5} parent=0 // loop_exit
    _

// kernel: basic_block_forward.7
$region0: #{basic_block_forward.7}
  #allocation0 [shape = 'u32[]', space=smem, size = 0x4, offset = 0x4, fixed_abs, tag = 'smem constant byte address 0x4 - core index']
  #allocation1 [shape = 'u32[144,128]{1,0:T(1,128)}', space=vmem, size = 0x12000, scoped, tag = 'internal scratch']
  %s0 = inlined_call_operand.vmem [shape: bf16[128,4], index: 0, kind: input, shape index: {}]
  %s1 = inlined_call_operand.vmem [shape: bf16[4,128], index: 1, kind: input, shape index: {}]
  %s2 = inlined_call_operand.vmem [shape: f32[128,128], index: 2, kind: output, shape index: {0}]
  %s3 = inlined_call_operand.vmem [shape: f32[2,128], index: 3, kind: output, shape index: {1}]
  %4 = xla_tuple %s2, %s3
  %s5 = sld [smem:[#allocation0]]
  $region53: #{basic_block_forward.7} parent=0
    _
  %s7 = ssub.s32 1, %s5
  %s8 = scalar_select 0, %s7, %s5
  loop: start=0, step=1, limit=4
  $region2: #{basic_block_forward.7} parent=0 // loop_pre_header
    _
  $region3: #{basic_block_forward.7} parent=0 // loop_header
    %s10 = sphi 0, %s14
    %p11 = scmp.ge.s32.totalorder %s10, 4
    %s20 = sphi 0, %s22
    %s23 = sphi 0, %s20
    %s24 = sphi 0, %s23
    %s40 = sphi 0, %s24
    %s44 = sphi 0, %s44
    %s46 = sphi 0, %s44
    %s47 = sphi 0, %s46
    %s61 = sphi 0, %s47
    %s67 = sphi 0, %s69
    %s70 = sphi 0, %s67
    %s71 = sphi 0, %s70
    %s87 = sphi 0, %s71
    %s91 = sphi 0, %s91
    %s93 = sphi 0, %s91
    %s94 = sphi 0, %s93
    %s108 = sphi 0, %s94
  $region4: #{basic_block_forward.7} parent=0 // loop_header_branch
    %13 = sbr.rel (%p11) target = $region8
  $region5: #{basic_block_forward.7} parent=0 // loop_body
    %s15 = ssub.s32 %s10, 1
    %s16 = ssub.s32 %s10, 2
    %s17 = sadd.s32 %s10, 1
    %s18 = ssub.s32 %s10, %s17
    %p19 = scmp.eq.s32.totalorder %s18, 0
    %s21 = sadd.s32 %s20, 1
    %s22 = scalar_select %p19, %s20, %s21
    %p25 = pneg %p19
    %p26 = scmp.eq.s32.totalorder %s10, 1
    %p27 = por %p25, %p26
    %p28 = scmp.ne.s32.totalorder %s20, %s23
    %p29 = scmp.eq.s32.totalorder %s10, 0
    %p30 = por %p28, %p29
    %p31 = scmp.ne.s32.totalorder %s20, %s23
    %p32 = scmp.eq.s32.totalorder %s15, 1
    %p33 = por %p31, %p32
    %p34 = scmp.ne.s32.totalorder %s23, %s24
    %p35 = scmp.eq.s32.totalorder %s15, 0
    %p36 = por %p34, %p35
    %p37 = scmp.ne.s32.totalorder %s23, %s24
    %p38 = scmp.eq.s32.totalorder %s16, 1
    %p39 = por %p37, %p38
    %p41 = scmp.ne.s32.totalorder %s24, %s40
    %p42 = scmp.eq.s32.totalorder %s16, 0
    %p43 = por %p41, %p42
    %s45 = sadd.s32 %s44, 1
    %p48 = scmp.eq.s32.totalorder %s10, 1
    %p49 = scmp.ne.s32.totalorder %s44, %s46
    %p50 = scmp.eq.s32.totalorder %s10, 0
    %p51 = por %p49, %p50
    %p52 = scmp.ne.s32.totalorder %s44, %s46
    %p53 = scmp.eq.s32.totalorder %s15, 1
    %p54 = por %p52, %p53
    %p55 = scmp.ne.s32.totalorder %s46, %s47
    %p56 = scmp.eq.s32.totalorder %s15, 0
    %p57 = por %p55, %p56
    %p58 = scmp.ne.s32.totalorder %s46, %s47
    %p59 = scmp.eq.s32.totalorder %s16, 1
    %p60 = por %p58, %p59
    %p62 = scmp.ne.s32.totalorder %s47, %s61
    %p63 = scmp.eq.s32.totalorder %s16, 0
    %p64 = por %p62, %p63
    %s65 = ssub.s32 %s10, %s17
    %p66 = scmp.eq.s32.totalorder %s65, 0
    %s68 = sadd.s32 %s67, 1
    %s69 = scalar_select %p66, %s67, %s68
    %p72 = pneg %p66
    %p73 = scmp.eq.s32.totalorder %s10, 1
    %p74 = por %p72, %p73
    %p75 = scmp.ne.s32.totalorder %s67, %s70
    %p76 = scmp.eq.s32.totalorder %s10, 0
    %p77 = por %p75, %p76
    %p78 = scmp.ne.s32.totalorder %s67, %s70
    %p79 = scmp.eq.s32.totalorder %s15, 1
    %p80 = por %p78, %p79
    %p81 = scmp.ne.s32.totalorder %s70, %s71
    %p82 = scmp.eq.s32.totalorder %s15, 0
    %p83 = por %p81, %p82
    %p84 = scmp.ne.s32.totalorder %s70, %s71
    %p85 = scmp.eq.s32.totalorder %s16, 1
    %p86 = por %p84, %p85
    %p88 = scmp.ne.s32.totalorder %s71, %s87
    %p89 = scmp.eq.s32.totalorder %s16, 0
    %p90 = por %p88, %p89
    %s92 = sadd.s32 %s91, 1
    %p95 = scmp.eq.s32.totalorder %s10, 1
    %p96 = scmp.ne.s32.totalorder %s91, %s93
    %p97 = scmp.eq.s32.totalorder %s10, 0
    %p98 = por %p96, %p97
    %p99 = scmp.ne.s32.totalorder %s91, %s93
    %p100 = scmp.eq.s32.totalorder %s15, 1
    %p101 = por %p99, %p100
    %p102 = scmp.ne.s32.totalorder %s93, %s94
    %p103 = scmp.eq.s32.totalorder %s15, 0
    %p104 = por %p102, %p103
    %p105 = scmp.ne.s32.totalorder %s93, %s94
    %p106 = scmp.eq.s32.totalorder %s16, 1
    %p107 = por %p105, %p106
    %p109 = scmp.ne.s32.totalorder %s94, %s108
    %p110 = scmp.eq.s32.totalorder %s16, 0
    %p111 = por %p109, %p110
    %p112 = scmp.le.s32.totalorder 1, %s10
    %p113 = scmp.lt.s32.totalorder %s10, 3
    %p114 = pnand %p112, %p113
    %p115 = pneg %p114
    // Predicated region
    $region9: #{basic_block_forward.7} parent=5 // pred_check
      _
    $region10: #{basic_block_forward.7} parent=5 // pred_check_branch
      %117 = sbr.rel (%p114) target = $region12
    $region11: #{basic_block_forward.7} parent=5 // pred_region
      %s118 = ssub.s32 %s10, 1
      // Predicated region
      $region13: #{basic_block_forward.7} parent=11 // pred_check
        %p119 = pneg %p57
      $region14: #{basic_block_forward.7} parent=11 // pred_check_branch
        %121 = sbr.rel (%p119) target = $region16
      $region15: #{basic_block_forward.7} parent=11 // pred_region
        _
      $region16: #{basic_block_forward.7} parent=11 // pred_fallthru
        _
    $region12: #{basic_block_forward.7} parent=5 // pred_fallthru
      _
    %p122 = scmp.lt.s32.totalorder %s10, 2
    // Predicated region
    $region17: #{basic_block_forward.7} parent=5 // pred_check
      %p123 = pneg %p122
    $region18: #{basic_block_forward.7} parent=5 // pred_check_branch
      %125 = sbr.rel (%p123) target = $region20
    $region19: #{basic_block_forward.7} parent=5 // pred_region
      // Predicated region
      $region21: #{basic_block_forward.7} parent=19 // pred_check
        %p126 = pneg %p30
      $region22: #{basic_block_forward.7} parent=19 // pred_check_branch
        %128 = sbr.rel (%p126) target = $region24
      $region23: #{basic_block_forward.7} parent=19 // pred_region
        %s129 = smul.u32 8, %s10
        %p130 = scmp.lt.s32.totalorder %s129, 15
        %s131 = scalar_select %p130, %s129, 15
        %s132 = smul.addr %s131, 4
        %s133 = scalar_lea.vmem %s0, %s132
        %s134 = smul.u32 8, %s10
      $region24: #{basic_block_forward.7} parent=19 // pred_fallthru
        _
    $region20: #{basic_block_forward.7} parent=5 // pred_fallthru
      _
    %p135 = scmp.le.s32.totalorder 1, %s10
    %p136 = scmp.lt.s32.totalorder %s10, 3
    %p137 = pnand %p135, %p136
    %p138 = pneg %p137
    // Predicated region
    $region25: #{basic_block_forward.7} parent=5 // pred_check
      _
    $region26: #{basic_block_forward.7} parent=5 // pred_check_branch
      %140 = sbr.rel (%p137) target = $region28
    $region27: #{basic_block_forward.7} parent=5 // pred_region
      %s141 = ssub.s32 %s10, 1
      %s142 = smul.u32 8, %s15
      %p143 = scmp.lt.s32.totalorder %s142, 15
      %s144 = scalar_select %p143, %s142, 15
      %s145 = smul.addr %s144, 4
      %s146 = scalar_lea.vmem %s0, %s145
      %p147 = pneg %p36
      %p148 = pneg %p33
      %p149 = pneg %p57
      %p150 = pneg %p54
      %p151 = pneg %p83
      %p152 = pneg %p80
      %s153 = smul.u32 8, %s15
      %p154 = scmp.lt.s32.totalorder %s153, 15
      %s155 = scalar_select %p154, %s153, 15
      %s156 = smul.addr %s155, 8
      %s157 = scalar_lea.vmem %s2, %s156
      %p158 = pneg %p104
      %p159 = pneg %p101
      %s160 = smul.u32 8, %s15
      %p161 = scmp.lt.s32.totalorder %s160, 15
      %s162 = scalar_select %p161, %s160, 15
      %s163 = smul.addr %s162, 4
      %s164 = scalar_lea.vmem %s0, %s163
      %s165 = smul.u32 8, %s15
      %s166 = smul.u32 8, %s15
      %p167 = scmp.lt.s32.totalorder %s166, 15
      %s168 = scalar_select %p167, %s166, 15
      %s169 = smul.addr %s168, 8
      %s170 = scalar_lea.vmem %s2, %s169
      %s171 = smul.u32 8, %s15
      %p173 = scmp.eq.s32.totalorder %s15, 0
      // Predicated region
      $region29: #{basic_block_forward.7} parent=27 // pred_check
        %p174 = pneg %p173
      $region30: #{basic_block_forward.7} parent=27 // pred_check_branch
        %176 = sbr.rel (%p174) target = $region32
      $region31: #{basic_block_forward.7} parent=27 // pred_region
        %177 = vst [vmem:[%s3] sm:$0x3] 0.0
      $region32: #{basic_block_forward.7} parent=27 // pred_fallthru
        _
      %v178 = vld [vmem:[%s164] sm:$0xf]
      %v179 = vld [vmem:[%s164 + $0x4] sm:$0xf]
      %v180 = vld [vmem:[%s164 + $0x8] sm:$0xf]
      %v181 = vld [vmem:[%s164 + $0xc] sm:$0xf]
      %v182 = vld [vmem:[%s164 + $0x10] sm:$0xf]
      %v183 = vld [vmem:[%s164 + $0x14] sm:$0xf]
      %v184 = vld [vmem:[%s164 + $0x18] sm:$0xf]
      %v185 = vld [vmem:[%s164 + $0x1c] sm:$0xf]
      %v186 = vld [vmem:[%s1] sm:$0x3]
      %v195 = vunpack.c.l.b16 %v178
      %v196 = vunpack.c.l.b16 %v179
      %v197 = vunpack.c.l.b16 %v180
      %v198 = vunpack.c.l.b16 %v181
      %v199 = vunpack.c.l.b16 %v182
      %v200 = vunpack.c.l.b16 %v183
      %v201 = vunpack.c.l.b16 %v184
      %v202 = vunpack.c.l.b16 %v185
      %v203 = vpack.c.b16 %v196, %v195
      %v204 = vpack.c.b16 %v198, %v197
      %v205 = vpack.c.b16 %v200, %v199
      %v206 = vpack.c.b16 %v202, %v201
      %vm207 = vcmask 31744
      %v209 = vsel %vm207, %v203, 0
      %v212 = vsel %vm207, %v204, 0
      %v215 = vsel %vm207, %v205, 0
      %v218 = vsel %vm207, %v206, 0
      %vm220 = vcmask 1041408
      %v222 = vsel %vm220, %v186, 0
      %224 = vmatprep.subr.bf16.mxu0 0
      %225 = vmatpush1.bf16.msra.mxu0 %v222
      %226 = vmatprep.subr.bf16.mxu0 0
      %227 = vmatpush1.bf16.msra.mxu0 0
      %228 = vmatprep.subr.bf16.mxu0 0
      %229 = vmatpush1.bf16.msra.mxu0 0
      %230 = vmatprep.subr.bf16.mxu0 0
      %231 = vmatpush1.bf16.msra.mxu0 0
      %232 = vmatprep.subr.bf16.mxu0 0
      %233 = vmatpush1.bf16.msra.mxu0 0
      %234 = vmatprep.subr.bf16.mxu0 0
      %235 = vmatpush1.bf16.msra.mxu0 0
      %236 = vmatprep.subr.bf16.mxu0 0
      %237 = vmatpush1.bf16.msra.mxu0 0
      %238 = vmatprep.subr.bf16.mxu0 0
      %239 = vmatpush1.bf16.msra.mxu0 0
      %240 = vmatprep.subr.bf16.mxu0 0
      %241 = vmatpush1.bf16.msra.mxu0 0
      %242 = vmatprep.subr.bf16.mxu0 0
      %243 = vmatpush1.bf16.msra.mxu0 0
      %244 = vmatprep.subr.bf16.mxu0 0
      %245 = vmatpush1.bf16.msra.mxu0 0
      %246 = vmatprep.subr.bf16.mxu0 0
      %247 = vmatpush1.bf16.msra.mxu0 0
      %248 = vmatprep.subr.bf16.mxu0 0
      %249 = vmatpush1.bf16.msra.mxu0 0
      %250 = vmatprep.subr.bf16.mxu0 0
      %251 = vmatpush1.bf16.msra.mxu0 0
      %252 = vmatprep.subr.bf16.mxu0 0
      %253 = vmatpush1.bf16.msra.mxu0 0
      %254 = vmatprep.subr.bf16.mxu0 0
      %255 = vmatpush1.bf16.msra.mxu0 0
      %256 = vmatprep.mubr.bf16.mxu0 0
      %257 = vmatmul.mubr.bf16.gmra.mrb[0].mxu0 %v209
      %v258 = vpop.f32.mrb[0].mxu0
      %v259 = vadd.f32 0.0, %v258
      %v260 = vpop.f32.mrb[0].mxu0
      %v261 = vpop.f32.mrb[0].mxu0
      %v262 = vadd.f32 0.0, %v261
      %v263 = vpop.f32.mrb[0].mxu0
      %264 = vmatprep.mubr.bf16.mxu0 0
      %265 = vmatmul.mubr.bf16.gmra.mrb[0].mxu0 %v212
      %v266 = vpop.f32.mrb[0].mxu0
      %v267 = vadd.f32 0.0, %v266
      %v268 = vpop.f32.mrb[0].mxu0
      %v269 = vpop.f32.mrb[0].mxu0
      %v270 = vadd.f32 0.0, %v269
      %v271 = vpop.f32.mrb[0].mxu0
      %272 = vmatprep.mubr.bf16.mxu0 0
      %273 = vmatmul.mubr.bf16.gmra.mrb[0].mxu0 %v215
      %v274 = vpop.f32.mrb[0].mxu0
      %v275 = vadd.f32 0.0, %v274
      %v276 = vpop.f32.mrb[0].mxu0
      %v277 = vpop.f32.mrb[0].mxu0
      %v278 = vadd.f32 0.0, %v277
      %v279 = vpop.f32.mrb[0].mxu0
      %280 = vmatprep.mubr.bf16.mxu0 0
      %281 = vmatmul.mubr.bf16.gmra.mrb[0].mxu0 %v218
      %v282 = vpop.f32.mrb[0].mxu0
      %v283 = vadd.f32 0.0, %v282
      %v284 = vpop.f32.mrb[0].mxu0
      %v285 = vpop.f32.mrb[0].mxu0
      %v286 = vadd.f32 0.0, %v285
      %v287 = vpop.f32.mrb[0].mxu0
      %288 = vdwg.mxu0
      %289 = vst [vmem:[%s170] sm:$0xff] %v259
      %290 = vst [vmem:[%s170 + $0x8] sm:$0xff] %v262
      %291 = vst [vmem:[%s170 + $0x10] sm:$0xff] %v267
      %292 = vst [vmem:[%s170 + $0x18] sm:$0xff] %v270
      %293 = vst [vmem:[%s170 + $0x20] sm:$0xff] %v275
      %294 = vst [vmem:[%s170 + $0x28] sm:$0xff] %v278
      %295 = vst [vmem:[%s170 + $0x30] sm:$0xff] %v283
      %296 = vst [vmem:[%s170 + $0x38] sm:$0xff] %v286
      %v297 = vadd.f32 %v259, %v262
      %v298 = vadd.f32 %v297, %v267
      %v299 = vadd.f32 %v298, %v270
      %v300 = vadd.f32 %v299, %v275
      %v301 = vadd.f32 %v300, %v278
      %v302 = vadd.f32 %v301, %v283
      %v303 = vadd.f32 %v302, %v286
      %v304 = vrot.slane %v303, 4
      %v305 = vadd.f32 %v303, %v304
      %v306 = vrot.slane %v305, 2
      %v307 = vadd.f32 %v305, %v306
      %v308 = vrot.slane %v307, 1
      %v309 = vadd.f32 %v307, %v308
      %v310 = vmul.f32 %v259, %v259
      %v311 = vmul.f32 %v262, %v262
      %v312 = vmul.f32 %v267, %v267
      %v313 = vmul.f32 %v270, %v270
      %v314 = vmul.f32 %v275, %v275
      %v315 = vmul.f32 %v278, %v278
      %v316 = vmul.f32 %v283, %v283
      %v317 = vmul.f32 %v286, %v286
      %v318 = vadd.f32 %v310, %v311
      %v319 = vadd.f32 %v318, %v312
      %v320 = vadd.f32 %v319, %v313
      %v321 = vadd.f32 %v320, %v314
      %v322 = vadd.f32 %v321, %v315
      %v323 = vadd.f32 %v322, %v316
      %v324 = vadd.f32 %v323, %v317
      %v325 = vrot.slane %v324, 4
      %v326 = vadd.f32 %v324, %v325
      %v327 = vrot.slane %v326, 2
      %v328 = vadd.f32 %v326, %v327
      %v329 = vrot.slane %v328, 1
      %v330 = vadd.f32 %v328, %v329
      %v331 = vld [vmem:[%s3] sm:$0x3]
      %vm332 = vcmask 1040384
      %v333 = vsel %vm332, %v309, %v330
      %v334 = vadd.f32 %v331, %v333
      %335 = vst [vmem:[%s3] sm:$0x3] %v334
      %s336 = smul.u32 8, %s15
      %p337 = scmp.lt.s32.totalorder %s336, 15
      %s338 = scalar_select %p337, %s336, 15
      %s339 = smul.addr %s338, 8
      %s340 = scalar_lea.vmem %s2, %s339
      // Predicated region
      $region33: #{basic_block_forward.7} parent=27 // pred_check
        %p341 = pneg %p80
      $region34: #{basic_block_forward.7} parent=27 // pred_check_branch
        %343 = sbr.rel (%p341) target = $region36
      $region35: #{basic_block_forward.7} parent=27 // pred_region
        %s344 = smul.u32 8, %s15
      $region36: #{basic_block_forward.7} parent=27 // pred_fallthru
        _
      // Predicated region
      $region37: #{basic_block_forward.7} parent=27 // pred_check
        %p345 = pneg %p101
      $region38: #{basic_block_forward.7} parent=27 // pred_check_branch
        %347 = sbr.rel (%p345) target = $region40
      $region39: #{basic_block_forward.7} parent=27 // pred_region
        _
      $region40: #{basic_block_forward.7} parent=27 // pred_fallthru
        _
      // Predicated region
      $region41: #{basic_block_forward.7} parent=27 // pred_check
        %p348 = pneg %p101
      $region42: #{basic_block_forward.7} parent=27 // pred_check_branch
        %350 = sbr.rel (%p348) target = $region44
      $region43: #{basic_block_forward.7} parent=27 // pred_region
        _
      $region44: #{basic_block_forward.7} parent=27 // pred_fallthru
        _
    $region28: #{basic_block_forward.7} parent=5 // pred_fallthru
      _
    %p351 = scmp.le.s32.totalorder 2, %s10
    // Predicated region
    $region45: #{basic_block_forward.7} parent=5 // pred_check
      %p352 = pneg %p351
    $region46: #{basic_block_forward.7} parent=5 // pred_check_branch
      %354 = sbr.rel (%p352) target = $region48
    $region47: #{basic_block_forward.7} parent=5 // pred_region
      %s355 = ssub.s32 %s10, 2
      // Predicated region
      $region49: #{basic_block_forward.7} parent=47 // pred_check
        %p356 = pneg %p86
      $region50: #{basic_block_forward.7} parent=47 // pred_check_branch
        %358 = sbr.rel (%p356) target = $region52
      $region51: #{basic_block_forward.7} parent=47 // pred_region
        %s359 = smul.u32 8, %s16
        %p360 = scmp.lt.s32.totalorder %s359, 15
        %s361 = scalar_select %p360, %s359, 15
        %s362 = smul.addr %s361, 8
        %s363 = scalar_lea.vmem %s2, %s362
      $region52: #{basic_block_forward.7} parent=47 // pred_fallthru
        _
    $region48: #{basic_block_forward.7} parent=5 // pred_fallthru
      _
  $region6: #{basic_block_forward.7} parent=0 // loop_footer
    %s14 = sadd.s32 1, %s10
  $region7: #{basic_block_forward.7} parent=0 // loop_footer_branch
    %9 = sbr.rel target = $region3
  $region8: #{basic_block_forward.7} parent=0 // loop_exit
    _

// kernel: basic_block_forward.9
$region0: #{basic_block_forward.9}
  #allocation0 [shape = 'u32[]', space=smem, size = 0x4, offset = 0x4, fixed_abs, tag = 'smem constant byte address 0x4 - core index']
  #allocation1 [shape = 'u32[144,128]{1,0:T(1,128)}', space=vmem, size = 0x12000, scoped, tag = 'internal scratch']
  %s0 = inlined_call_operand.vmem [shape: f32[128,128], index: 0, kind: input, shape index: {}]
  %s1 = inlined_call_operand.vmem [shape: f32[2,128], index: 1, kind: input, shape index: {}]
  %s2 = inlined_call_operand.vmem [shape: f32[1,128], index: 2, kind: input, shape index: {}]
  %s3 = inlined_call_operand.vmem [shape: f32[1,128], index: 3, kind: input, shape index: {}]
  %s4 = inlined_call_operand.vmem [shape: f32[128,128], index: 4, kind: input, shape index: {}]
  %s5 = inlined_call_operand.vmem [shape: f32[2,128], index: 5, kind: input, shape index: {}]
  %s6 = inlined_call_operand.vmem [shape: f32[1,128], index: 6, kind: input, shape index: {}]
  %s7 = inlined_call_operand.vmem [shape: f32[1,128], index: 7, kind: input, shape index: {}]
  %s8 = inlined_call_operand.vmem [shape: f32[128,128], index: 8, kind: output, shape index: {}]
  %s9 = sld [smem:[#allocation0]]
  $region65: #{basic_block_forward.9} parent=0
    _
  %s11 = ssub.s32 1, %s9
  %s12 = scalar_select 0, %s11, %s9
  loop: start=0, step=1, limit=4
  $region2: #{basic_block_forward.9} parent=0 // loop_pre_header
    _
  $region3: #{basic_block_forward.9} parent=0 // loop_header
    %s14 = sphi 0, %s18
    %p15 = scmp.ge.s32.totalorder %s14, 4
    %s24 = sphi 0, %s26
    %s27 = sphi 0, %s24
    %s28 = sphi 0, %s27
    %s44 = sphi 0, %s28
    %s48 = sphi 0, %s48
    %s50 = sphi 0, %s48
    %s51 = sphi 0, %s50
    %s65 = sphi 0, %s51
    %s69 = sphi 0, %s69
    %s71 = sphi 0, %s69
    %s72 = sphi 0, %s71
    %s86 = sphi 0, %s72
    %s90 = sphi 0, %s90
    %s92 = sphi 0, %s90
    %s93 = sphi 0, %s92
    %s107 = sphi 0, %s93
    %s113 = sphi 0, %s115
    %s116 = sphi 0, %s113
    %s117 = sphi 0, %s116
    %s133 = sphi 0, %s117
    %s137 = sphi 0, %s137
    %s139 = sphi 0, %s137
    %s140 = sphi 0, %s139
    %s154 = sphi 0, %s140
    %s158 = sphi 0, %s158
    %s160 = sphi 0, %s158
    %s161 = sphi 0, %s160
    %s175 = sphi 0, %s161
    %s179 = sphi 0, %s179
    %s181 = sphi 0, %s179
    %s182 = sphi 0, %s181
    %s196 = sphi 0, %s182
    %s202 = sphi 0, %s204
    %s205 = sphi 0, %s202
    %s206 = sphi 0, %s205
    %s222 = sphi 0, %s206
  $region4: #{basic_block_forward.9} parent=0 // loop_header_branch
    %17 = sbr.rel (%p15) target = $region8
  $region5: #{basic_block_forward.9} parent=0 // loop_body
    %s19 = ssub.s32 %s14, 1
    %s20 = ssub.s32 %s14, 2
    %s21 = sadd.s32 %s14, 1
    %s22 = ssub.s32 %s14, %s21
    %p23 = scmp.eq.s32.totalorder %s22, 0
    %s25 = sadd.s32 %s24, 1
    %s26 = scalar_select %p23, %s24, %s25
    %p29 = pneg %p23
    %p30 = scmp.eq.s32.totalorder %s14, 1
    %p31 = por %p29, %p30
    %p32 = scmp.ne.s32.totalorder %s24, %s27
    %p33 = scmp.eq.s32.totalorder %s14, 0
    %p34 = por %p32, %p33
    %p35 = scmp.ne.s32.totalorder %s24, %s27
    %p36 = scmp.eq.s32.totalorder %s19, 1
    %p37 = por %p35, %p36
    %p38 = scmp.ne.s32.totalorder %s27, %s28
    %p39 = scmp.eq.s32.totalorder %s19, 0
    %p40 = por %p38, %p39
    %p41 = scmp.ne.s32.totalorder %s27, %s28
    %p42 = scmp.eq.s32.totalorder %s20, 1
    %p43 = por %p41, %p42
    %p45 = scmp.ne.s32.totalorder %s28, %s44
    %p46 = scmp.eq.s32.totalorder %s20, 0
    %p47 = por %p45, %p46
    %s49 = sadd.s32 %s48, 1
    %p52 = scmp.eq.s32.totalorder %s14, 1
    %p53 = scmp.ne.s32.totalorder %s48, %s50
    %p54 = scmp.eq.s32.totalorder %s14, 0
    %p55 = por %p53, %p54
    %p56 = scmp.ne.s32.totalorder %s48, %s50
    %p57 = scmp.eq.s32.totalorder %s19, 1
    %p58 = por %p56, %p57
    %p59 = scmp.ne.s32.totalorder %s50, %s51
    %p60 = scmp.eq.s32.totalorder %s19, 0
    %p61 = por %p59, %p60
    %p62 = scmp.ne.s32.totalorder %s50, %s51
    %p63 = scmp.eq.s32.totalorder %s20, 1
    %p64 = por %p62, %p63
    %p66 = scmp.ne.s32.totalorder %s51, %s65
    %p67 = scmp.eq.s32.totalorder %s20, 0
    %p68 = por %p66, %p67
    %s70 = sadd.s32 %s69, 1
    %p73 = scmp.eq.s32.totalorder %s14, 1
    %p74 = scmp.ne.s32.totalorder %s69, %s71
    %p75 = scmp.eq.s32.totalorder %s14, 0
    %p76 = por %p74, %p75
    %p77 = scmp.ne.s32.totalorder %s69, %s71
    %p78 = scmp.eq.s32.totalorder %s19, 1
    %p79 = por %p77, %p78
    %p80 = scmp.ne.s32.totalorder %s71, %s72
    %p81 = scmp.eq.s32.totalorder %s19, 0
    %p82 = por %p80, %p81
    %p83 = scmp.ne.s32.totalorder %s71, %s72
    %p84 = scmp.eq.s32.totalorder %s20, 1
    %p85 = por %p83, %p84
    %p87 = scmp.ne.s32.totalorder %s72, %s86
    %p88 = scmp.eq.s32.totalorder %s20, 0
    %p89 = por %p87, %p88
    %s91 = sadd.s32 %s90, 1
    %p94 = scmp.eq.s32.totalorder %s14, 1
    %p95 = scmp.ne.s32.totalorder %s90, %s92
    %p96 = scmp.eq.s32.totalorder %s14, 0
    %p97 = por %p95, %p96
    %p98 = scmp.ne.s32.totalorder %s90, %s92
    %p99 = scmp.eq.s32.totalorder %s19, 1
    %p100 = por %p98, %p99
    %p101 = scmp.ne.s32.totalorder %s92, %s93
    %p102 = scmp.eq.s32.totalorder %s19, 0
    %p103 = por %p101, %p102
    %p104 = scmp.ne.s32.totalorder %s92, %s93
    %p105 = scmp.eq.s32.totalorder %s20, 1
    %p106 = por %p104, %p105
    %p108 = scmp.ne.s32.totalorder %s93, %s107
    %p109 = scmp.eq.s32.totalorder %s20, 0
    %p110 = por %p108, %p109
    %s111 = ssub.s32 %s14, %s21
    %p112 = scmp.eq.s32.totalorder %s111, 0
    %s114 = sadd.s32 %s113, 1
    %s115 = scalar_select %p112, %s113, %s114
    %p118 = pneg %p112
    %p119 = scmp.eq.s32.totalorder %s14, 1
    %p120 = por %p118, %p119
    %p121 = scmp.ne.s32.totalorder %s113, %s116
    %p122 = scmp.eq.s32.totalorder %s14, 0
    %p123 = por %p121, %p122
    %p124 = scmp.ne.s32.totalorder %s113, %s116
    %p125 = scmp.eq.s32.totalorder %s19, 1
    %p126 = por %p124, %p125
    %p127 = scmp.ne.s32.totalorder %s116, %s117
    %p128 = scmp.eq.s32.totalorder %s19, 0
    %p129 = por %p127, %p128
    %p130 = scmp.ne.s32.totalorder %s116, %s117
    %p131 = scmp.eq.s32.totalorder %s20, 1
    %p132 = por %p130, %p131
    %p134 = scmp.ne.s32.totalorder %s117, %s133
    %p135 = scmp.eq.s32.totalorder %s20, 0
    %p136 = por %p134, %p135
    %s138 = sadd.s32 %s137, 1
    %p141 = scmp.eq.s32.totalorder %s14, 1
    %p142 = scmp.ne.s32.totalorder %s137, %s139
    %p143 = scmp.eq.s32.totalorder %s14, 0
    %p144 = por %p142, %p143
    %p145 = scmp.ne.s32.totalorder %s137, %s139
    %p146 = scmp.eq.s32.totalorder %s19, 1
    %p147 = por %p145, %p146
    %p148 = scmp.ne.s32.totalorder %s139, %s140
    %p149 = scmp.eq.s32.totalorder %s19, 0
    %p150 = por %p148, %p149
    %p151 = scmp.ne.s32.totalorder %s139, %s140
    %p152 = scmp.eq.s32.totalorder %s20, 1
    %p153 = por %p151, %p152
    %p155 = scmp.ne.s32.totalorder %s140, %s154
    %p156 = scmp.eq.s32.totalorder %s20, 0
    %p157 = por %p155, %p156
    %s159 = sadd.s32 %s158, 1
    %p162 = scmp.eq.s32.totalorder %s14, 1
    %p163 = scmp.ne.s32.totalorder %s158, %s160
    %p164 = scmp.eq.s32.totalorder %s14, 0
    %p165 = por %p163, %p164
    %p166 = scmp.ne.s32.totalorder %s158, %s160
    %p167 = scmp.eq.s32.totalorder %s19, 1
    %p168 = por %p166, %p167
    %p169 = scmp.ne.s32.totalorder %s160, %s161
    %p170 = scmp.eq.s32.totalorder %s19, 0
    %p171 = por %p169, %p170
    %p172 = scmp.ne.s32.totalorder %s160, %s161
    %p173 = scmp.eq.s32.totalorder %s20, 1
    %p174 = por %p172, %p173
    %p176 = scmp.ne.s32.totalorder %s161, %s175
    %p177 = scmp.eq.s32.totalorder %s20, 0
    %p178 = por %p176, %p177
    %s180 = sadd.s32 %s179, 1
    %p183 = scmp.eq.s32.totalorder %s14, 1
    %p184 = scmp.ne.s32.totalorder %s179, %s181
    %p185 = scmp.eq.s32.totalorder %s14, 0
    %p186 = por %p184, %p185
    %p187 = scmp.ne.s32.totalorder %s179, %s181
    %p188 = scmp.eq.s32.totalorder %s19, 1
    %p189 = por %p187, %p188
    %p190 = scmp.ne.s32.totalorder %s181, %s182
    %p191 = scmp.eq.s32.totalorder %s19, 0
    %p192 = por %p190, %p191
    %p193 = scmp.ne.s32.totalorder %s181, %s182
    %p194 = scmp.eq.s32.totalorder %s20, 1
    %p195 = por %p193, %p194
    %p197 = scmp.ne.s32.totalorder %s182, %s196
    %p198 = scmp.eq.s32.totalorder %s20, 0
    %p199 = por %p197, %p198
    %s200 = ssub.s32 %s14, %s21
    %p201 = scmp.eq.s32.totalorder %s200, 0
    %s203 = sadd.s32 %s202, 1
    %s204 = scalar_select %p201, %s202, %s203
    %p207 = pneg %p201
    %p208 = scmp.eq.s32.totalorder %s14, 1
    %p209 = por %p207, %p208
    %p210 = scmp.ne.s32.totalorder %s202, %s205
    %p211 = scmp.eq.s32.totalorder %s14, 0
    %p212 = por %p210, %p211
    %p213 = scmp.ne.s32.totalorder %s202, %s205
    %p214 = scmp.eq.s32.totalorder %s19, 1
    %p215 = por %p213, %p214
    %p216 = scmp.ne.s32.totalorder %s205, %s206
    %p217 = scmp.eq.s32.totalorder %s19, 0
    %p218 = por %p216, %p217
    %p219 = scmp.ne.s32.totalorder %s205, %s206
    %p220 = scmp.eq.s32.totalorder %s20, 1
    %p221 = por %p219, %p220
    %p223 = scmp.ne.s32.totalorder %s206, %s222
    %p224 = scmp.eq.s32.totalorder %s20, 0
    %p225 = por %p223, %p224
    %p226 = scmp.le.s32.totalorder 1, %s14
    %p227 = scmp.lt.s32.totalorder %s14, 3
    %p228 = pnand %p226, %p227
    %p229 = pneg %p228
    // Predicated region
    $region9: #{basic_block_forward.9} parent=5 // pred_check
      _
    $region10: #{basic_block_forward.9} parent=5 // pred_check_branch
      %231 = sbr.rel (%p228) target = $region12
    $region11: #{basic_block_forward.9} parent=5 // pred_region
      %s232 = ssub.s32 %s14, 1
      // Predicated region
      $region13: #{basic_block_forward.9} parent=11 // pred_check
        %p233 = pneg %p61
      $region14: #{basic_block_forward.9} parent=11 // pred_check_branch
        %235 = sbr.rel (%p233) target = $region16
      $region15: #{basic_block_forward.9} parent=11 // pred_region
        _
      $region16: #{basic_block_forward.9} parent=11 // pred_fallthru
        _
      // Predicated region
      $region17: #{basic_block_forward.9} parent=11 // pred_check
        %p236 = pneg %p82
      $region18: #{basic_block_forward.9} parent=11 // pred_check_branch
        %238 = sbr.rel (%p236) target = $region20
      $region19: #{basic_block_forward.9} parent=11 // pred_region
        _
      $region20: #{basic_block_forward.9} parent=11 // pred_fallthru
        _
      // Predicated region
      $region21: #{basic_block_forward.9} parent=11 // pred_check
        %p239 = pneg %p103
      $region22: #{basic_block_forward.9} parent=11 // pred_check_branch
        %241 = sbr.rel (%p239) target = $region24
      $region23: #{basic_block_forward.9} parent=11 // pred_region
        _
      $region24: #{basic_block_forward.9} parent=11 // pred_fallthru
        _
      // Predicated region
      $region25: #{basic_block_forward.9} parent=11 // pred_check
        %p242 = pneg %p150
      $region26: #{basic_block_forward.9} parent=11 // pred_check_branch
        %244 = sbr.rel (%p242) target = $region28
      $region27: #{basic_block_forward.9} parent=11 // pred_region
        _
      $region28: #{basic_block_forward.9} parent=11 // pred_fallthru
        _
      // Predicated region
      $region29: #{basic_block_forward.9} parent=11 // pred_check
        %p245 = pneg %p171
      $region30: #{basic_block_forward.9} parent=11 // pred_check_branch
        %247 = sbr.rel (%p245) target = $region32
      $region31: #{basic_block_forward.9} parent=11 // pred_region
        _
      $region32: #{basic_block_forward.9} parent=11 // pred_fallthru
        _
      // Predicated region
      $region33: #{basic_block_forward.9} parent=11 // pred_check
        %p248 = pneg %p192
      $region34: #{basic_block_forward.9} parent=11 // pred_check_branch
        %250 = sbr.rel (%p248) target = $region36
      $region35: #{basic_block_forward.9} parent=11 // pred_region
        _
      $region36: #{basic_block_forward.9} parent=11 // pred_fallthru
        _
    $region12: #{basic_block_forward.9} parent=5 // pred_fallthru
      _
    %p251 = scmp.lt.s32.totalorder %s14, 2
    // Predicated region
    $region37: #{basic_block_forward.9} parent=5 // pred_check
      %p252 = pneg %p251
    $region38: #{basic_block_forward.9} parent=5 // pred_check_branch
      %254 = sbr.rel (%p252) target = $region40
    $region39: #{basic_block_forward.9} parent=5 // pred_region
      // Predicated region
      $region41: #{basic_block_forward.9} parent=39 // pred_check
        %p255 = pneg %p34
      $region42: #{basic_block_forward.9} parent=39 // pred_check_branch
        %257 = sbr.rel (%p255) target = $region44
      $region43: #{basic_block_forward.9} parent=39 // pred_region
        %s258 = smul.u32 8, %s14
        %p259 = scmp.lt.s32.totalorder %s258, 15
        %s260 = scalar_select %p259, %s258, 15
        %s261 = smul.addr %s260, 8
        %s262 = scalar_lea.vmem %s0, %s261
        %s263 = smul.u32 8, %s14
      $region44: #{basic_block_forward.9} parent=39 // pred_fallthru
        _
      // Predicated region
      $region45: #{basic_block_forward.9} parent=39 // pred_check
        %p264 = pneg %p123
      $region46: #{basic_block_forward.9} parent=39 // pred_check_branch
        %266 = sbr.rel (%p264) target = $region48
      $region47: #{basic_block_forward.9} parent=39 // pred_region
        %s267 = smul.u32 8, %s14
        %p268 = scmp.lt.s32.totalorder %s267, 15
        %s269 = scalar_select %p268, %s267, 15
        %s270 = smul.addr %s269, 8
        %s271 = scalar_lea.vmem %s4, %s270
        %s272 = smul.u32 8, %s14
      $region48: #{basic_block_forward.9} parent=39 // pred_fallthru
        _
    $region40: #{basic_block_forward.9} parent=5 // pred_fallthru
      _
    %p273 = scmp.le.s32.totalorder 1, %s14
    %p274 = scmp.lt.s32.totalorder %s14, 3
    %p275 = pnand %p273, %p274
    %p276 = pneg %p275
    // Predicated region
    $region49: #{basic_block_forward.9} parent=5 // pred_check
      _
    $region50: #{basic_block_forward.9} parent=5 // pred_check_branch
      %278 = sbr.rel (%p275) target = $region52
    $region51: #{basic_block_forward.9} parent=5 // pred_region
      %s279 = ssub.s32 %s14, 1
      %s280 = smul.u32 8, %s19
      %p281 = scmp.lt.s32.totalorder %s280, 15
      %s282 = scalar_select %p281, %s280, 15
      %s283 = smul.addr %s282, 8
      %s284 = scalar_lea.vmem %s0, %s283
      %p285 = pneg %p40
      %p286 = pneg %p37
      %p287 = pneg %p61
      %p288 = pneg %p58
      %p289 = pneg %p82
      %p290 = pneg %p79
      %p291 = pneg %p103
      %p292 = pneg %p100
      %s293 = smul.u32 8, %s19
      %p294 = scmp.lt.s32.totalorder %s293, 15
      %s295 = scalar_select %p294, %s293, 15
      %s296 = smul.addr %s295, 8
      %s297 = scalar_lea.vmem %s4, %s296
      %p298 = pneg %p129
      %p299 = pneg %p126
      %p300 = pneg %p150
      %p301 = pneg %p147
      %p302 = pneg %p171
      %p303 = pneg %p168
      %p304 = pneg %p192
      %p305 = pneg %p189
      %p306 = pneg %p218
      %p307 = pneg %p215
      %s308 = smul.u32 8, %s19
      %p309 = scmp.lt.s32.totalorder %s308, 15
      %s310 = scalar_select %p309, %s308, 15
      %s311 = smul.addr %s310, 8
      %s312 = scalar_lea.vmem %s8, %s311
      %s313 = smul.u32 8, %s19
      %p314 = scmp.lt.s32.totalorder %s313, 15
      %s315 = scalar_select %p314, %s313, 15
      %s316 = smul.addr %s315, 8
      %s317 = scalar_lea.vmem %s0, %s316
      %s318 = smul.u32 8, %s19
      %s319 = smul.u32 8, %s19
      %p320 = scmp.lt.s32.totalorder %s319, 15
      %s321 = scalar_select %p320, %s319, 15
      %s322 = smul.addr %s321, 8
      %s323 = scalar_lea.vmem %s4, %s322
      %s324 = smul.u32 8, %s19
      %s325 = smul.u32 8, %s19
      %p326 = scmp.lt.s32.totalorder %s325, 15
      %s327 = scalar_select %p326, %s325, 15
      %s328 = smul.addr %s327, 8
      %s329 = scalar_lea.vmem %s8, %s328
      %s330 = smul.u32 8, %s19
      %v331 = vld [vmem:[%s1] sm:$0x3]
      %v332 = vld [vmem:[%s2] sm:$0x1]
      %v333 = vld [vmem:[%s3] sm:$0x1]
      %v334 = vmul.f32 %v331, 0.0078125
      %v335 = vmul.f32 %v334, %v334
      %v337 = vrot.slane %v335, 7
      %v339 = vsub.f32 %v334, %v337
      %v340 = vmax.f32 %v339, 0.0
      %v341 = vadd.f32 %v340, 1e-05
      %v342 = vrsqrt.pop %v341
      %v345 = vunpack.c.l.s4 1966171168
      %v346 = vunpack.c.0.s8 %v345
      %v347 = vlaneseq
      %v348 = vshrl.u32 %v347, 7
      %v349 = vsub.s32 %v346, %v348
      %v350 = vrot.slane %v342, %v349
      %v351 = vcombine.high %v350, %v350
      %v353 = vunpack.c.l.s4 1966171168
      %v354 = vunpack.c.0.s8 %v353
      %v355 = vlaneseq
      %v356 = vshrl.u32 %v355, 7
      %v357 = vsub.s32 %v354, %v356
      %v358 = vrot.slane %v351, %v357
      %v360 = vmul.f32 %v332, %v358
      %v361 = vmul.f32 %v334, %v360
      %v362 = vsub.f32 %v333, %v361
      %v363 = vld [vmem:[%s317] sm:$0xff]
      %v364 = vld [vmem:[%s317 + $0x8] sm:$0xff]
      %v365 = vld [vmem:[%s317 + $0x10] sm:$0xff]
      %v366 = vld [vmem:[%s317 + $0x18] sm:$0xff]
      %v367 = vld [vmem:[%s317 + $0x20] sm:$0xff]
      %v368 = vld [vmem:[%s317 + $0x28] sm:$0xff]
      %v369 = vld [vmem:[%s317 + $0x30] sm:$0xff]
      %v370 = vld [vmem:[%s317 + $0x38] sm:$0xff]
      %v372 = vlaneseq
      %v373 = vshrl.u32 %v372, 7
      %v374 = vsub.s32 0, %v373
      %v375 = vrot.slane %v360, %v374
      %v377 = vmul.f32 %v363, %v375
      %v378 = vmul.f32 %v364, %v375
      %v379 = vmul.f32 %v365, %v375
      %v380 = vmul.f32 %v366, %v375
      %v381 = vmul.f32 %v367, %v375
      %v382 = vmul.f32 %v368, %v375
      %v383 = vmul.f32 %v369, %v375
      %v384 = vmul.f32 %v370, %v375
      %v386 = vlaneseq
      %v387 = vshrl.u32 %v386, 7
      %v388 = vsub.s32 0, %v387
      %v389 = vrot.slane %v362, %v388
      %v391 = vadd.f32 %v377, %v389
      %v392 = vadd.f32 %v378, %v389
      %v393 = vadd.f32 %v379, %v389
      %v394 = vadd.f32 %v380, %v389
      %v395 = vadd.f32 %v381, %v389
      %v396 = vadd.f32 %v382, %v389
      %v397 = vadd.f32 %v383, %v389
      %v398 = vadd.f32 %v384, %v389
      %v399 = vld [vmem:[%s323] sm:$0xff]
      %v400 = vld [vmem:[%s323 + $0x8] sm:$0xff]
      %v401 = vld [vmem:[%s323 + $0x10] sm:$0xff]
      %v402 = vld [vmem:[%s323 + $0x18] sm:$0xff]
      %v403 = vld [vmem:[%s323 + $0x20] sm:$0xff]
      %v404 = vld [vmem:[%s323 + $0x28] sm:$0xff]
      %v405 = vld [vmem:[%s323 + $0x30] sm:$0xff]
      %v406 = vld [vmem:[%s323 + $0x38] sm:$0xff]
      %v407 = vld [vmem:[%s5] sm:$0x3]
      %v408 = vld [vmem:[%s6] sm:$0x1]
      %v409 = vld [vmem:[%s7] sm:$0x1]
      %v410 = vmul.f32 %v407, 0.0078125
      %v411 = vmul.f32 %v410, %v410
      %v413 = vrot.slane %v411, 7
      %v415 = vsub.f32 %v410, %v413
      %v416 = vmax.f32 %v415, 0.0
      %v417 = vadd.f32 %v416, 1e-05
      %v418 = vrsqrt.pop %v417
      %v421 = vunpack.c.l.s4 1966171168
      %v422 = vunpack.c.0.s8 %v421
      %v423 = vlaneseq
      %v424 = vshrl.u32 %v423, 7
      %v425 = vsub.s32 %v422, %v424
      %v426 = vrot.slane %v418, %v425
      %v427 = vcombine.high %v426, %v426
      %v429 = vunpack.c.l.s4 1966171168
      %v430 = vunpack.c.0.s8 %v429
      %v431 = vlaneseq
      %v432 = vshrl.u32 %v431, 7
      %v433 = vsub.s32 %v430, %v432
      %v434 = vrot.slane %v427, %v433
      %v436 = vmul.f32 %v408, %v434
      %v437 = vmul.f32 %v410, %v436
      %v438 = vsub.f32 %v409, %v437
      %v440 = vlaneseq
      %v441 = vshrl.u32 %v440, 7
      %v442 = vsub.s32 0, %v441
      %v443 = vrot.slane %v436, %v442
      %v445 = vmul.f32 %v399, %v443
      %v446 = vmul.f32 %v400, %v443
      %v447 = vmul.f32 %v401, %v443
      %v448 = vmul.f32 %v402, %v443
      %v449 = vmul.f32 %v403, %v443
      %v450 = vmul.f32 %v404, %v443
      %v451 = vmul.f32 %v405, %v443
      %v452 = vmul.f32 %v406, %v443
      %v454 = vlaneseq
      %v455 = vshrl.u32 %v454, 7
      %v456 = vsub.s32 0, %v455
      %v457 = vrot.slane %v438, %v456
      %v459 = vadd.f32 %v445, %v457
      %v460 = vadd.f32 %v446, %v457
      %v461 = vadd.f32 %v447, %v457
      %v462 = vadd.f32 %v448, %v457
      %v463 = vadd.f32 %v449, %v457
      %v464 = vadd.f32 %v450, %v457
      %v465 = vadd.f32 %v451, %v457
      %v466 = vadd.f32 %v452, %v457
      %v467 = vadd.f32 %v391, %v459
      %v468 = vadd.f32 %v392, %v460
      %v469 = vadd.f32 %v393, %v461
      %v470 = vadd.f32 %v394, %v462
      %v471 = vadd.f32 %v395, %v463
      %v472 = vadd.f32 %v396, %v464
      %v473 = vadd.f32 %v397, %v465
      %v474 = vadd.f32 %v398, %v466
      %v475 = vmax.f32 %v467, 0.0
      %v476 = vmax.f32 %v468, 0.0
      %v477 = vmax.f32 %v469, 0.0
      %v478 = vmax.f32 %v470, 0.0
      %v479 = vmax.f32 %v471, 0.0
      %v480 = vmax.f32 %v472, 0.0
      %v481 = vmax.f32 %v473, 0.0
      %v482 = vmax.f32 %v474, 0.0
      %483 = vst [vmem:[%s329] sm:$0xff] %v475
      %484 = vst [vmem:[%s329 + $0x8] sm:$0xff] %v476
      %485 = vst [vmem:[%s329 + $0x10] sm:$0xff] %v477
      %486 = vst [vmem:[%s329 + $0x18] sm:$0xff] %v478
      %487 = vst [vmem:[%s329 + $0x20] sm:$0xff] %v479
      %488 = vst [vmem:[%s329 + $0x28] sm:$0xff] %v480
      %489 = vst [vmem:[%s329 + $0x30] sm:$0xff] %v481
      %490 = vst [vmem:[%s329 + $0x38] sm:$0xff] %v482
      %s491 = smul.u32 8, %s19
      %p492 = scmp.lt.s32.totalorder %s491, 15
      %s493 = scalar_select %p492, %s491, 15
      %s494 = smul.addr %s493, 8
      %s495 = scalar_lea.vmem %s8, %s494
      // Predicated region
      $region53: #{basic_block_forward.9} parent=51 // pred_check
        %p496 = pneg %p215
      $region54: #{basic_block_forward.9} parent=51 // pred_check_branch
        %498 = sbr.rel (%p496) target = $region56
      $region55: #{basic_block_forward.9} parent=51 // pred_region
        %s499 = smul.u32 8, %s19
      $region56: #{basic_block_forward.9} parent=51 // pred_fallthru
        _
    $region52: #{basic_block_forward.9} parent=5 // pred_fallthru
      _
    %p500 = scmp.le.s32.totalorder 2, %s14
    // Predicated region
    $region57: #{basic_block_forward.9} parent=5 // pred_check
      %p501 = pneg %p500
    $region58: #{basic_block_forward.9} parent=5 // pred_check_branch
      %503 = sbr.rel (%p501) target = $region60
    $region59: #{basic_block_forward.9} parent=5 // pred_region
      %s504 = ssub.s32 %s14, 2
      // Predicated region
      $region61: #{basic_block_forward.9} parent=59 // pred_check
        %p505 = pneg %p221
      $region62: #{basic_block_forward.9} parent=59 // pred_check_branch
        %507 = sbr.rel (%p505) target = $region64
      $region63: #{basic_block_forward.9} parent=59 // pred_region
        %s508 = smul.u32 8, %s20
        %p509 = scmp.lt.s32.totalorder %s508, 15
        %s510 = scalar_select %p509, %s508, 15
        %s511 = smul.addr %s510, 8
        %s512 = scalar_lea.vmem %s8, %s511
      $region64: #{basic_block_forward.9} parent=59 // pred_fallthru
        _
    $region60: #{basic_block_forward.9} parent=5 // pred_fallthru
      _
  $region6: #{basic_block_forward.9} parent=0 // loop_footer
    %s18 = sadd.s32 1, %s14
  $region7: #{basic_block_forward.9} parent=0 // loop_footer_branch
    %13 = sbr.rel target = $region3
  $region8: #{basic_block_forward.9} parent=0 // loop_exit
    _

// kernel: basic_block_forward.8
$region0: #{basic_block_forward.8}
  #allocation0 [shape = 'u32[]', space=smem, size = 0x4, offset = 0x4, fixed_abs, tag = 'smem constant byte address 0x4 - core index']
  #allocation1 [shape = 'u32[144,128]{1,0:T(1,128)}', space=vmem, size = 0x12000, scoped, tag = 'internal scratch']
  %s0 = inlined_call_operand.vmem [shape: bf16[128,1152], index: 0, kind: input, shape index: {}]
  %s1 = inlined_call_operand.vmem [shape: bf16[1152,128], index: 1, kind: input, shape index: {}]
  %s2 = inlined_call_operand.vmem [shape: f32[128,128], index: 2, kind: output, shape index: {0}]
  %s3 = inlined_call_operand.vmem [shape: f32[2,128], index: 3, kind: output, shape index: {1}]
  %4 = xla_tuple %s2, %s3
  %s5 = sld [smem:[#allocation0]]
  $region53: #{basic_block_forward.8} parent=0
    _
  %s7 = ssub.s32 1, %s5
  %s8 = scalar_select 0, %s7, %s5
  loop: start=0, step=1, limit=4
  $region2: #{basic_block_forward.8} parent=0 // loop_pre_header
    _
  $region3: #{basic_block_forward.8} parent=0 // loop_header
    %s10 = sphi 0, %s14
    %p11 = scmp.ge.s32.totalorder %s10, 4
    %s20 = sphi 0, %s22
    %s23 = sphi 0, %s20
    %s24 = sphi 0, %s23
    %s40 = sphi 0, %s24
    %s44 = sphi 0, %s44
    %s46 = sphi 0, %s44
    %s47 = sphi 0, %s46
    %s61 = sphi 0, %s47
    %s67 = sphi 0, %s69
    %s70 = sphi 0, %s67
    %s71 = sphi 0, %s70
    %s87 = sphi 0, %s71
    %s91 = sphi 0, %s91
    %s93 = sphi 0, %s91
    %s94 = sphi 0, %s93
    %s108 = sphi 0, %s94
  $region4: #{basic_block_forward.8} parent=0 // loop_header_branch
    %13 = sbr.rel (%p11) target = $region8
  $region5: #{basic_block_forward.8} parent=0 // loop_body
    %s15 = ssub.s32 %s10, 1
    %s16 = ssub.s32 %s10, 2
    %s17 = sadd.s32 %s10, 1
    %s18 = ssub.s32 %s10, %s17
    %p19 = scmp.eq.s32.totalorder %s18, 0
    %s21 = sadd.s32 %s20, 1
    %s22 = scalar_select %p19, %s20, %s21
    %p25 = pneg %p19
    %p26 = scmp.eq.s32.totalorder %s10, 1
    %p27 = por %p25, %p26
    %p28 = scmp.ne.s32.totalorder %s20, %s23
    %p29 = scmp.eq.s32.totalorder %s10, 0
    %p30 = por %p28, %p29
    %p31 = scmp.ne.s32.totalorder %s20, %s23
    %p32 = scmp.eq.s32.totalorder %s15, 1
    %p33 = por %p31, %p32
    %p34 = scmp.ne.s32.totalorder %s23, %s24
    %p35 = scmp.eq.s32.totalorder %s15, 0
    %p36 = por %p34, %p35
    %p37 = scmp.ne.s32.totalorder %s23, %s24
    %p38 = scmp.eq.s32.totalorder %s16, 1
    %p39 = por %p37, %p38
    %p41 = scmp.ne.s32.totalorder %s24, %s40
    %p42 = scmp.eq.s32.totalorder %s16, 0
    %p43 = por %p41, %p42
    %s45 = sadd.s32 %s44, 1
    %p48 = scmp.eq.s32.totalorder %s10, 1
    %p49 = scmp.ne.s32.totalorder %s44, %s46
    %p50 = scmp.eq.s32.totalorder %s10, 0
    %p51 = por %p49, %p50
    %p52 = scmp.ne.s32.totalorder %s44, %s46
    %p53 = scmp.eq.s32.totalorder %s15, 1
    %p54 = por %p52, %p53
    %p55 = scmp.ne.s32.totalorder %s46, %s47
    %p56 = scmp.eq.s32.totalorder %s15, 0
    %p57 = por %p55, %p56
    %p58 = scmp.ne.s32.totalorder %s46, %s47
    %p59 = scmp.eq.s32.totalorder %s16, 1
    %p60 = por %p58, %p59
    %p62 = scmp.ne.s32.totalorder %s47, %s61
    %p63 = scmp.eq.s32.totalorder %s16, 0
    %p64 = por %p62, %p63
    %s65 = ssub.s32 %s10, %s17
    %p66 = scmp.eq.s32.totalorder %s65, 0
    %s68 = sadd.s32 %s67, 1
    %s69 = scalar_select %p66, %s67, %s68
    %p72 = pneg %p66
    %p73 = scmp.eq.s32.totalorder %s10, 1
    %p74 = por %p72, %p73
    %p75 = scmp.ne.s32.totalorder %s67, %s70
    %p76 = scmp.eq.s32.totalorder %s10, 0
    %p77 = por %p75, %p76
    %p78 = scmp.ne.s32.totalorder %s67, %s70
    %p79 = scmp.eq.s32.totalorder %s15, 1
    %p80 = por %p78, %p79
    %p81 = scmp.ne.s32.totalorder %s70, %s71
    %p82 = scmp.eq.s32.totalorder %s15, 0
    %p83 = por %p81, %p82
    %p84 = scmp.ne.s32.totalorder %s70, %s71
    %p85 = scmp.eq.s32.totalorder %s16, 1
    %p86 = por %p84, %p85
    %p88 = scmp.ne.s32.totalorder %s71, %s87
    %p89 = scmp.eq.s32.totalorder %s16, 0
    %p90 = por %p88, %p89
    %s92 = sadd.s32 %s91, 1
    %p95 = scmp.eq.s32.totalorder %s10, 1
    %p96 = scmp.ne.s32.totalorder %s91, %s93
    %p97 = scmp.eq.s32.totalorder %s10, 0
    %p98 = por %p96, %p97
    %p99 = scmp.ne.s32.totalorder %s91, %s93
    %p100 = scmp.eq.s32.totalorder %s15, 1
    %p101 = por %p99, %p100
    %p102 = scmp.ne.s32.totalorder %s93, %s94
    %p103 = scmp.eq.s32.totalorder %s15, 0
    %p104 = por %p102, %p103
    %p105 = scmp.ne.s32.totalorder %s93, %s94
    %p106 = scmp.eq.s32.totalorder %s16, 1
    %p107 = por %p105, %p106
    %p109 = scmp.ne.s32.totalorder %s94, %s108
    %p110 = scmp.eq.s32.totalorder %s16, 0
    %p111 = por %p109, %p110
    %p112 = scmp.le.s32.totalorder 1, %s10
    %p113 = scmp.lt.s32.totalorder %s10, 3
    %p114 = pnand %p112, %p113
    %p115 = pneg %p114
    // Predicated region
    $region9: #{basic_block_forward.8} parent=5 // pred_check
      _
    $region10: #{basic_block_forward.8} parent=5 // pred_check_branch
      %117 = sbr.rel (%p114) target = $region12
    $region11: #{basic_block_forward.8} parent=5 // pred_region
      %s118 = ssub.s32 %s10, 1
      // Predicated region
      $region13: #{basic_block_forward.8} parent=11 // pred_check
        %p119 = pneg %p57
      $region14: #{basic_block_forward.8} parent=11 // pred_check_branch
        %121 = sbr.rel (%p119) target = $region16
      $region15: #{basic_block_forward.8} parent=11 // pred_region
        _
      $region16: #{basic_block_forward.8} parent=11 // pred_fallthru
        _
    $region12: #{basic_block_forward.8} parent=5 // pred_fallthru
      _
    %p122 = scmp.lt.s32.totalorder %s10, 2
    // Predicated region
    $region17: #{basic_block_forward.8} parent=5 // pred_check
      %p123 = pneg %p122
    $region18: #{basic_block_forward.8} parent=5 // pred_check_branch
      %125 = sbr.rel (%p123) target = $region20
    $region19: #{basic_block_forward.8} parent=5 // pred_region
      // Predicated region
      $region21: #{basic_block_forward.8} parent=19 // pred_check
        %p126 = pneg %p30
      $region22: #{basic_block_forward.8} parent=19 // pred_check_branch
        %128 = sbr.rel (%p126) target = $region24
      $region23: #{basic_block_forward.8} parent=19 // pred_region
        %s129 = smul.u32 8, %s10
        %p130 = scmp.lt.s32.totalorder %s129, 15
        %s131 = scalar_select %p130, %s129, 15
        %s132 = smul.addr %s131, 9
        %s133 = smul.addr %s132, 4
        %s134 = scalar_lea.vmem %s0, %s133
        %s135 = smul.u32 8, %s10
      $region24: #{basic_block_forward.8} parent=19 // pred_fallthru
        _
    $region20: #{basic_block_forward.8} parent=5 // pred_fallthru
      _
    %p136 = scmp.le.s32.totalorder 1, %s10
    %p137 = scmp.lt.s32.totalorder %s10, 3
    %p138 = pnand %p136, %p137
    %p139 = pneg %p138
    // Predicated region
    $region25: #{basic_block_forward.8} parent=5 // pred_check
      _
    $region26: #{basic_block_forward.8} parent=5 // pred_check_branch
      %141 = sbr.rel (%p138) target = $region28
    $region27: #{basic_block_forward.8} parent=5 // pred_region
      %s142 = ssub.s32 %s10, 1
      %s143 = smul.u32 8, %s15
      %p144 = scmp.lt.s32.totalorder %s143, 15
      %s145 = scalar_select %p144, %s143, 15
      %s146 = smul.addr %s145, 9
      %s147 = smul.addr %s146, 4
      %s148 = scalar_lea.vmem %s0, %s147
      %p149 = pneg %p36
      %p150 = pneg %p33
      %p151 = pneg %p57
      %p152 = pneg %p54
      %p153 = pneg %p83
      %p154 = pneg %p80
      %s155 = smul.u32 8, %s15
      %p156 = scmp.lt.s32.totalorder %s155, 15
      %s157 = scalar_select %p156, %s155, 15
      %s158 = smul.addr %s157, 8
      %s159 = scalar_lea.vmem %s2, %s158
      %p160 = pneg %p104
      %p161 = pneg %p101
      %s162 = smul.u32 8, %s15
      %p163 = scmp.lt.s32.totalorder %s162, 15
      %s164 = scalar_select %p163, %s162, 15
      %s165 = smul.addr %s164, 9
      %s166 = smul.addr %s165, 4
      %s167 = scalar_lea.vmem %s0, %s166
      %s168 = smul.u32 8, %s15
      %s169 = smul.u32 8, %s15
      %p170 = scmp.lt.s32.totalorder %s169, 15
      %s171 = scalar_select %p170, %s169, 15
      %s172 = smul.addr %s171, 8
      %s173 = scalar_lea.vmem %s2, %s172
      %s174 = smul.u32 8, %s15
      %p176 = scmp.eq.s32.totalorder %s15, 0
      // Predicated region
      $region29: #{basic_block_forward.8} parent=27 // pred_check
        %p177 = pneg %p176
      $region30: #{basic_block_forward.8} parent=27 // pred_check_branch
        %179 = sbr.rel (%p177) target = $region32
      $region31: #{basic_block_forward.8} parent=27 // pred_region
        %180 = vst [vmem:[%s3] sm:$0x3] 0.0
      $region32: #{basic_block_forward.8} parent=27 // pred_fallthru
        _
      %v181 = vld [vmem:[%s167] sm:$0xff]
      %v182 = vld [vmem:[%s167 + $0x8] sm:$0xff]
      %v183 = vld [vmem:[%s167 + $0x10] sm:$0xff]
      %v184 = vld [vmem:[%s167 + $0x18] sm:$0xff]
      %v185 = vld [vmem:[%s167 + $0x20] sm:$0xf]
      %v186 = vld [vmem:[%s167 + $0x24] sm:$0xff]
      %v187 = vld [vmem:[%s167 + $0x2c] sm:$0xff]
      %v188 = vld [vmem:[%s167 + $0x34] sm:$0xff]
      %v189 = vld [vmem:[%s167 + $0x3c] sm:$0xff]
      %v190 = vld [vmem:[%s167 + $0x44] sm:$0xf]
      %v191 = vld [vmem:[%s167 + $0x48] sm:$0xff]
      %v192 = vld [vmem:[%s167 + $0x50] sm:$0xff]
      %v193 = vld [vmem:[%s167 + $0x58] sm:$0xff]
      %v194 = vld [vmem:[%s167 + $0x60] sm:$0xff]
      %v195 = vld [vmem:[%s167 + $0x68] sm:$0xf]
      %v196 = vld [vmem:[%s167 + $0x6c] sm:$0xff]
      %v197 = vld [vmem:[%s167 + $0x74] sm:$0xff]
      %v198 = vld [vmem:[%s167 + $0x7c] sm:$0xff]
      %v199 = vld [vmem:[%s167 + $0x84] sm:$0xff]
      %v200 = vld [vmem:[%s167 + $0x8c] sm:$0xf]
      %v201 = vld [vmem:[%s167 + $0x90] sm:$0xff]
      %v202 = vld [vmem:[%s167 + $0x98] sm:$0xff]
      %v203 = vld [vmem:[%s167 + $0xa0] sm:$0xff]
      %v204 = vld [vmem:[%s167 + $0xa8] sm:$0xff]
      %v205 = vld [vmem:[%s167 + $0xb0] sm:$0xf]
      %v206 = vld [vmem:[%s167 + $0xb4] sm:$0xff]
      %v207 = vld [vmem:[%s167 + $0xbc] sm:$0xff]
      %v208 = vld [vmem:[%s167 + $0xc4] sm:$0xff]
      %v209 = vld [vmem:[%s167 + $0xcc] sm:$0xff]
      %v210 = vld [vmem:[%s167 + $0xd4] sm:$0xf]
      %v211 = vld [vmem:[%s167 + $0xd8] sm:$0xff]
      %v212 = vld [vmem:[%s167 + $0xe0] sm:$0xff]
      %v213 = vld [vmem:[%s167 + $0xe8] sm:$0xff]
      %v214 = vld [vmem:[%s167 + $0xf0] sm:$0xff]
      %v215 = vld [vmem:[%s167 + $0xf8] sm:$0xf]
      %v216 = vld [vmem:[%s167 + $0xfc] sm:$0xff]
      %v217 = vld [vmem:[%s167 + $0x104] sm:$0xff]
      %v218 = vld [vmem:[%s167 + $0x10c] sm:$0xff]
      %v219 = vld [vmem:[%s167 + $0x114] sm:$0xff]
      %v220 = vld [vmem:[%s167 + $0x11c] sm:$0xf]
      %v221 = vld [vmem:[%s1] sm:$0xf]
      %v222 = vld [vmem:[%s1 + $0x4] sm:$0xf]
      %v223 = vld [vmem:[%s1 + $0x8] sm:$0xf]
      %v224 = vld [vmem:[%s1 + $0xc] sm:$0xf]
      %v225 = vld [vmem:[%s1 + $0x10] sm:$0xf]
      %v226 = vld [vmem:[%s1 + $0x14] sm:$0xf]
      %v227 = vld [vmem:[%s1 + $0x18] sm:$0xf]
      %v228 = vld [vmem:[%s1 + $0x1c] sm:$0xf]
      %v229 = vld [vmem:[%s1 + $0x20] sm:$0xf]
      %v230 = vld [vmem:[%s1 + $0x24] sm:$0xf]
      %v231 = vld [vmem:[%s1 + $0x28] sm:$0xf]
      %v232 = vld [vmem:[%s1 + $0x2c] sm:$0xf]
      %v233 = vld [vmem:[%s1 + $0x30] sm:$0xf]
      %v234 = vld [vmem:[%s1 + $0x34] sm:$0xf]
      %v235 = vld [vmem:[%s1 + $0x38] sm:$0xf]
      %v236 = vld [vmem:[%s1 + $0x3c] sm:$0xf]
      %v237 = vld [vmem:[%s1 + $0x40] sm:$0xf]
      %v238 = vld [vmem:[%s1 + $0x44] sm:$0xf]
      %v239 = vld [vmem:[%s1 + $0x48] sm:$0xf]
      %v240 = vld [vmem:[%s1 + $0x4c] sm:$0xf]
      %v241 = vld [vmem:[%s1 + $0x50] sm:$0xf]
      %v242 = vld [vmem:[%s1 + $0x54] sm:$0xf]
      %v243 = vld [vmem:[%s1 + $0x58] sm:$0xf]
      %v244 = vld [vmem:[%s1 + $0x5c] sm:$0xf]
      %v245 = vld [vmem:[%s1 + $0x60] sm:$0xf]
      %v246 = vld [vmem:[%s1 + $0x64] sm:$0xf]
      %v247 = vld [vmem:[%s1 + $0x68] sm:$0xf]
      %v248 = vld [vmem:[%s1 + $0x6c] sm:$0xf]
      %v249 = vld [vmem:[%s1 + $0x70] sm:$0xf]
      %v250 = vld [vmem:[%s1 + $0x74] sm:$0xf]
      %v251 = vld [vmem:[%s1 + $0x78] sm:$0xf]
      %v252 = vld [vmem:[%s1 + $0x7c] sm:$0xf]
      %v253 = vld [vmem:[%s1 + $0x80] sm:$0xf]
      %v254 = vld [vmem:[%s1 + $0x84] sm:$0xf]
      %v255 = vld [vmem:[%s1 + $0x88] sm:$0xf]
      %v256 = vld [vmem:[%s1 + $0x8c] sm:$0xf]
      %v257 = vld [vmem:[%s1 + $0x90] sm:$0xf]
      %v258 = vld [vmem:[%s1 + $0x94] sm:$0xf]
      %v259 = vld [vmem:[%s1 + $0x98] sm:$0xf]
      %v260 = vld [vmem:[%s1 + $0x9c] sm:$0xf]
      %v261 = vld [vmem:[%s1 + $0xa0] sm:$0xf]
      %v262 = vld [vmem:[%s1 + $0xa4] sm:$0xf]
      %v263 = vld [vmem:[%s1 + $0xa8] sm:$0xf]
      %v264 = vld [vmem:[%s1 + $0xac] sm:$0xf]
      %v265 = vld [vmem:[%s1 + $0xb0] sm:$0xf]
      %v266 = vld [vmem:[%s1 + $0xb4] sm:$0xf]
      %v267 = vld [vmem:[%s1 + $0xb8] sm:$0xf]
      %v268 = vld [vmem:[%s1 + $0xbc] sm:$0xf]
      %v269 = vld [vmem:[%s1 + $0xc0] sm:$0xf]
      %v270 = vld [vmem:[%s1 + $0xc4] sm:$0xf]
      %v271 = vld [vmem:[%s1 + $0xc8] sm:$0xf]
      %v272 = vld [vmem:[%s1 + $0xcc] sm:$0xf]
      %v273 = vld [vmem:[%s1 + $0xd0] sm:$0xf]
      %v274 = vld [vmem:[%s1 + $0xd4] sm:$0xf]
      %v275 = vld [vmem:[%s1 + $0xd8] sm:$0xf]
      %v276 = vld [vmem:[%s1 + $0xdc] sm:$0xf]
      %v277 = vld [vmem:[%s1 + $0xe0] sm:$0xf]
      %v278 = vld [vmem:[%s1 + $0xe4] sm:$0xf]
      %v279 = vld [vmem:[%s1 + $0xe8] sm:$0xf]
      %v280 = vld [vmem:[%s1 + $0xec] sm:$0xf]
      %v281 = vld [vmem:[%s1 + $0xf0] sm:$0xf]
      %v282 = vld [vmem:[%s1 + $0xf4] sm:$0xf]
      %v283 = vld [vmem:[%s1 + $0xf8] sm:$0xf]
      %v284 = vld [vmem:[%s1 + $0xfc] sm:$0xf]
      %v285 = vld [vmem:[%s1 + $0x100] sm:$0xf]
      %v286 = vld [vmem:[%s1 + $0x104] sm:$0xf]
      %v287 = vld [vmem:[%s1 + $0x108] sm:$0xf]
      %v288 = vld [vmem:[%s1 + $0x10c] sm:$0xf]
      %v289 = vld [vmem:[%s1 + $0x110] sm:$0xf]
      %v290 = vld [vmem:[%s1 + $0x114] sm:$0xf]
      %v291 = vld [vmem:[%s1 + $0x118] sm:$0xf]
      %v292 = vld [vmem:[%s1 + $0x11c] sm:$0xf]
      %v293 = vld [vmem:[%s1 + $0x120] sm:$0xf]
      %v294 = vld [vmem:[%s1 + $0x124] sm:$0xf]
      %v295 = vld [vmem:[%s1 + $0x128] sm:$0xf]
      %v296 = vld [vmem:[%s1 + $0x12c] sm:$0xf]
      %v297 = vld [vmem:[%s1 + $0x130] sm:$0xf]
      %v298 = vld [vmem:[%s1 + $0x134] sm:$0xf]
      %v299 = vld [vmem:[%s1 + $0x138] sm:$0xf]
      %v300 = vld [vmem:[%s1 + $0x13c] sm:$0xf]
      %v301 = vld [vmem:[%s1 + $0x140] sm:$0xf]
      %v302 = vld [vmem:[%s1 + $0x144] sm:$0xf]
      %v303 = vld [vmem:[%s1 + $0x148] sm:$0xf]
      %v304 = vld [vmem:[%s1 + $0x14c] sm:$0xf]
      %v305 = vld [vmem:[%s1 + $0x150] sm:$0xf]
      %v306 = vld [vmem:[%s1 + $0x154] sm:$0xf]
      %v307 = vld [vmem:[%s1 + $0x158] sm:$0xf]
      %v308 = vld [vmem:[%s1 + $0x15c] sm:$0xf]
      %v309 = vld [vmem:[%s1 + $0x160] sm:$0xf]
      %v310 = vld [vmem:[%s1 + $0x164] sm:$0xf]
      %v311 = vld [vmem:[%s1 + $0x168] sm:$0xf]
      %v312 = vld [vmem:[%s1 + $0x16c] sm:$0xf]
      %v313 = vld [vmem:[%s1 + $0x170] sm:$0xf]
      %v314 = vld [vmem:[%s1 + $0x174] sm:$0xf]
      %v315 = vld [vmem:[%s1 + $0x178] sm:$0xf]
      %v316 = vld [vmem:[%s1 + $0x17c] sm:$0xf]
      %v317 = vld [vmem:[%s1 + $0x180] sm:$0xf]
      %v318 = vld [vmem:[%s1 + $0x184] sm:$0xf]
      %v319 = vld [vmem:[%s1 + $0x188] sm:$0xf]
      %v320 = vld [vmem:[%s1 + $0x18c] sm:$0xf]
      %v321 = vld [vmem:[%s1 + $0x190] sm:$0xf]
      %v322 = vld [vmem:[%s1 + $0x194] sm:$0xf]
      %v323 = vld [vmem:[%s1 + $0x198] sm:$0xf]
      %v324 = vld [vmem:[%s1 + $0x19c] sm:$0xf]
      %v325 = vld [vmem:[%s1 + $0x1a0] sm:$0xf]
      %v326 = vld [vmem:[%s1 + $0x1a4] sm:$0xf]
      %v327 = vld [vmem:[%s1 + $0x1a8] sm:$0xf]
      %v328 = vld [vmem:[%s1 + $0x1ac] sm:$0xf]
      %v329 = vld [vmem:[%s1 + $0x1b0] sm:$0xf]
      %v330 = vld [vmem:[%s1 + $0x1b4] sm:$0xf]
      %v331 = vld [vmem:[%s1 + $0x1b8] sm:$0xf]
      %v332 = vld [vmem:[%s1 + $0x1bc] sm:$0xf]
      %v333 = vld [vmem:[%s1 + $0x1c0] sm:$0xf]
      %v334 = vld [vmem:[%s1 + $0x1c4] sm:$0xf]
      %v335 = vld [vmem:[%s1 + $0x1c8] sm:$0xf]
      %v336 = vld [vmem:[%s1 + $0x1cc] sm:$0xf]
      %v337 = vld [vmem:[%s1 + $0x1d0] sm:$0xf]
      %v338 = vld [vmem:[%s1 + $0x1d4] sm:$0xf]
      %v339 = vld [vmem:[%s1 + $0x1d8] sm:$0xf]
      %v340 = vld [vmem:[%s1 + $0x1dc] sm:$0xf]
      %v341 = vld [vmem:[%s1 + $0x1e0] sm:$0xf]
      %v342 = vld [vmem:[%s1 + $0x1e4] sm:$0xf]
      %v343 = vld [vmem:[%s1 + $0x1e8] sm:$0xf]
      %v344 = vld [vmem:[%s1 + $0x1ec] sm:$0xf]
      %v345 = vld [vmem:[%s1 + $0x1f0] sm:$0xf]
      %v346 = vld [vmem:[%s1 + $0x1f4] sm:$0xf]
      %v347 = vld [vmem:[%s1 + $0x1f8] sm:$0xf]
      %v348 = vld [vmem:[%s1 + $0x1fc] sm:$0xf]
      %v349 = vld [vmem:[%s1 + $0x200] sm:$0xf]
      %v350 = vld [vmem:[%s1 + $0x204] sm:$0xf]
      %v351 = vld [vmem:[%s1 + $0x208] sm:$0xf]
      %v352 = vld [vmem:[%s1 + $0x20c] sm:$0xf]
      %v353 = vld [vmem:[%s1 + $0x210] sm:$0xf]
      %v354 = vld [vmem:[%s1 + $0x214] sm:$0xf]
      %v355 = vld [vmem:[%s1 + $0x218] sm:$0xf]
      %v356 = vld [vmem:[%s1 + $0x21c] sm:$0xf]
      %v357 = vld [vmem:[%s1 + $0x220] sm:$0xf]
      %v358 = vld [vmem:[%s1 + $0x224] sm:$0xf]
      %v359 = vld [vmem:[%s1 + $0x228] sm:$0xf]
      %v360 = vld [vmem:[%s1 + $0x22c] sm:$0xf]
      %v361 = vld [vmem:[%s1 + $0x230] sm:$0xf]
      %v362 = vld [vmem:[%s1 + $0x234] sm:$0xf]
      %v363 = vld [vmem:[%s1 + $0x238] sm:$0xf]
      %v364 = vld [vmem:[%s1 + $0x23c] sm:$0xf]
      %v405 = vunpack.c.l.b16 %v181
      %v406 = vunpack.c.h.b16 %v181
      %v407 = vunpack.c.l.b16 %v182
      %v408 = vunpack.c.h.b16 %v182
      %v409 = vunpack.c.l.b16 %v183
      %v410 = vunpack.c.h.b16 %v183
      %v411 = vunpack.c.l.b16 %v184
      %v412 = vunpack.c.h.b16 %v184
      %v413 = vunpack.c.l.b16 %v185
      %v414 = vunpack.c.l.b16 %v186
      %v415 = vunpack.c.h.b16 %v186
      %v416 = vunpack.c.l.b16 %v187
      %v417 = vunpack.c.h.b16 %v187
      %v418 = vunpack.c.l.b16 %v188
      %v419 = vunpack.c.h.b16 %v188
      %v420 = vunpack.c.l.b16 %v189
      %v421 = vunpack.c.h.b16 %v189
      %v422 = vunpack.c.l.b16 %v190
      %v423 = vunpack.c.l.b16 %v191
      %v424 = vunpack.c.h.b16 %v191
      %v425 = vunpack.c.l.b16 %v192
      %v426 = vunpack.c.h.b16 %v192
      %v427 = vunpack.c.l.b16 %v193
      %v428 = vunpack.c.h.b16 %v193
      %v429 = vunpack.c.l.b16 %v194
      %v430 = vunpack.c.h.b16 %v194
      %v431 = vunpack.c.l.b16 %v195
      %v432 = vunpack.c.l.b16 %v196
      %v433 = vunpack.c.h.b16 %v196
      %v434 = vunpack.c.l.b16 %v197
      %v435 = vunpack.c.h.b16 %v197
      %v436 = vunpack.c.l.b16 %v198
      %v437 = vunpack.c.h.b16 %v198
      %v438 = vunpack.c.l.b16 %v199
      %v439 = vunpack.c.h.b16 %v199
      %v440 = vunpack.c.l.b16 %v200
      %v441 = vunpack.c.l.b16 %v201
      %v442 = vunpack.c.h.b16 %v201
      %v443 = vunpack.c.l.b16 %v202
      %v444 = vunpack.c.h.b16 %v202
      %v445 = vunpack.c.l.b16 %v203
      %v446 = vunpack.c.h.b16 %v203
      %v447 = vunpack.c.l.b16 %v204
      %v448 = vunpack.c.h.b16 %v204
      %v449 = vunpack.c.l.b16 %v205
      %v450 = vunpack.c.l.b16 %v206
      %v451 = vunpack.c.h.b16 %v206
      %v452 = vunpack.c.l.b16 %v207
      %v453 = vunpack.c.h.b16 %v207
      %v454 = vunpack.c.l.b16 %v208
      %v455 = vunpack.c.h.b16 %v208
      %v456 = vunpack.c.l.b16 %v209
      %v457 = vunpack.c.h.b16 %v209
      %v458 = vunpack.c.l.b16 %v210
      %v459 = vunpack.c.l.b16 %v211
      %v460 = vunpack.c.h.b16 %v211
      %v461 = vunpack.c.l.b16 %v212
      %v462 = vunpack.c.h.b16 %v212
      %v463 = vunpack.c.l.b16 %v213
      %v464 = vunpack.c.h.b16 %v213
      %v465 = vunpack.c.l.b16 %v214
      %v466 = vunpack.c.h.b16 %v214
      %v467 = vunpack.c.l.b16 %v215
      %v468 = vunpack.c.l.b16 %v216
      %v469 = vunpack.c.h.b16 %v216
      %v470 = vunpack.c.l.b16 %v217
      %v471 = vunpack.c.h.b16 %v217
      %v472 = vunpack.c.l.b16 %v218
      %v473 = vunpack.c.h.b16 %v218
      %v474 = vunpack.c.l.b16 %v219
      %v475 = vunpack.c.h.b16 %v219
      %v476 = vunpack.c.l.b16 %v220
      %v477 = vpack.c.b16 %v414, %v405
      %v478 = vpack.c.b16 %v415, %v406
      %v479 = vpack.c.b16 %v416, %v407
      %v480 = vpack.c.b16 %v417, %v408
      %v481 = vpack.c.b16 %v418, %v409
      %v482 = vpack.c.b16 %v419, %v410
      %v483 = vpack.c.b16 %v420, %v411
      %v484 = vpack.c.b16 %v421, %v412
      %v485 = vpack.c.b16 %v422, %v413
      %v486 = vpack.c.b16 %v432, %v423
      %v487 = vpack.c.b16 %v433, %v424
      %v488 = vpack.c.b16 %v434, %v425
      %v489 = vpack.c.b16 %v435, %v426
      %v490 = vpack.c.b16 %v436, %v427
      %v491 = vpack.c.b16 %v437, %v428
      %v492 = vpack.c.b16 %v438, %v429
      %v493 = vpack.c.b16 %v439, %v430
      %v494 = vpack.c.b16 %v440, %v431
      %v495 = vpack.c.b16 %v450, %v441
      %v496 = vpack.c.b16 %v451, %v442
      %v497 = vpack.c.b16 %v452, %v443
      %v498 = vpack.c.b16 %v453, %v444
      %v499 = vpack.c.b16 %v454, %v445
      %v500 = vpack.c.b16 %v455, %v446
      %v501 = vpack.c.b16 %v456, %v447
      %v502 = vpack.c.b16 %v457, %v448
      %v503 = vpack.c.b16 %v458, %v449
      %v504 = vpack.c.b16 %v468, %v459
      %v505 = vpack.c.b16 %v469, %v460
      %v506 = vpack.c.b16 %v470, %v461
      %v507 = vpack.c.b16 %v471, %v462
      %v508 = vpack.c.b16 %v472, %v463
      %v509 = vpack.c.b16 %v473, %v464
      %v510 = vpack.c.b16 %v474, %v465
      %v511 = vpack.c.b16 %v475, %v466
      %v512 = vpack.c.b16 %v476, %v467
      %v693 = vunpack.c.l.b16 %v221
      %v694 = vunpack.c.l.b16 %v222
      %v695 = vunpack.c.l.b16 %v223
      %v696 = vunpack.c.l.b16 %v224
      %v697 = vunpack.c.l.b16 %v225
      %v698 = vunpack.c.l.b16 %v226
      %v699 = vunpack.c.l.b16 %v227
      %v700 = vunpack.c.l.b16 %v228
      %v701 = vunpack.c.l.b16 %v229
      %v702 = vunpack.c.l.b16 %v230
      %v703 = vunpack.c.l.b16 %v231
      %v704 = vunpack.c.l.b16 %v232
      %v705 = vunpack.c.l.b16 %v233
      %v706 = vunpack.c.l.b16 %v234
      %v707 = vunpack.c.l.b16 %v235
      %v708 = vunpack.c.l.b16 %v236
      %v709 = vunpack.c.l.b16 %v237
      %v710 = vunpack.c.l.b16 %v238
      %v711 = vunpack.c.l.b16 %v239
      %v712 = vunpack.c.l.b16 %v240
      %v713 = vunpack.c.l.b16 %v241
      %v714 = vunpack.c.l.b16 %v242
      %v715 = vunpack.c.l.b16 %v243
      %v716 = vunpack.c.l.b16 %v244
      %v717 = vunpack.c.l.b16 %v245
      %v718 = vunpack.c.l.b16 %v246
      %v719 = vunpack.c.l.b16 %v247
      %v720 = vunpack.c.l.b16 %v248
      %v721 = vunpack.c.l.b16 %v249
      %v722 = vunpack.c.l.b16 %v250
      %v723 = vunpack.c.l.b16 %v251
      %v724 = vunpack.c.l.b16 %v252
      %v725 = vunpack.c.l.b16 %v253
      %v726 = vunpack.c.l.b16 %v254
      %v727 = vunpack.c.l.b16 %v255
      %v728 = vunpack.c.l.b16 %v256
      %v729 = vunpack.c.l.b16 %v257
      %v730 = vunpack.c.l.b16 %v258
      %v731 = vunpack.c.l.b16 %v259
      %v732 = vunpack.c.l.b16 %v260
      %v733 = vunpack.c.l.b16 %v261
      %v734 = vunpack.c.l.b16 %v262
      %v735 = vunpack.c.l.b16 %v263
      %v736 = vunpack.c.l.b16 %v264
      %v737 = vunpack.c.l.b16 %v265
      %v738 = vunpack.c.l.b16 %v266
      %v739 = vunpack.c.l.b16 %v267
      %v740 = vunpack.c.l.b16 %v268
      %v741 = vunpack.c.l.b16 %v269
      %v742 = vunpack.c.l.b16 %v270
      %v743 = vunpack.c.l.b16 %v271
      %v744 = vunpack.c.l.b16 %v272
      %v745 = vunpack.c.l.b16 %v273
      %v746 = vunpack.c.l.b16 %v274
      %v747 = vunpack.c.l.b16 %v275
      %v748 = vunpack.c.l.b16 %v276
      %v749 = vunpack.c.l.b16 %v277
      %v750 = vunpack.c.l.b16 %v278
      %v751 = vunpack.c.l.b16 %v279
      %v752 = vunpack.c.l.b16 %v280
      %v753 = vunpack.c.l.b16 %v281
      %v754 = vunpack.c.l.b16 %v282
      %v755 = vunpack.c.l.b16 %v283
      %v756 = vunpack.c.l.b16 %v284
      %v757 = vunpack.c.l.b16 %v285
      %v758 = vunpack.c.l.b16 %v286
      %v759 = vunpack.c.l.b16 %v287
      %v760 = vunpack.c.l.b16 %v288
      %v761 = vunpack.c.l.b16 %v289
      %v762 = vunpack.c.l.b16 %v290
      %v763 = vunpack.c.l.b16 %v291
      %v764 = vunpack.c.l.b16 %v292
      %v765 = vunpack.c.l.b16 %v293
      %v766 = vunpack.c.l.b16 %v294
      %v767 = vunpack.c.l.b16 %v295
      %v768 = vunpack.c.l.b16 %v296
      %v769 = vunpack.c.l.b16 %v297
      %v770 = vunpack.c.l.b16 %v298
      %v771 = vunpack.c.l.b16 %v299
      %v772 = vunpack.c.l.b16 %v300
      %v773 = vunpack.c.l.b16 %v301
      %v774 = vunpack.c.l.b16 %v302
      %v775 = vunpack.c.l.b16 %v303
      %v776 = vunpack.c.l.b16 %v304
      %v777 = vunpack.c.l.b16 %v305
      %v778 = vunpack.c.l.b16 %v306
      %v779 = vunpack.c.l.b16 %v307
      %v780 = vunpack.c.l.b16 %v308
      %v781 = vunpack.c.l.b16 %v309
      %v782 = vunpack.c.l.b16 %v310
      %v783 = vunpack.c.l.b16 %v311
      %v784 = vunpack.c.l.b16 %v312
      %v785 = vunpack.c.l.b16 %v313
      %v786 = vunpack.c.l.b16 %v314
      %v787 = vunpack.c.l.b16 %v315
      %v788 = vunpack.c.l.b16 %v316
      %v789 = vunpack.c.l.b16 %v317
      %v790 = vunpack.c.l.b16 %v318
      %v791 = vunpack.c.l.b16 %v319
      %v792 = vunpack.c.l.b16 %v320
      %v793 = vunpack.c.l.b16 %v321
      %v794 = vunpack.c.l.b16 %v322
      %v795 = vunpack.c.l.b16 %v323
      %v796 = vunpack.c.l.b16 %v324
      %v797 = vunpack.c.l.b16 %v325
      %v798 = vunpack.c.l.b16 %v326
      %v799 = vunpack.c.l.b16 %v327
      %v800 = vunpack.c.l.b16 %v328
      %v801 = vunpack.c.l.b16 %v329
      %v802 = vunpack.c.l.b16 %v330
      %v803 = vunpack.c.l.b16 %v331
      %v804 = vunpack.c.l.b16 %v332
      %v805 = vunpack.c.l.b16 %v333
      %v806 = vunpack.c.l.b16 %v334
      %v807 = vunpack.c.l.b16 %v335
      %v808 = vunpack.c.l.b16 %v336
      %v809 = vunpack.c.l.b16 %v337
      %v810 = vunpack.c.l.b16 %v338
      %v811 = vunpack.c.l.b16 %v339
      %v812 = vunpack.c.l.b16 %v340
      %v813 = vunpack.c.l.b16 %v341
      %v814 = vunpack.c.l.b16 %v342
      %v815 = vunpack.c.l.b16 %v343
      %v816 = vunpack.c.l.b16 %v344
      %v817 = vunpack.c.l.b16 %v345
      %v818 = vunpack.c.l.b16 %v346
      %v819 = vunpack.c.l.b16 %v347
      %v820 = vunpack.c.l.b16 %v348
      %v821 = vunpack.c.l.b16 %v349
      %v822 = vunpack.c.l.b16 %v350
      %v823 = vunpack.c.l.b16 %v351
      %v824 = vunpack.c.l.b16 %v352
      %v825 = vunpack.c.l.b16 %v353
      %v826 = vunpack.c.l.b16 %v354
      %v827 = vunpack.c.l.b16 %v355
      %v828 = vunpack.c.l.b16 %v356
      %v829 = vunpack.c.l.b16 %v357
      %v830 = vunpack.c.l.b16 %v358
      %v831 = vunpack.c.l.b16 %v359
      %v832 = vunpack.c.l.b16 %v360
      %v833 = vunpack.c.l.b16 %v361
      %v834 = vunpack.c.l.b16 %v362
      %v835 = vunpack.c.l.b16 %v363
      %v836 = vunpack.c.l.b16 %v364
      %v837 = vpack.c.b16 %v694, %v693
      %v838 = vpack.c.b16 %v696, %v695
      %v839 = vpack.c.b16 %v698, %v697
      %v840 = vpack.c.b16 %v700, %v699
      %v841 = vpack.c.b16 %v702, %v701
      %v842 = vpack.c.b16 %v704, %v703
      %v843 = vpack.c.b16 %v706, %v705
      %v844 = vpack.c.b16 %v708, %v707
      %v845 = vpack.c.b16 %v710, %v709
      %v846 = vpack.c.b16 %v712, %v711
      %v847 = vpack.c.b16 %v714, %v713
      %v848 = vpack.c.b16 %v716, %v715
      %v849 = vpack.c.b16 %v718, %v717
      %v850 = vpack.c.b16 %v720, %v719
      %v851 = vpack.c.b16 %v722, %v721
      %v852 = vpack.c.b16 %v724, %v723
      %v853 = vpack.c.b16 %v726, %v725
      %v854 = vpack.c.b16 %v728, %v727
      %v855 = vpack.c.b16 %v730, %v729
      %v856 = vpack.c.b16 %v732, %v731
      %v857 = vpack.c.b16 %v734, %v733
      %v858 = vpack.c.b16 %v736, %v735
      %v859 = vpack.c.b16 %v738, %v737
      %v860 = vpack.c.b16 %v740, %v739
      %v861 = vpack.c.b16 %v742, %v741
      %v862 = vpack.c.b16 %v744, %v743
      %v863 = vpack.c.b16 %v746, %v745
      %v864 = vpack.c.b16 %v748, %v747
      %v865 = vpack.c.b16 %v750, %v749
      %v866 = vpack.c.b16 %v752, %v751
      %v867 = vpack.c.b16 %v754, %v753
      %v868 = vpack.c.b16 %v756, %v755
      %v869 = vpack.c.b16 %v758, %v757
      %v870 = vpack.c.b16 %v760, %v759
      %v871 = vpack.c.b16 %v762, %v761
      %v872 = vpack.c.b16 %v764, %v763
      %v873 = vpack.c.b16 %v766, %v765
      %v874 = vpack.c.b16 %v768, %v767
      %v875 = vpack.c.b16 %v770, %v769
      %v876 = vpack.c.b16 %v772, %v771
      %v877 = vpack.c.b16 %v774, %v773
      %v878 = vpack.c.b16 %v776, %v775
      %v879 = vpack.c.b16 %v778, %v777
      %v880 = vpack.c.b16 %v780, %v779
      %v881 = vpack.c.b16 %v782, %v781
      %v882 = vpack.c.b16 %v784, %v783
      %v883 = vpack.c.b16 %v786, %v785
      %v884 = vpack.c.b16 %v788, %v787
      %v885 = vpack.c.b16 %v790, %v789
      %v886 = vpack.c.b16 %v792, %v791
      %v887 = vpack.c.b16 %v794, %v793
      %v888 = vpack.c.b16 %v796, %v795
      %v889 = vpack.c.b16 %v798, %v797
      %v890 = vpack.c.b16 %v800, %v799
      %v891 = vpack.c.b16 %v802, %v801
      %v892 = vpack.c.b16 %v804, %v803
      %v893 = vpack.c.b16 %v806, %v805
      %v894 = vpack.c.b16 %v808, %v807
      %v895 = vpack.c.b16 %v810, %v809
      %v896 = vpack.c.b16 %v812, %v811
      %v897 = vpack.c.b16 %v814, %v813
      %v898 = vpack.c.b16 %v816, %v815
      %v899 = vpack.c.b16 %v818, %v817
      %v900 = vpack.c.b16 %v820, %v819
      %v901 = vpack.c.b16 %v822, %v821
      %v902 = vpack.c.b16 %v824, %v823
      %v903 = vpack.c.b16 %v826, %v825
      %v904 = vpack.c.b16 %v828, %v827
      %v905 = vpack.c.b16 %v830, %v829
      %v906 = vpack.c.b16 %v832, %v831
      %v907 = vpack.c.b16 %v834, %v833
      %v908 = vpack.c.b16 %v836, %v835
      %981 = vmatprep.subr.bf16.mxu0 0
      %982 = vmatpush1.bf16.msra.mxu0 %v837
      %983 = vmatprep.subr.bf16.mxu0 0
      %984 = vmatpush1.bf16.msra.mxu0 %v838
      %985 = vmatprep.subr.bf16.mxu0 0
      %986 = vmatpush1.bf16.msra.mxu0 %v839
      %987 = vmatprep.subr.bf16.mxu0 0
      %988 = vmatpush1.bf16.msra.mxu0 %v840
      %989 = vmatprep.subr.bf16.mxu0 0
      %990 = vmatpush1.bf16.msra.mxu0 %v841
      %991 = vmatprep.subr.bf16.mxu0 0
      %992 = vmatpush1.bf16.msra.mxu0 %v842
      %993 = vmatprep.subr.bf16.mxu0 0
      %994 = vmatpush1.bf16.msra.mxu0 %v843
      %995 = vmatprep.subr.bf16.mxu0 0
      %996 = vmatpush1.bf16.msra.mxu0 %v844
      %997 = vmatprep.subr.bf16.mxu0 0
      %998 = vmatpush1.bf16.msra.mxu0 %v845
      %999 = vmatprep.subr.bf16.mxu0 0
      %1000 = vmatpush1.bf16.msra.mxu0 %v846
      %1001 = vmatprep.subr.bf16.mxu0 0
      %1002 = vmatpush1.bf16.msra.mxu0 %v847
      %1003 = vmatprep.subr.bf16.mxu0 0
      %1004 = vmatpush1.bf16.msra.mxu0 %v848
      %1005 = vmatprep.subr.bf16.mxu0 0
      %1006 = vmatpush1.bf16.msra.mxu0 %v849
      %1007 = vmatprep.subr.bf16.mxu0 0
      %1008 = vmatpush1.bf16.msra.mxu0 %v850
      %1009 = vmatprep.subr.bf16.mxu0 0
      %1010 = vmatpush1.bf16.msra.mxu0 %v851
      %1011 = vmatprep.subr.bf16.mxu0 0
      %1012 = vmatpush1.bf16.msra.mxu0 %v852
      %1013 = vmatprep.mubr.bf16.mxu0 %v478
      %1014 = vmatmul.mubr.bf16.gmra.mrb[0].mxu0 %v477
      %v1015 = vpop.f32.mrb[0].mxu0
      %v1016 = vadd.f32 0.0, %v1015
      %v1017 = vpop.f32.mrb[0].mxu0
      %v1018 = vpop.f32.mrb[0].mxu0
      %v1019 = vadd.f32 0.0, %v1018
      %v1020 = vpop.f32.mrb[0].mxu0
      %1021 = vmatprep.mubr.bf16.mxu0 %v487
      %1022 = vmatmul.mubr.bf16.gmra.mrb[0].mxu0 %v486
      %v1023 = vpop.f32.mrb[0].mxu0
      %v1024 = vadd.f32 0.0, %v1023
      %v1025 = vpop.f32.mrb[0].mxu0
      %v1026 = vpop.f32.mrb[0].mxu0
      %v1027 = vadd.f32 0.0, %v1026
      %v1028 = vpop.f32.mrb[0].mxu0
      %1029 = vmatprep.mubr.bf16.mxu0 %v496
      %1030 = vmatmul.mubr.bf16.gmra.mrb[0].mxu0 %v495
      %v1031 = vpop.f32.mrb[0].mxu0
      %v1032 = vadd.f32 0.0, %v1031
      %v1033 = vpop.f32.mrb[0].mxu0
      %v1034 = vpop.f32.mrb[0].mxu0
      %v1035 = vadd.f32 0.0, %v1034
      %v1036 = vpop.f32.mrb[0].mxu0
      %1037 = vmatprep.mubr.bf16.mxu0 %v505
      %1038 = vmatmul.mubr.bf16.gmra.mrb[0].mxu0 %v504
      %v1039 = vpop.f32.mrb[0].mxu0
      %v1040 = vadd.f32 0.0, %v1039
      %v1041 = vpop.f32.mrb[0].mxu0
      %v1042 = vpop.f32.mrb[0].mxu0
      %v1043 = vadd.f32 0.0, %v1042
      %v1044 = vpop.f32.mrb[0].mxu0
      %1045 = vdwg.mxu0
      %1046 = vmatprep.subr.bf16.mxu0 0
      %1047 = vmatpush1.bf16.msra.mxu0 %v853
      %1048 = vmatprep.subr.bf16.mxu0 0
      %1049 = vmatpush1.bf16.msra.mxu0 %v854
      %1050 = vmatprep.subr.bf16.mxu0 0
      %1051 = vmatpush1.bf16.msra.mxu0 %v855
      %1052 = vmatprep.subr.bf16.mxu0 0
      %1053 = vmatpush1.bf16.msra.mxu0 %v856
      %1054 = vmatprep.subr.bf16.mxu0 0
      %1055 = vmatpush1.bf16.msra.mxu0 %v857
      %1056 = vmatprep.subr.bf16.mxu0 0
      %1057 = vmatpush1.bf16.msra.mxu0 %v858
      %1058 = vmatprep.subr.bf16.mxu0 0
      %1059 = vmatpush1.bf16.msra.mxu0 %v859
      %1060 = vmatprep.subr.bf16.mxu0 0
      %1061 = vmatpush1.bf16.msra.mxu0 %v860
      %1062 = vmatprep.subr.bf16.mxu0 0
      %1063 = vmatpush1.bf16.msra.mxu0 %v861
      %1064 = vmatprep.subr.bf16.mxu0 0
      %1065 = vmatpush1.bf16.msra.mxu0 %v862
      %1066 = vmatprep.subr.bf16.mxu0 0
      %1067 = vmatpush1.bf16.msra.mxu0 %v863
      %1068 = vmatprep.subr.bf16.mxu0 0
      %1069 = vmatpush1.bf16.msra.mxu0 %v864
      %1070 = vmatprep.subr.bf16.mxu0 0
      %1071 = vmatpush1.bf16.msra.mxu0 %v865
      %1072 = vmatprep.subr.bf16.mxu0 0
      %1073 = vmatpush1.bf16.msra.mxu0 %v866
      %1074 = vmatprep.subr.bf16.mxu0 0
      %1075 = vmatpush1.bf16.msra.mxu0 %v867
      %1076 = vmatprep.subr.bf16.mxu0 0
      %1077 = vmatpush1.bf16.msra.mxu0 %v868
      %1078 = vmatprep.mubr.bf16.mxu0 %v480
      %1079 = vmatmul.mubr.bf16.gmra.mrb[0].mxu0 %v479
      %v1080 = vpop.f32.mrb[0].mxu0
      %v1081 = vadd.f32 %v1016, %v1080
      %v1082 = vpop.f32.mrb[0].mxu0
      %v1083 = vpop.f32.mrb[0].mxu0
      %v1084 = vadd.f32 %v1019, %v1083
      %v1085 = vpop.f32.mrb[0].mxu0
      %1086 = vmatprep.mubr.bf16.mxu0 %v489
      %1087 = vmatmul.mubr.bf16.gmra.mrb[0].mxu0 %v488
      %v1088 = vpop.f32.mrb[0].mxu0
      %v1089 = vadd.f32 %v1024, %v1088
      %v1090 = vpop.f32.mrb[0].mxu0
      %v1091 = vpop.f32.mrb[0].mxu0
      %v1092 = vadd.f32 %v1027, %v1091
      %v1093 = vpop.f32.mrb[0].mxu0
      %1094 = vmatprep.mubr.bf16.mxu0 %v498
      %1095 = vmatmul.mubr.bf16.gmra.mrb[0].mxu0 %v497
      %v1096 = vpop.f32.mrb[0].mxu0
      %v1097 = vadd.f32 %v1032, %v1096
      %v1098 = vpop.f32.mrb[0].mxu0
      %v1099 = vpop.f32.mrb[0].mxu0
      %v1100 = vadd.f32 %v1035, %v1099
      %v1101 = vpop.f32.mrb[0].mxu0
      %1102 = vmatprep.mubr.bf16.mxu0 %v507
      %1103 = vmatmul.mubr.bf16.gmra.mrb[0].mxu0 %v506
      %v1104 = vpop.f32.mrb[0].mxu0
      %v1105 = vadd.f32 %v1040, %v1104
      %v1106 = vpop.f32.mrb[0].mxu0
      %v1107 = vpop.f32.mrb[0].mxu0
      %v1108 = vadd.f32 %v1043, %v1107
      %v1109 = vpop.f32.mrb[0].mxu0
      %1110 = vdwg.mxu0
      %1111 = vmatprep.subr.bf16.mxu0 0
      %1112 = vmatpush1.bf16.msra.mxu0 %v869
      %1113 = vmatprep.subr.bf16.mxu0 0
      %1114 = vmatpush1.bf16.msra.mxu0 %v870
      %1115 = vmatprep.subr.bf16.mxu0 0
      %1116 = vmatpush1.bf16.msra.mxu0 %v871
      %1117 = vmatprep.subr.bf16.mxu0 0
      %1118 = vmatpush1.bf16.msra.mxu0 %v872
      %1119 = vmatprep.subr.bf16.mxu0 0
      %1120 = vmatpush1.bf16.msra.mxu0 %v873
      %1121 = vmatprep.subr.bf16.mxu0 0
      %1122 = vmatpush1.bf16.msra.mxu0 %v874
      %1123 = vmatprep.subr.bf16.mxu0 0
      %1124 = vmatpush1.bf16.msra.mxu0 %v875
      %1125 = vmatprep.subr.bf16.mxu0 0
      %1126 = vmatpush1.bf16.msra.mxu0 %v876
      %1127 = vmatprep.subr.bf16.mxu0 0
      %1128 = vmatpush1.bf16.msra.mxu0 %v877
      %1129 = vmatprep.subr.bf16.mxu0 0
      %1130 = vmatpush1.bf16.msra.mxu0 %v878
      %1131 = vmatprep.subr.bf16.mxu0 0
      %1132 = vmatpush1.bf16.msra.mxu0 %v879
      %1133 = vmatprep.subr.bf16.mxu0 0
      %1134 = vmatpush1.bf16.msra.mxu0 %v880
      %1135 = vmatprep.subr.bf16.mxu0 0
      %1136 = vmatpush1.bf16.msra.mxu0 %v881
      %1137 = vmatprep.subr.bf16.mxu0 0
      %1138 = vmatpush1.bf16.msra.mxu0 %v882
      %1139 = vmatprep.subr.bf16.mxu0 0
      %1140 = vmatpush1.bf16.msra.mxu0 %v883
      %1141 = vmatprep.subr.bf16.mxu0 0
      %1142 = vmatpush1.bf16.msra.mxu0 %v884
      %1143 = vmatprep.mubr.bf16.mxu0 %v482
      %1144 = vmatmul.mubr.bf16.gmra.mrb[0].mxu0 %v481
      %v1145 = vpop.f32.mrb[0].mxu0
      %v1146 = vadd.f32 %v1081, %v1145
      %v1147 = vpop.f32.mrb[0].mxu0
      %v1148 = vpop.f32.mrb[0].mxu0
      %v1149 = vadd.f32 %v1084, %v1148
      %v1150 = vpop.f32.mrb[0].mxu0
      %1151 = vmatprep.mubr.bf16.mxu0 %v491
      %1152 = vmatmul.mubr.bf16.gmra.mrb[0].mxu0 %v490
      %v1153 = vpop.f32.mrb[0].mxu0
      %v1154 = vadd.f32 %v1089, %v1153
      %v1155 = vpop.f32.mrb[0].mxu0
      %v1156 = vpop.f32.mrb[0].mxu0
      %v1157 = vadd.f32 %v1092, %v1156
      %v1158 = vpop.f32.mrb[0].mxu0
      %1159 = vmatprep.mubr.bf16.mxu0 %v500
      %1160 = vmatmul.mubr.bf16.gmra.mrb[0].mxu0 %v499
      %v1161 = vpop.f32.mrb[0].mxu0
      %v1162 = vadd.f32 %v1097, %v1161
      %v1163 = vpop.f32.mrb[0].mxu0
      %v1164 = vpop.f32.mrb[0].mxu0
      %v1165 = vadd.f32 %v1100, %v1164
      %v1166 = vpop.f32.mrb[0].mxu0
      %1167 = vmatprep.mubr.bf16.mxu0 %v509
      %1168 = vmatmul.mubr.bf16.gmra.mrb[0].mxu0 %v508
      %v1169 = vpop.f32.mrb[0].mxu0
      %v1170 = vadd.f32 %v1105, %v1169
      %v1171 = vpop.f32.mrb[0].mxu0
      %v1172 = vpop.f32.mrb[0].mxu0
      %v1173 = vadd.f32 %v1108, %v1172
      %v1174 = vpop.f32.mrb[0].mxu0
      %1175 = vdwg.mxu0
      %1176 = vmatprep.subr.bf16.mxu0 0
      %1177 = vmatpush1.bf16.msra.mxu0 %v885
      %1178 = vmatprep.subr.bf16.mxu0 0
      %1179 = vmatpush1.bf16.msra.mxu0 %v886
      %1180 = vmatprep.subr.bf16.mxu0 0
      %1181 = vmatpush1.bf16.msra.mxu0 %v887
      %1182 = vmatprep.subr.bf16.mxu0 0
      %1183 = vmatpush1.bf16.msra.mxu0 %v888
      %1184 = vmatprep.subr.bf16.mxu0 0
      %1185 = vmatpush1.bf16.msra.mxu0 %v889
      %1186 = vmatprep.subr.bf16.mxu0 0
      %1187 = vmatpush1.bf16.msra.mxu0 %v890
      %1188 = vmatprep.subr.bf16.mxu0 0
      %1189 = vmatpush1.bf16.msra.mxu0 %v891
      %1190 = vmatprep.subr.bf16.mxu0 0
      %1191 = vmatpush1.bf16.msra.mxu0 %v892
      %1192 = vmatprep.subr.bf16.mxu0 0
      %1193 = vmatpush1.bf16.msra.mxu0 %v893
      %1194 = vmatprep.subr.bf16.mxu0 0
      %1195 = vmatpush1.bf16.msra.mxu0 %v894
      %1196 = vmatprep.subr.bf16.mxu0 0
      %1197 = vmatpush1.bf16.msra.mxu0 %v895
      %1198 = vmatprep.subr.bf16.mxu0 0
      %1199 = vmatpush1.bf16.msra.mxu0 %v896
      %1200 = vmatprep.subr.bf16.mxu0 0
      %1201 = vmatpush1.bf16.msra.mxu0 %v897
      %1202 = vmatprep.subr.bf16.mxu0 0
      %1203 = vmatpush1.bf16.msra.mxu0 %v898
      %1204 = vmatprep.subr.bf16.mxu0 0
      %1205 = vmatpush1.bf16.msra.mxu0 %v899
      %1206 = vmatprep.subr.bf16.mxu0 0
      %1207 = vmatpush1.bf16.msra.mxu0 %v900
      %1208 = vmatprep.mubr.bf16.mxu0 %v484
      %1209 = vmatmul.mubr.bf16.gmra.mrb[0].mxu0 %v483
      %v1210 = vpop.f32.mrb[0].mxu0
      %v1211 = vadd.f32 %v1146, %v1210
      %v1212 = vpop.f32.mrb[0].mxu0
      %v1213 = vpop.f32.mrb[0].mxu0
      %v1214 = vadd.f32 %v1149, %v1213
      %v1215 = vpop.f32.mrb[0].mxu0
      %1216 = vmatprep.mubr.bf16.mxu0 %v493
      %1217 = vmatmul.mubr.bf16.gmra.mrb[0].mxu0 %v492
      %v1218 = vpop.f32.mrb[0].mxu0
      %v1219 = vadd.f32 %v1154, %v1218
      %v1220 = vpop.f32.mrb[0].mxu0
      %v1221 = vpop.f32.mrb[0].mxu0
      %v1222 = vadd.f32 %v1157, %v1221
      %v1223 = vpop.f32.mrb[0].mxu0
      %1224 = vmatprep.mubr.bf16.mxu0 %v502
      %1225 = vmatmul.mubr.bf16.gmra.mrb[0].mxu0 %v501
      %v1226 = vpop.f32.mrb[0].mxu0
      %v1227 = vadd.f32 %v1162, %v1226
      %v1228 = vpop.f32.mrb[0].mxu0
      %v1229 = vpop.f32.mrb[0].mxu0
      %v1230 = vadd.f32 %v1165, %v1229
      %v1231 = vpop.f32.mrb[0].mxu0
      %1232 = vmatprep.mubr.bf16.mxu0 %v511
      %1233 = vmatmul.mubr.bf16.gmra.mrb[0].mxu0 %v510
      %v1234 = vpop.f32.mrb[0].mxu0
      %v1235 = vadd.f32 %v1170, %v1234
      %v1236 = vpop.f32.mrb[0].mxu0
      %v1237 = vpop.f32.mrb[0].mxu0
      %v1238 = vadd.f32 %v1173, %v1237
      %v1239 = vpop.f32.mrb[0].mxu0
      %1240 = vdwg.mxu0
      %1241 = vmatprep.subr.bf16.mxu0 0
      %1242 = vmatpush1.bf16.msra.mxu0 %v901
      %1243 = vmatprep.subr.bf16.mxu0 0
      %1244 = vmatpush1.bf16.msra.mxu0 %v902
      %1245 = vmatprep.subr.bf16.mxu0 0
      %1246 = vmatpush1.bf16.msra.mxu0 %v903
      %1247 = vmatprep.subr.bf16.mxu0 0
      %1248 = vmatpush1.bf16.msra.mxu0 %v904
      %1249 = vmatprep.subr.bf16.mxu0 0
      %1250 = vmatpush1.bf16.msra.mxu0 %v905
      %1251 = vmatprep.subr.bf16.mxu0 0
      %1252 = vmatpush1.bf16.msra.mxu0 %v906
      %1253 = vmatprep.subr.bf16.mxu0 0
      %1254 = vmatpush1.bf16.msra.mxu0 %v907
      %1255 = vmatprep.subr.bf16.mxu0 0
      %1256 = vmatpush1.bf16.msra.mxu0 %v908
      %1257 = vmatprep.subr.bf16.mxu0 0
      %1258 = vmatpush1.bf16.msra.mxu0 0
      %1259 = vmatprep.subr.bf16.mxu0 0
      %1260 = vmatpush1.bf16.msra.mxu0 0
      %1261 = vmatprep.subr.bf16.mxu0 0
      %1262 = vmatpush1.bf16.msra.mxu0 0
      %1263 = vmatprep.subr.bf16.mxu0 0
      %1264 = vmatpush1.bf16.msra.mxu0 0
      %1265 = vmatprep.subr.bf16.mxu0 0
      %1266 = vmatpush1.bf16.msra.mxu0 0
      %1267 = vmatprep.subr.bf16.mxu0 0
      %1268 = vmatpush1.bf16.msra.mxu0 0
      %1269 = vmatprep.subr.bf16.mxu0 0
      %1270 = vmatpush1.bf16.msra.mxu0 0
      %1271 = vmatprep.subr.bf16.mxu0 0
      %1272 = vmatpush1.bf16.msra.mxu0 0
      %1273 = vmatprep.mubr.bf16.mxu0 0
      %1274 = vmatmul.mubr.bf16.gmra.mrb[0].mxu0 %v485
      %v1275 = vpop.f32.mrb[0].mxu0
      %v1276 = vadd.f32 %v1211, %v1275
      %v1277 = vpop.f32.mrb[0].mxu0
      %v1278 = vpop.f32.mrb[0].mxu0
      %v1279 = vadd.f32 %v1214, %v1278
      %v1280 = vpop.f32.mrb[0].mxu0
      %1281 = vmatprep.mubr.bf16.mxu0 0
      %1282 = vmatmul.mubr.bf16.gmra.mrb[0].mxu0 %v494
      %v1283 = vpop.f32.mrb[0].mxu0
      %v1284 = vadd.f32 %v1219, %v1283
      %v1285 = vpop.f32.mrb[0].mxu0
      %v1286 = vpop.f32.mrb[0].mxu0
      %v1287 = vadd.f32 %v1222, %v1286
      %v1288 = vpop.f32.mrb[0].mxu0
      %1289 = vmatprep.mubr.bf16.mxu0 0
      %1290 = vmatmul.mubr.bf16.gmra.mrb[0].mxu0 %v503
      %v1291 = vpop.f32.mrb[0].mxu0
      %v1292 = vadd.f32 %v1227, %v1291
      %v1293 = vpop.f32.mrb[0].mxu0
      %v1294 = vpop.f32.mrb[0].mxu0
      %v1295 = vadd.f32 %v1230, %v1294
      %v1296 = vpop.f32.mrb[0].mxu0
      %1297 = vmatprep.mubr.bf16.mxu0 0
      %1298 = vmatmul.mubr.bf16.gmra.mrb[0].mxu0 %v512
      %v1299 = vpop.f32.mrb[0].mxu0
      %v1300 = vadd.f32 %v1235, %v1299
      %v1301 = vpop.f32.mrb[0].mxu0
      %v1302 = vpop.f32.mrb[0].mxu0
      %v1303 = vadd.f32 %v1238, %v1302
      %v1304 = vpop.f32.mrb[0].mxu0
      %1305 = vdwg.mxu0
      %1306 = vst [vmem:[%s173] sm:$0xff] %v1276
      %1307 = vst [vmem:[%s173 + $0x8] sm:$0xff] %v1279
      %1308 = vst [vmem:[%s173 + $0x10] sm:$0xff] %v1284
      %1309 = vst [vmem:[%s173 + $0x18] sm:$0xff] %v1287
      %1310 = vst [vmem:[%s173 + $0x20] sm:$0xff] %v1292
      %1311 = vst [vmem:[%s173 + $0x28] sm:$0xff] %v1295
      %1312 = vst [vmem:[%s173 + $0x30] sm:$0xff] %v1300
      %1313 = vst [vmem:[%s173 + $0x38] sm:$0xff] %v1303
      %v1314 = vadd.f32 %v1276, %v1279
      %v1315 = vadd.f32 %v1314, %v1284
      %v1316 = vadd.f32 %v1315, %v1287
      %v1317 = vadd.f32 %v1316, %v1292
      %v1318 = vadd.f32 %v1317, %v1295
      %v1319 = vadd.f32 %v1318, %v1300
      %v1320 = vadd.f32 %v1319, %v1303
      %v1321 = vrot.slane %v1320, 4
      %v1322 = vadd.f32 %v1320, %v1321
      %v1323 = vrot.slane %v1322, 2
      %v1324 = vadd.f32 %v1322, %v1323
      %v1325 = vrot.slane %v1324, 1
      %v1326 = vadd.f32 %v1324, %v1325
      %v1327 = vmul.f32 %v1276, %v1276
      %v1328 = vmul.f32 %v1279, %v1279
      %v1329 = vmul.f32 %v1284, %v1284
      %v1330 = vmul.f32 %v1287, %v1287
      %v1331 = vmul.f32 %v1292, %v1292
      %v1332 = vmul.f32 %v1295, %v1295
      %v1333 = vmul.f32 %v1300, %v1300
      %v1334 = vmul.f32 %v1303, %v1303
      %v1335 = vadd.f32 %v1327, %v1328
      %v1336 = vadd.f32 %v1335, %v1329
      %v1337 = vadd.f32 %v1336, %v1330
      %v1338 = vadd.f32 %v1337, %v1331
      %v1339 = vadd.f32 %v1338, %v1332
      %v1340 = vadd.f32 %v1339, %v1333
      %v1341 = vadd.f32 %v1340, %v1334
      %v1342 = vrot.slane %v1341, 4
      %v1343 = vadd.f32 %v1341, %v1342
      %v1344 = vrot.slane %v1343, 2
      %v1345 = vadd.f32 %v1343, %v1344
      %v1346 = vrot.slane %v1345, 1
      %v1347 = vadd.f32 %v1345, %v1346
      %v1348 = vld [vmem:[%s3] sm:$0x3]
      %vm1349 = vcmask 1040384
      %v1350 = vsel %vm1349, %v1326, %v1347
      %v1351 = vadd.f32 %v1348, %v1350
      %1352 = vst [vmem:[%s3] sm:$0x3] %v1351
      %s1353 = smul.u32 8, %s15
      %p1354 = scmp.lt.s32.totalorder %s1353, 15
      %s1355 = scalar_select %p1354, %s1353, 15
      %s1356 = smul.addr %s1355, 8
      %s1357 = scalar_lea.vmem %s2, %s1356
      // Predicated region
      $region33: #{basic_block_forward.8} parent=27 // pred_check
        %p1358 = pneg %p80
      $region34: #{basic_block_forward.8} parent=27 // pred_check_branch
        %1360 = sbr.rel (%p1358) target = $region36
      $region35: #{basic_block_forward.8} parent=27 // pred_region
        %s1361 = smul.u32 8, %s15
      $region36: #{basic_block_forward.8} parent=27 // pred_fallthru
        _
      // Predicated region
      $region37: #{basic_block_forward.8} parent=27 // pred_check
        %p1362 = pneg %p101
      $region38: #{basic_block_forward.8} parent=27 // pred_check_branch
        %1364 = sbr.rel (%p1362) target = $region40
      $region39: #{basic_block_forward.8} parent=27 // pred_region
        _
      $region40: #{basic_block_forward.8} parent=27 // pred_fallthru
        _
      // Predicated region
      $region41: #{basic_block_forward.8} parent=27 // pred_check
        %p1365 = pneg %p101
      $region42: #{basic_block_forward.8} parent=27 // pred_check_branch
        %1367 = sbr.rel (%p1365) target = $region44
      $region43: #{basic_block_forward.8} parent=27 // pred_region
        _
      $region44: #{basic_block_forward.8} parent=27 // pred_fallthru
        _
    $region28: #{basic_block_forward.8} parent=5 // pred_fallthru
      _
    %p1368 = scmp.le.s32.totalorder 2, %s10
    // Predicated region
    $region45: #{basic_block_forward.8} parent=5 // pred_check
      %p1369 = pneg %p1368
    $region46: #{basic_block_forward.8} parent=5 // pred_check_branch
      %1371 = sbr.rel (%p1369) target = $region48
    $region47: #{basic_block_forward.8} parent=5 // pred_region
      %s1372 = ssub.s32 %s10, 2
      // Predicated region
      $region49: #{basic_block_forward.8} parent=47 // pred_check
        %p1373 = pneg %p86
      $region50: #{basic_block_forward.8} parent=47 // pred_check_branch
        %1375 = sbr.rel (%p1373) target = $region52
      $region51: #{basic_block_forward.8} parent=47 // pred_region
        %s1376 = smul.u32 8, %s16
        %p1377 = scmp.lt.s32.totalorder %s1376, 15
        %s1378 = scalar_select %p1377, %s1376, 15
        %s1379 = smul.addr %s1378, 8
        %s1380 = scalar_lea.vmem %s2, %s1379
      $region52: #{basic_block_forward.8} parent=47 // pred_fallthru
        _
    $region48: #{basic_block_forward.8} parent=5 // pred_fallthru
      _
  $region6: #{basic_block_forward.8} parent=0 // loop_footer
    %s14 = sadd.s32 1, %s10
  $region7: #{basic_block_forward.8} parent=0 // loop_footer_branch
    %9 = sbr.rel target = $region3
  $region8: #{basic_block_forward.8} parent=0 // loop_exit
    _

</llo_original>
